<compile_context>
chip_gen: v6e
topology: v6e:2x2x1
jax: 0.10.0
libtpu: 0.0.40
codegen_flags: <defaults>
</compile_context>

<pallas_src>
import functools
import math

import jax
import jax.numpy as jnp
from jax.experimental import pallas as pl
from jax.experimental.pallas import tpu as pltpu


# --------------------------------------------------------------------------
# helpers
# --------------------------------------------------------------------------

def _pick_tile(dim, pref):
    """Largest aligned tile <= pref that evenly divides dim, else full dim."""
    if dim <= pref or dim % pref != 0:
        return dim
    return pref


# --------------------------------------------------------------------------
# generic tiled matmul + bias (+ReLU)  --  used for the fused QKV projection
# --------------------------------------------------------------------------

def _matmul_bias_kernel(a_ref, b_ref, bias_ref, o_ref, acc_ref, *, activation):
    @pl.when(pl.program_id(2) == 0)
    def _():
        acc_ref[...] = jnp.zeros_like(acc_ref)

    a = a_ref[...]
    if a.dtype != jnp.bfloat16:
        a = a.astype(jnp.bfloat16)
    acc_ref[...] += jnp.dot(a, b_ref[...], preferred_element_type=jnp.float32)

    @pl.when(pl.program_id(2) == pl.num_programs(2) - 1)
    def _():
        y = acc_ref[...] + bias_ref[...]
        if activation == "relu":
            y = jnp.maximum(y, 0.0)
        o_ref[...] = y.astype(o_ref.dtype)


def matmul_bias(a, w_bf16, bias, *, activation=None, out_dtype=jnp.float32,
                tm=256, tn=256, tk=512):
    """a: (M,K) f32/bf16, w: (K,N) bf16, bias: (1,N) f32 -> (M,N) out_dtype."""
    M, K = a.shape
    K2, N = w_bf16.shape
    assert K == K2
    tm = _pick_tile(M, tm)
    tn = _pick_tile(N, tn)
    tk = _pick_tile(K, tk)
    grid = (M // tm, N // tn, K // tk)
    kernel = functools.partial(_matmul_bias_kernel, activation=activation)
    return pl.pallas_call(
        kernel,
        grid=grid,
        in_specs=[
            pl.BlockSpec((tm, tk), lambda i, j, k: (i, k)),
            pl.BlockSpec((tk, tn), lambda i, j, k: (k, j)),
            pl.BlockSpec((1, tn), lambda i, j, k: (0, j)),
        ],
        out_specs=pl.BlockSpec((tm, tn), lambda i, j, k: (i, j)),
        out_shape=jax.ShapeDtypeStruct((M, N), out_dtype),
        scratch_shapes=[pltpu.VMEM((tm, tn), jnp.float32)],
        compiler_params=pltpu.CompilerParams(
            dimension_semantics=("parallel", "parallel", "arbitrary")),
    )(a, w_bf16, bias)


# --------------------------------------------------------------------------
# fused multi-head attention + o-projection + residual + LayerNorm
# (all heads of one batch element per grid step; context never leaves VMEM)
# --------------------------------------------------------------------------

def _attn_block(q_ref, k_ref, v_ref, x_ref, wo_ref, bo_ref, g_ref, b_ref,
                o_ref):
    q = q_ref[0]                                    # (H, T, dh) bf16
    k = k_ref[0]
    v = v_ref[0]
    H = q.shape[0]
    scale = 1.0 / math.sqrt(q.shape[-1])

    # scores + softmax (f32)
    s = jnp.einsum("hqd,hkd->hqk", q, k,
                   preferred_element_type=jnp.float32) * scale       # (H,T,T)
    m = jnp.max(s, axis=-1, keepdims=True)
    p = jnp.exp(s - m)
    l = jnp.sum(p, axis=-1, keepdims=True)
    w = p * pl.reciprocal(l, approx=True)           # softmax weights (f32)

    # context  (H, T, dh) in VMEM only
    ctx = jnp.einsum("hqk,hkd->hqd", w.astype(v.dtype), v,
                     preferred_element_type=jnp.float32)
    ctx = ctx.astype(jnp.bfloat16)

    # per-head o-projection:  y(T,D) = sum_h ctx[h] @ Wo[h]   (Wo: (H, dh, D))
    y = jnp.dot(ctx[0], wo_ref[0], preferred_element_type=jnp.float32)
    for h in range(1, H):
        y = y + jnp.dot(ctx[h], wo_ref[h], preferred_element_type=jnp.float32)

    # bias + residual + LayerNorm
    y = y + bo_ref[...] + x_ref[0]
    mean = jnp.mean(y, axis=-1, keepdims=True)
    var = jnp.mean(jnp.square(y - mean), axis=-1, keepdims=True)
    o_ref[0] = ((y - mean) * jax.lax.rsqrt(var + 1e-5)) * g_ref[...] + b_ref[...]
    return w


def _attn_kernel(q_ref, k_ref, v_ref, x_ref, wo_ref, bo_ref, g_ref, b_ref,
                 o_ref):
    _attn_block(q_ref, k_ref, v_ref, x_ref, wo_ref, bo_ref, g_ref, b_ref,
                o_ref)


def _attn_kernel_with_weights(q_ref, k_ref, v_ref, x_ref, wo_ref, bo_ref,
                              g_ref, b_ref, o_ref, w_ref):
    w = _attn_block(q_ref, k_ref, v_ref, x_ref, wo_ref, bo_ref, g_ref, b_ref,
                    o_ref)
    w_ref[0] = w


def attn_oproj_residual_layernorm(q, k, v, x, wo_heads, bo, gamma, beta,
                                  return_weights):
    """q,k,v: (B,H,T,dh) bf16; x: (B,T,D) f32; wo_heads: (H,dh,D) bf16.
    Returns LayerNorm(x + Wo @ MHA(q,k,v) + bo) of shape (B,T,D) f32
    and optionally the (B,H,T,T) f32 attention weights."""
    B, H, T, dh = q.shape
    D = x.shape[-1]
    qkv_spec = pl.BlockSpec((1, H, T, dh), lambda b: (b, 0, 0, 0))
    x_spec = pl.BlockSpec((1, T, D), lambda b: (b, 0, 0))
    wo_spec = pl.BlockSpec((H, dh, D), lambda b: (0, 0, 0))
    vec_spec = pl.BlockSpec((1, D), lambda b: (0, 0))
    out_shape = jax.ShapeDtypeStruct((B, T, D), jnp.float32)
    cp = pltpu.CompilerParams(dimension_semantics=("parallel",))
    in_specs = [qkv_spec, qkv_spec, qkv_spec, x_spec, wo_spec, vec_spec,
                vec_spec, vec_spec]
    if return_weights:
        w_spec = pl.BlockSpec((1, H, T, T), lambda b: (b, 0, 0, 0))
        out, w = pl.pallas_call(
            _attn_kernel_with_weights,
            grid=(B,),
            in_specs=in_specs,
            out_specs=(x_spec, w_spec),
            out_shape=(out_shape,
                       jax.ShapeDtypeStruct((B, H, T, T), jnp.float32)),
            compiler_params=cp,
        )(q, k, v, x, wo_heads, bo, gamma, beta)
        return out, w
    out = pl.pallas_call(
        _attn_kernel,
        grid=(B,),
        in_specs=in_specs,
        out_specs=x_spec,
        out_shape=out_shape,
        compiler_params=cp,
    )(q, k, v, x, wo_heads, bo, gamma, beta)
    return out, None


# --------------------------------------------------------------------------
# fused FFN (linear + ReLU + linear) + residual add + LayerNorm
# --------------------------------------------------------------------------

def _ffn_res_ln_kernel(h_ref, w1_ref, b1_ref, w2_ref, b2_ref, g_ref, b_ref,
                       o_ref):
    h = h_ref[...]                                                   # (tm, D) f32
    f = jnp.dot(h.astype(jnp.bfloat16), w1_ref[...],
                preferred_element_type=jnp.float32) + b1_ref[...]
    f = jnp.maximum(f, 0.0)                                          # (tm, F)
    y = jnp.dot(f.astype(jnp.bfloat16), w2_ref[...],
                preferred_element_type=jnp.float32) + b2_ref[...]
    y = y + h
    mean = jnp.mean(y, axis=-1, keepdims=True)
    var = jnp.mean(jnp.square(y - mean), axis=-1, keepdims=True)
    o_ref[...] = ((y - mean) * jax.lax.rsqrt(var + 1e-5)) * g_ref[...] + b_ref[...]


def ffn_residual_layernorm(h, w1, b1, w2, b2, gamma, beta, *, tm=256):
    M, D = h.shape
    F = w1.shape[1]
    tm = _pick_tile(M, tm)
    return pl.pallas_call(
        _ffn_res_ln_kernel,
        grid=(M // tm,),
        in_specs=[
            pl.BlockSpec((tm, D), lambda i: (i, 0)),
            pl.BlockSpec((D, F), lambda i: (0, 0)),
            pl.BlockSpec((1, F), lambda i: (0, 0)),
            pl.BlockSpec((F, D), lambda i: (0, 0)),
            pl.BlockSpec((1, D), lambda i: (0, 0)),
            pl.BlockSpec((1, D), lambda i: (0, 0)),
            pl.BlockSpec((1, D), lambda i: (0, 0)),
        ],
        out_specs=pl.BlockSpec((tm, D), lambda i: (i, 0)),
        out_shape=jax.ShapeDtypeStruct((M, D), jnp.float32),
        compiler_params=pltpu.CompilerParams(dimension_semantics=("parallel",)),
    )(h, w1, b1, w2, b2, gamma, beta)


# --------------------------------------------------------------------------
# fused ResBlockEmbedding (conv stride-2 + BN + ReLU, conv + BN, shortcut,
# ReLU) + positional encoding, one batch element per grid step
# --------------------------------------------------------------------------

def _embed_pe_kernel(xe_ref, xo_ref, w1_ref, b1_ref, w2_ref, b2_ref,
                     wds_ref, bds_ref, pe_ref, o_ref):
    xe = xe_ref[0].astype(jnp.bfloat16)            # even time rows  (T', Cin)
    xo = xo_ref[0].astype(jnp.bfloat16)            # odd  time rows  (T', Cin)

    # ---- conv1: K=3, stride=2, pad=1 (BN folded), ReLU ----------------------
    # out[j] = x[2j-1]@W0 + x[2j]@W1 + x[2j+1]@W2 + b    (x[-1] = 0)
    c = jnp.dot(xe, w1_ref[1], preferred_element_type=jnp.float32)
    c = c + jnp.dot(xo, w1_ref[2], preferred_element_type=jnp.float32)
    c0 = jnp.dot(xo, w1_ref[0], preferred_element_type=jnp.float32)   # (T', D)
    ridx = jax.lax.broadcasted_iota(jnp.int32, c0.shape, 0)
    c0 = jnp.where(ridx == 0, 0.0, pltpu.roll(c0, shift=1, axis=0))
    h1 = jnp.maximum(c + c0 + b1_ref[...], 0.0)                       # (T', D)

    # ---- conv2: K=3, stride=1, pad=1 (BN folded) ----------------------------
    Tp = h1.shape[0]
    h1_prev = jnp.where(ridx == 0, 0.0, pltpu.roll(h1, shift=1, axis=0))
    h1_next = jnp.where(ridx == Tp - 1, 0.0, pltpu.roll(h1, shift=Tp - 1, axis=0))
    y = jnp.dot(h1_prev.astype(jnp.bfloat16), w2_ref[0],
                preferred_element_type=jnp.float32)
    y = y + jnp.dot(h1.astype(jnp.bfloat16), w2_ref[1],
                    preferred_element_type=jnp.float32)
    y = y + jnp.dot(h1_next.astype(jnp.bfloat16), w2_ref[2],
                    preferred_element_type=jnp.float32)
    y = y + b2_ref[...]

    # ---- 1x1 stride-2 downsample shortcut + ReLU + positional encoding -----
    sc = jnp.dot(xe, wds_ref[...], preferred_element_type=jnp.float32) + bds_ref[...]
    o_ref[0] = jnp.maximum(y + sc, 0.0) + pe_ref[...]


def res_block_embedding_pe(x, p, pe_table):
    """(B, T, Cin) -> (B, T//2, D) with positional encoding already added."""
    B, T, Cin = x.shape
    assert T % 2 == 0, "stride-2 embedding requires an even time length"
    Tp = T // 2
    xr = x.reshape(B, Tp, 2, Cin)
    xe = xr[:, :, 0, :]                            # (B, T', Cin) — no im2col copy
    xo = xr[:, :, 1, :]
    D = p["b1"].shape[-1]
    pe = pe_table[:Tp]
    return pl.pallas_call(
        _embed_pe_kernel,
        grid=(B,),
        in_specs=[
            pl.BlockSpec((1, Tp, Cin), lambda b: (b, 0, 0)),
            pl.BlockSpec((1, Tp, Cin), lambda b: (b, 0, 0)),
            pl.BlockSpec((3, Cin, D), lambda b: (0, 0, 0)),
            pl.BlockSpec((1, D), lambda b: (0, 0)),
            pl.BlockSpec((3, D, D), lambda b: (0, 0, 0)),
            pl.BlockSpec((1, D), lambda b: (0, 0)),
            pl.BlockSpec((Cin, D), lambda b: (0, 0)),
            pl.BlockSpec((1, D), lambda b: (0, 0)),
            pl.BlockSpec((Tp, D), lambda b: (0, 0)),   # same PE block for every batch
        ],
        out_specs=pl.BlockSpec((1, Tp, D), lambda b: (b, 0, 0)),
        out_shape=jax.ShapeDtypeStruct((B, Tp, D), jnp.float32),
        compiler_params=pltpu.CompilerParams(dimension_semantics=("parallel",)),
    )(xe, xo, p["w1_taps"], p["b1"], p["w2_taps"], p["b2"],
      p["wds"], p["bds"], pe)


# --------------------------------------------------------------------------
# module forwards
# --------------------------------------------------------------------------

def encoder_layer(x, p, num_heads, return_weights):
    B, T, D = x.shape
    M = B * T
    dh = D // num_heads
    x2 = x.reshape(M, D)

    # fused QKV projection -> (M, 3D) bf16
    qkv = matmul_bias(x2, p["wqkv"], p["bqkv"], out_dtype=jnp.bfloat16)
    qkv = qkv.reshape(B, T, 3, num_heads, dh).transpose(2, 0, 3, 1, 4)  # (3,B,H,T,dh)

    # attention + o-projection + residual + LayerNorm1 in one kernel
    # (dropout = eval-mode identity)
    h, attn_w = attn_oproj_residual_layernorm(
        qkv[0], qkv[1], qkv[2], x, p["wo_heads"], p["bo"],
        p["ln1_g"], p["ln1_b"], return_weights)

    # FFN + residual + LayerNorm2
    out = ffn_residual_layernorm(h.reshape(M, D), p["w1"], p["b1"],
                                 p["w2"], p["b2"], p["ln2_g"], p["ln2_b"])
    return out.reshape(B, T, D), attn_w


def encoder_forward(x, params, num_heads):
    emb = res_block_embedding_pe(x, params["embedding"], params["pe"])    # (B,T',D)
    B, Tp, D = emb.shape
    # input_lengths = [len(i) for i in encoder_output] -> T' per batch element
    input_lengths = jnp.full((B,), Tp, dtype=jnp.int32)
    # TODO(synk): enc dropout applied as eval-mode identity (no RNG mask).
    h = emb
    attn_w = None
    n = len(params["layers"])
    for li, lp in enumerate(params["layers"]):
        h, w = encoder_layer(h, lp, num_heads, return_weights=(li == n - 1))
        if w is not None:
            attn_w = w
    return h, input_lengths, attn_w


# --------------------------------------------------------------------------
# parameter construction (PyTorch-equivalent raw params + one-time packing)
# --------------------------------------------------------------------------

def make_pos_encoding(max_len, d_model):
    pos = jnp.arange(max_len, dtype=jnp.float32)[:, None]
    div = jnp.exp(jnp.arange(0, d_model, 2, dtype=jnp.float32)
                  * (-math.log(10000.0) / d_model))
    pe = jnp.zeros((max_len, d_model), dtype=jnp.float32)
    pe = pe.at[:, 0::2].set(jnp.sin(pos * div))
    pe = pe.at[:, 1::2].set(jnp.cos(pos * div))
    return pe


def fold_bn(w, b, gamma, beta, mean, var, eps=1e-5):
    """Fold eval-mode BatchNorm1d into preceding conv weights/bias."""
    scale = gamma / jnp.sqrt(var + eps)
    return w * scale[:, None, None], (b - mean) * scale + beta


def init_params(key, input_dim, num_layers, d_model, num_heads, d_ff, max_seq):
    keys = jax.random.split(key, 64)
    kit = iter(keys)

    def nrm(shape, scale=0.02):
        return scale * jax.random.normal(next(kit), shape, dtype=jnp.float32)

    emb = dict(
        conv1_w=nrm((d_model, input_dim, 3)), conv1_b=jnp.zeros((d_model,)),
        bn1_g=jnp.ones((d_model,)), bn1_b=jnp.zeros((d_model,)),
        bn1_m=jnp.zeros((d_model,)), bn1_v=jnp.ones((d_model,)),
        conv2_w=nrm((d_model, d_model, 3)), conv2_b=jnp.zeros((d_model,)),
        bn2_g=jnp.ones((d_model,)), bn2_b=jnp.zeros((d_model,)),
        bn2_m=jnp.zeros((d_model,)), bn2_v=jnp.ones((d_model,)),
        ds_w=nrm((d_model, input_dim, 1)), ds_b=jnp.zeros((d_model,)),
    )
    layers = []
    for _ in range(num_layers):
        layers.append(dict(
            wq=nrm((d_model, d_model)), bq=jnp.zeros((d_model,)),
            wk=nrm((d_model, d_model)), bk=jnp.zeros((d_model,)),
            wv=nrm((d_model, d_model)), bv=jnp.zeros((d_model,)),
            wo=nrm((d_model, d_model)), bo=jnp.zeros((d_model,)),
            ln1_g=jnp.ones((d_model,)), ln1_b=jnp.zeros((d_model,)),
            w1=nrm((d_model, d_ff)), b1=jnp.zeros((d_ff,)),
            w2=nrm((d_ff, d_model)), b2=jnp.zeros((d_model,)),
            ln2_g=jnp.ones((d_model,)), ln2_b=jnp.zeros((d_model,)),
        ))
    return dict(embedding=emb, layers=layers,
                pe=make_pos_encoding(max_seq, d_model))


def prepare_params(raw, num_heads):
    """One-time packing: fold BN, fuse QKV, split Wo per head, cast to bf16."""
    emb = raw["embedding"]
    w1, b1 = fold_bn(emb["conv1_w"], emb["conv1_b"], emb["bn1_g"], emb["bn1_b"],
                     emb["bn1_m"], emb["bn1_v"])
    w2, b2 = fold_bn(emb["conv2_w"], emb["conv2_b"], emb["bn2_g"], emb["bn2_b"],
                     emb["bn2_m"], emb["bn2_v"])
    D = w1.shape[0]
    dh = D // num_heads
    emb_p = dict(
        w1_taps=jnp.transpose(w1, (2, 1, 0)).astype(jnp.bfloat16),   # (3, Cin, D)
        b1=b1.reshape(1, D).astype(jnp.float32),
        w2_taps=jnp.transpose(w2, (2, 1, 0)).astype(jnp.bfloat16),   # (3, D, D)
        b2=b2.reshape(1, D).astype(jnp.float32),
        wds=jnp.transpose(emb["ds_w"][:, :, 0], (1, 0)).astype(jnp.bfloat16),
        bds=emb["ds_b"].reshape(1, D).astype(jnp.float32),
    )
    layers = []
    for lp in raw["layers"]:
        F = lp["w1"].shape[1]
        layers.append(dict(
            wqkv=jnp.concatenate([lp["wq"], lp["wk"], lp["wv"]],
                                 axis=1).astype(jnp.bfloat16),        # (D, 3D)
            bqkv=jnp.concatenate([lp["bq"], lp["bk"], lp["bv"]]
                                 ).reshape(1, 3 * D).astype(jnp.float32),
            wo_heads=lp["wo"].reshape(num_heads, dh, D).astype(jnp.bfloat16),
            bo=lp["bo"].reshape(1, D).astype(jnp.float32),
            ln1_g=lp["ln1_g"].reshape(1, D).astype(jnp.float32),
            ln1_b=lp["ln1_b"].reshape(1, D).astype(jnp.float32),
            w1=lp["w1"].astype(jnp.bfloat16),
            b1=lp["b1"].reshape(1, F).astype(jnp.float32),
            w2=lp["w2"].astype(jnp.bfloat16),
            b2=lp["b2"].reshape(1, D).astype(jnp.float32),
            ln2_g=lp["ln2_g"].reshape(1, D).astype(jnp.float32),
            ln2_b=lp["ln2_b"].reshape(1, D).astype(jnp.float32),
        ))
    return dict(embedding=emb_p, layers=layers, pe=raw["pe"])


# --------------------------------------------------------------------------
# main
# --------------------------------------------------------------------------

if __name__ == "__main__":
    B, T, input_dim = 2, 16, 16
    d_model, num_heads, d_ff = 32, 4, 64
    num_layers, max_seq = 2, 32

    key = jax.random.PRNGKey(0)
    kx, kp = jax.random.split(key)
    x = jax.random.normal(kx, (B, T, input_dim), dtype=jnp.float32)
    raw = init_params(kp, input_dim, num_layers, d_model, num_heads,
                      d_ff, max_seq)
    params = prepare_params(raw, num_heads)

    fwd = jax.jit(functools.partial(encoder_forward, num_heads=num_heads))
    out, lengths, attn_w = fwd(x, params)
    jax.block_until_ready((out, lengths, attn_w))

    assert out.shape == (B, T // 2, d_model)
    assert lengths.shape == (B,)
    assert attn_w.shape == (B, num_heads, T // 2, T // 2)
    print("KERNEL_OK")
</pallas_src>

<mosaic_0001>
module attributes {stable_mosaic.version = 11 : i64} {
  func.func @_embed_pe_kernel(%arg0: i32, %arg1: memref<1x8x16xf32, #tpu.memory_space<vmem>>, %arg2: memref<1x8x16xf32, #tpu.memory_space<vmem>>, %arg3: memref<3x16x32xbf16, #tpu.memory_space<vmem>>, %arg4: memref<1x32xf32, #tpu.memory_space<vmem>>, %arg5: memref<3x32x32xbf16, #tpu.memory_space<vmem>>, %arg6: memref<1x32xf32, #tpu.memory_space<vmem>>, %arg7: memref<16x32xbf16, #tpu.memory_space<vmem>>, %arg8: memref<1x32xf32, #tpu.memory_space<vmem>>, %arg9: memref<8x32xf32, #tpu.memory_space<vmem>>, %arg10: memref<1x8x32xf32, #tpu.memory_space<vmem>>) attributes {dimension_semantics = [#tpu.dimension_semantics<parallel>], iteration_bounds = array<i64: 2>, scalar_prefetch = 0 : i64, scratch_operands = 0 : i64, tpu.core_type = #tpu.core_type<tc>, window_params = [{transform_indices = @transform_0, window_bounds = array<i64: 1, 8, 16>}, {transform_indices = @transform_1, window_bounds = array<i64: 1, 8, 16>}, {pipeline_mode = #tpu.pipeline_mode<synchronous>, transform_indices = @transform_2, window_bounds = array<i64: 3, 16, 32>}, {pipeline_mode = #tpu.pipeline_mode<synchronous>, transform_indices = @transform_3, window_bounds = array<i64: 1, 32>}, {pipeline_mode = #tpu.pipeline_mode<synchronous>, transform_indices = @transform_4, window_bounds = array<i64: 3, 32, 32>}, {pipeline_mode = #tpu.pipeline_mode<synchronous>, transform_indices = @transform_5, window_bounds = array<i64: 1, 32>}, {pipeline_mode = #tpu.pipeline_mode<synchronous>, transform_indices = @transform_6, window_bounds = array<i64: 16, 32>}, {pipeline_mode = #tpu.pipeline_mode<synchronous>, transform_indices = @transform_7, window_bounds = array<i64: 1, 32>}, {pipeline_mode = #tpu.pipeline_mode<synchronous>, transform_indices = @transform_8, window_bounds = array<i64: 8, 32>}, {transform_indices = @transform_9, window_bounds = array<i64: 1, 8, 32>}]} {
    %c0 = arith.constant 0 : index
    %c0_0 = arith.constant 0 : index
    %c0_1 = arith.constant 0 : index
    %0 = vector.load %arg1[%c0, %c0_0, %c0_1] : memref<1x8x16xf32, #tpu.memory_space<vmem>>, vector<1x8x16xf32>
    %1 = vector.shape_cast %0 : vector<1x8x16xf32> to vector<8x16xf32>
    %2 = arith.truncf %1 : vector<8x16xf32> to vector<8x16xbf16>
    %c0_2 = arith.constant 0 : index
    %c0_3 = arith.constant 0 : index
    %c0_4 = arith.constant 0 : index
    %3 = vector.load %arg2[%c0_2, %c0_3, %c0_4] : memref<1x8x16xf32, #tpu.memory_space<vmem>>, vector<1x8x16xf32>
    %4 = vector.shape_cast %3 : vector<1x8x16xf32> to vector<8x16xf32>
    %5 = arith.truncf %4 : vector<8x16xf32> to vector<8x16xbf16>
    %c1 = arith.constant 1 : index
    %c0_5 = arith.constant 0 : index
    %c0_6 = arith.constant 0 : index
    %6 = vector.load %arg3[%c1, %c0_5, %c0_6] : memref<3x16x32xbf16, #tpu.memory_space<vmem>>, vector<1x16x32xbf16>
    %7 = vector.shape_cast %6 : vector<1x16x32xbf16> to vector<16x32xbf16>
    %cst = arith.constant dense<0.000000e+00> : vector<8x32xf32>
    %8 = tpu.matmul %2, %7, %cst {dimension_numbers = #tpu.dot_dimension_numbers<[1], [0], [0], [1], [0, 0, 1, 1], [], []>} : vector<8x16xbf16>, vector<16x32xbf16>, vector<8x32xf32> -> vector<8x32xf32>
    %c2 = arith.constant 2 : index
    %c0_7 = arith.constant 0 : index
    %c0_8 = arith.constant 0 : index
    %9 = vector.load %arg3[%c2, %c0_7, %c0_8] : memref<3x16x32xbf16, #tpu.memory_space<vmem>>, vector<1x16x32xbf16>
    %10 = vector.shape_cast %9 : vector<1x16x32xbf16> to vector<16x32xbf16>
    %cst_9 = arith.constant dense<0.000000e+00> : vector<8x32xf32>
    %11 = tpu.matmul %5, %10, %cst_9 {dimension_numbers = #tpu.dot_dimension_numbers<[1], [0], [0], [1], [0, 0, 1, 1], [], []>} : vector<8x16xbf16>, vector<16x32xbf16>, vector<8x32xf32> -> vector<8x32xf32>
    %12 = arith.addf %8, %11 : vector<8x32xf32>
    %c0_10 = arith.constant 0 : index
    %c0_11 = arith.constant 0 : index
    %c0_12 = arith.constant 0 : index
    %13 = vector.load %arg3[%c0_10, %c0_11, %c0_12] : memref<3x16x32xbf16, #tpu.memory_space<vmem>>, vector<1x16x32xbf16>
    %14 = vector.shape_cast %13 : vector<1x16x32xbf16> to vector<16x32xbf16>
    %cst_13 = arith.constant dense<0.000000e+00> : vector<8x32xf32>
    %15 = tpu.matmul %5, %14, %cst_13 {dimension_numbers = #tpu.dot_dimension_numbers<[1], [0], [0], [1], [0, 0, 1, 1], [], []>} : vector<8x16xbf16>, vector<16x32xbf16>, vector<8x32xf32> -> vector<8x32xf32>
    %16 = tpu.iota {dimensions = array<i32: 0>} : vector<8x32xi32>
    %c0_i32 = arith.constant 0 : i32
    %17 = vector.broadcast %c0_i32 : i32 to vector<8x32xi32>
    %18 = arith.cmpi eq, %16, %17 : vector<8x32xi32>
    %c1_i32 = arith.constant 1 : i32
    %19 = tpu.dynamic_rotate %15 by %c1_i32 dim 0 : vector<8x32xf32>, i32 -> vector<8x32xf32>
    %cst_14 = arith.constant 0.000000e+00 : f32
    %20 = vector.broadcast %cst_14 : f32 to vector<8x32xf32>
    %21 = arith.select %18, %20, %19 : vector<8x32xi1>, vector<8x32xf32>
    %22 = arith.addf %12, %21 : vector<8x32xf32>
    %c0_15 = arith.constant 0 : index
    %c0_16 = arith.constant 0 : index
    %23 = vector.load %arg4[%c0_15, %c0_16] : memref<1x32xf32, #tpu.memory_space<vmem>>, vector<1x32xf32>
    %24 = vector.broadcast %23 : vector<1x32xf32> to vector<8x32xf32>
    %25 = arith.addf %22, %24 : vector<8x32xf32>
    %cst_17 = arith.constant 0.000000e+00 : f32
    %26 = vector.broadcast %cst_17 : f32 to vector<8x32xf32>
    %27 = arith.maximumf %25, %26 : vector<8x32xf32>
    %c0_i32_18 = arith.constant 0 : i32
    %28 = vector.broadcast %c0_i32_18 : i32 to vector<8x32xi32>
    %29 = arith.cmpi eq, %16, %28 : vector<8x32xi32>
    %c1_i32_19 = arith.constant 1 : i32
    %30 = tpu.dynamic_rotate %27 by %c1_i32_19 dim 0 : vector<8x32xf32>, i32 -> vector<8x32xf32>
    %cst_20 = arith.constant 0.000000e+00 : f32
    %31 = vector.broadcast %cst_20 : f32 to vector<8x32xf32>
    %32 = arith.select %29, %31, %30 : vector<8x32xi1>, vector<8x32xf32>
    %c7_i32 = arith.constant 7 : i32
    %33 = vector.broadcast %c7_i32 : i32 to vector<8x32xi32>
    %34 = arith.cmpi eq, %16, %33 : vector<8x32xi32>
    %c7_i32_21 = arith.constant 7 : i32
    %35 = tpu.dynamic_rotate %27 by %c7_i32_21 dim 0 : vector<8x32xf32>, i32 -> vector<8x32xf32>
    %cst_22 = arith.constant 0.000000e+00 : f32
    %36 = vector.broadcast %cst_22 : f32 to vector<8x32xf32>
    %37 = arith.select %34, %36, %35 : vector<8x32xi1>, vector<8x32xf32>
    %38 = arith.truncf %32 : vector<8x32xf32> to vector<8x32xbf16>
    %c0_23 = arith.constant 0 : index
    %c0_24 = arith.constant 0 : index
    %c0_25 = arith.constant 0 : index
    %39 = vector.load %arg5[%c0_23, %c0_24, %c0_25] : memref<3x32x32xbf16, #tpu.memory_space<vmem>>, vector<1x32x32xbf16>
    %40 = vector.shape_cast %39 : vector<1x32x32xbf16> to vector<32x32xbf16>
    %cst_26 = arith.constant dense<0.000000e+00> : vector<8x32xf32>
    %41 = tpu.matmul %38, %40, %cst_26 {dimension_numbers = #tpu.dot_dimension_numbers<[1], [0], [0], [1], [0, 0, 1, 1], [], []>} : vector<8x32xbf16>, vector<32x32xbf16>, vector<8x32xf32> -> vector<8x32xf32>
    %42 = arith.truncf %27 : vector<8x32xf32> to vector<8x32xbf16>
    %c1_27 = arith.constant 1 : index
    %c0_28 = arith.constant 0 : index
    %c0_29 = arith.constant 0 : index
    %43 = vector.load %arg5[%c1_27, %c0_28, %c0_29] : memref<3x32x32xbf16, #tpu.memory_space<vmem>>, vector<1x32x32xbf16>
    %44 = vector.shape_cast %43 : vector<1x32x32xbf16> to vector<32x32xbf16>
    %cst_30 = arith.constant dense<0.000000e+00> : vector<8x32xf32>
    %45 = tpu.matmul %42, %44, %cst_30 {dimension_numbers = #tpu.dot_dimension_numbers<[1], [0], [0], [1], [0, 0, 1, 1], [], []>} : vector<8x32xbf16>, vector<32x32xbf16>, vector<8x32xf32> -> vector<8x32xf32>
    %46 = arith.addf %41, %45 : vector<8x32xf32>
    %47 = arith.truncf %37 : vector<8x32xf32> to vector<8x32xbf16>
    %c2_31 = arith.constant 2 : index
    %c0_32 = arith.constant 0 : index
    %c0_33 = arith.constant 0 : index
    %48 = vector.load %arg5[%c2_31, %c0_32, %c0_33] : memref<3x32x32xbf16, #tpu.memory_space<vmem>>, vector<1x32x32xbf16>
    %49 = vector.shape_cast %48 : vector<1x32x32xbf16> to vector<32x32xbf16>
    %cst_34 = arith.constant dense<0.000000e+00> : vector<8x32xf32>
    %50 = tpu.matmul %47, %49, %cst_34 {dimension_numbers = #tpu.dot_dimension_numbers<[1], [0], [0], [1], [0, 0, 1, 1], [], []>} : vector<8x32xbf16>, vector<32x32xbf16>, vector<8x32xf32> -> vector<8x32xf32>
    %51 = arith.addf %46, %50 : vector<8x32xf32>
    %c0_35 = arith.constant 0 : index
    %c0_36 = arith.constant 0 : index
    %52 = vector.load %arg6[%c0_35, %c0_36] : memref<1x32xf32, #tpu.memory_space<vmem>>, vector<1x32xf32>
    %53 = vector.broadcast %52 : vector<1x32xf32> to vector<8x32xf32>
    %54 = arith.addf %51, %53 : vector<8x32xf32>
    %c0_37 = arith.constant 0 : index
    %c0_38 = arith.constant 0 : index
    %55 = vector.load %arg7[%c0_37, %c0_38] : memref<16x32xbf16, #tpu.memory_space<vmem>>, vector<16x32xbf16>
    %cst_39 = arith.constant dense<0.000000e+00> : vector<8x32xf32>
    %56 = tpu.matmul %2, %55, %cst_39 {dimension_numbers = #tpu.dot_dimension_numbers<[1], [0], [0], [1], [0, 0, 1, 1], [], []>} : vector<8x16xbf16>, vector<16x32xbf16>, vector<8x32xf32> -> vector<8x32xf32>
    %c0_40 = arith.constant 0 : index
    %c0_41 = arith.constant 0 : index
    %57 = vector.load %arg8[%c0_40, %c0_41] : memref<1x32xf32, #tpu.memory_space<vmem>>, vector<1x32xf32>
    %58 = vector.broadcast %57 : vector<1x32xf32> to vector<8x32xf32>
    %59 = arith.addf %56, %58 : vector<8x32xf32>
    %60 = arith.addf %54, %59 : vector<8x32xf32>
    %cst_42 = arith.constant 0.000000e+00 : f32
    %61 = vector.broadcast %cst_42 : f32 to vector<8x32xf32>
    %62 = arith.maximumf %60, %61 : vector<8x32xf32>
    %c0_43 = arith.constant 0 : index
    %c0_44 = arith.constant 0 : index
    %63 = vector.load %arg9[%c0_43, %c0_44] : memref<8x32xf32, #tpu.memory_space<vmem>>, vector<8x32xf32>
    %64 = arith.addf %62, %63 : vector<8x32xf32>
    %c0_45 = arith.constant 0 : index
    %c0_46 = arith.constant 0 : index
    %c0_47 = arith.constant 0 : index
    %65 = vector.load %arg10[%c0_45, %c0_46, %c0_47] : memref<1x8x32xf32, #tpu.memory_space<vmem>>, vector<1x8x32xf32>
    %66 = vector.shape_cast %65 : vector<1x8x32xf32> to vector<8x32xf32>
    %67 = vector.shape_cast %64 : vector<8x32xf32> to vector<1x8x32xf32>
    tpu.vector_store %arg10[%c0_45, %c0_46, %c0_47], %67 {strides = array<i32>} : memref<1x8x32xf32, #tpu.memory_space<vmem>>, vector<1x8x32xf32>,
    return
  }
  func.func @transform_0(%arg0: i32) -> (i32, i32, i32) {
    %c0_i32 = arith.constant 0 : i32
    %c0_i32_0 = arith.constant 0 : i32
    %c0_i32_1 = arith.constant 0 : i32
    return %arg0, %c0_i32, %c0_i32_0 : i32, i32, i32
  }
  func.func @transform_1(%arg0: i32) -> (i32, i32, i32) {
    %c0_i32 = arith.constant 0 : i32
    %c0_i32_0 = arith.constant 0 : i32
    %c0_i32_1 = arith.constant 0 : i32
    return %arg0, %c0_i32, %c0_i32_0 : i32, i32, i32
  }
  func.func @transform_2(%arg0: i32) -> (i32, i32, i32) {
    %c0_i32 = arith.constant 0 : i32
    %c0_i32_0 = arith.constant 0 : i32
    %c0_i32_1 = arith.constant 0 : i32
    %c0_i32_2 = arith.constant 0 : i32
    return %c0_i32, %c0_i32_0, %c0_i32_1 : i32, i32, i32
  }
  func.func @transform_3(%arg0: i32) -> (i32, i32) {
    %c0_i32 = arith.constant 0 : i32
    %c0_i32_0 = arith.constant 0 : i32
    %c0_i32_1 = arith.constant 0 : i32
    return %c0_i32, %c0_i32_0 : i32, i32
  }
  func.func @transform_4(%arg0: i32) -> (i32, i32, i32) {
    %c0_i32 = arith.constant 0 : i32
    %c0_i32_0 = arith.constant 0 : i32
    %c0_i32_1 = arith.constant 0 : i32
    %c0_i32_2 = arith.constant 0 : i32
    return %c0_i32, %c0_i32_0, %c0_i32_1 : i32, i32, i32
  }
  func.func @transform_5(%arg0: i32) -> (i32, i32) {
    %c0_i32 = arith.constant 0 : i32
    %c0_i32_0 = arith.constant 0 : i32
    %c0_i32_1 = arith.constant 0 : i32
    return %c0_i32, %c0_i32_0 : i32, i32
  }
  func.func @transform_6(%arg0: i32) -> (i32, i32) {
    %c0_i32 = arith.constant 0 : i32
    %c0_i32_0 = arith.constant 0 : i32
    %c0_i32_1 = arith.constant 0 : i32
    return %c0_i32, %c0_i32_0 : i32, i32
  }
  func.func @transform_7(%arg0: i32) -> (i32, i32) {
    %c0_i32 = arith.constant 0 : i32
    %c0_i32_0 = arith.constant 0 : i32
    %c0_i32_1 = arith.constant 0 : i32
    return %c0_i32, %c0_i32_0 : i32, i32
  }
  func.func @transform_8(%arg0: i32) -> (i32, i32) {
    %c0_i32 = arith.constant 0 : i32
    %c0_i32_0 = arith.constant 0 : i32
    %c0_i32_1 = arith.constant 0 : i32
    return %c0_i32, %c0_i32_0 : i32, i32
  }
  func.func @transform_9(%arg0: i32) -> (i32, i32, i32) {
    %c0_i32 = arith.constant 0 : i32
    %c0_i32_0 = arith.constant 0 : i32
    %c0_i32_1 = arith.constant 0 : i32
    return %arg0, %c0_i32, %c0_i32_0 : i32, i32, i32
  }
}

module attributes {stable_mosaic.version = 11 : i64} {
  func.func @_matmul_bias_kernel(%arg0: i32, %arg1: i32, %arg2: i32, %arg3: memref<16x32xf32, #tpu.memory_space<vmem>>, %arg4: memref<32x96xbf16, #tpu.memory_space<vmem>>, %arg5: memref<1x96xf32, #tpu.memory_space<vmem>>, %arg6: memref<16x96xbf16, #tpu.memory_space<vmem>>, %arg7: memref<16x96xf32, #tpu.memory_space<vmem>>) attributes {dimension_semantics = [#tpu.dimension_semantics<parallel>, #tpu.dimension_semantics<parallel>, #tpu.dimension_semantics<arbitrary>], iteration_bounds = array<i64: 1, 1, 1>, scalar_prefetch = 0 : i64, scratch_operands = 1 : i64, tpu.core_type = #tpu.core_type<tc>, window_params = [{transform_indices = @transform_0, window_bounds = array<i64: 16, 32>}, {transform_indices = @transform_1, window_bounds = array<i64: 32, 96>}, {transform_indices = @transform_2, window_bounds = array<i64: 1, 96>}, {transform_indices = @transform_3, window_bounds = array<i64: 16, 96>}]} {
    %c0_i32 = arith.constant 0 : i32
    %0 = arith.cmpi eq, %arg2, %c0_i32 : i32
    %1 = arith.extui %0 : i1 to i32
    %c0_i32_0 = arith.constant 0 : i32
    %2 = arith.cmpi ne, %1, %c0_i32_0 : i32
    scf.if %2 {
      %cst_10 = arith.constant 0.000000e+00 : f32
      %13 = vector.broadcast %cst_10 : f32 to vector<16x96xf32>
      %c0_11 = arith.constant 0 : index
      %c0_12 = arith.constant 0 : index
      %14 = vector.load %arg7[%c0_11, %c0_12] : memref<16x96xf32, #tpu.memory_space<vmem>>, vector<16x96xf32>
      tpu.vector_store %arg7[%c0_11, %c0_12], %13 {strides = array<i32>} : memref<16x96xf32, #tpu.memory_space<vmem>>, vector<16x96xf32>,
    } else {
    }
    %c0 = arith.constant 0 : index
    %c0_1 = arith.constant 0 : index
    %3 = vector.load %arg3[%c0, %c0_1] : memref<16x32xf32, #tpu.memory_space<vmem>>, vector<16x32xf32>
    %4 = arith.truncf %3 : vector<16x32xf32> to vector<16x32xbf16>
    %c0_2 = arith.constant 0 : index
    %c0_3 = arith.constant 0 : index
    %5 = vector.load %arg7[%c0_2, %c0_3] : memref<16x96xf32, #tpu.memory_space<vmem>>, vector<16x96xf32>
    %c0_4 = arith.constant 0 : index
    %c0_5 = arith.constant 0 : index
    %6 = vector.load %arg4[%c0_4, %c0_5] : memref<32x96xbf16, #tpu.memory_space<vmem>>, vector<32x96xbf16>
    %cst = arith.constant dense<0.000000e+00> : vector<16x96xf32>
    %7 = tpu.matmul %4, %6, %cst {dimension_numbers = #tpu.dot_dimension_numbers<[1], [0], [0], [1], [0, 0, 1, 1], [], []>} : vector<16x32xbf16>, vector<32x96xbf16>, vector<16x96xf32> -> vector<16x96xf32>
    %8 = arith.addf %5, %7 : vector<16x96xf32>
    %c0_6 = arith.constant 0 : index
    %c0_7 = arith.constant 0 : index
    %9 = vector.load %arg7[%c0_6, %c0_7] : memref<16x96xf32, #tpu.memory_space<vmem>>, vector<16x96xf32>
    tpu.vector_store %arg7[%c0_6, %c0_7], %8 {strides = array<i32>} : memref<16x96xf32, #tpu.memory_space<vmem>>, vector<16x96xf32>,
    %c0_i32_8 = arith.constant 0 : i32
    %10 = arith.cmpi eq, %arg2, %c0_i32_8 : i32
    %11 = arith.extui %10 : i1 to i32
    %c0_i32_9 = arith.constant 0 : i32
    %12 = arith.cmpi ne, %11, %c0_i32_9 : i32
    scf.if %12 {
      %c0_10 = arith.constant 0 : index
      %c0_11 = arith.constant 0 : index
      %13 = vector.load %arg7[%c0_10, %c0_11] : memref<16x96xf32, #tpu.memory_space<vmem>>, vector<16x96xf32>
      %c0_12 = arith.constant 0 : index
      %c0_13 = arith.constant 0 : index
      %14 = vector.load %arg5[%c0_12, %c0_13] : memref<1x96xf32, #tpu.memory_space<vmem>>, vector<1x96xf32>
      %15 = vector.broadcast %14 : vector<1x96xf32> to vector<16x96xf32>
      %16 = arith.addf %13, %15 : vector<16x96xf32>
      %17 = arith.truncf %16 : vector<16x96xf32> to vector<16x96xbf16>
      %c0_14 = arith.constant 0 : index
      %c0_15 = arith.constant 0 : index
      %18 = vector.load %arg6[%c0_14, %c0_15] : memref<16x96xbf16, #tpu.memory_space<vmem>>, vector<16x96xbf16>
      tpu.vector_store %arg6[%c0_14, %c0_15], %17 {strides = array<i32>} : memref<16x96xbf16, #tpu.memory_space<vmem>>, vector<16x96xbf16>,
    } else {
    }
    return
  }
  func.func @transform_0(%arg0: i32, %arg1: i32, %arg2: i32) -> (i32, i32) {
    %c0_i32 = arith.constant 0 : i32
    return %arg0, %arg2 : i32, i32
  }
  func.func @transform_1(%arg0: i32, %arg1: i32, %arg2: i32) -> (i32, i32) {
    %c0_i32 = arith.constant 0 : i32
    return %arg2, %arg1 : i32, i32
  }
  func.func @transform_2(%arg0: i32, %arg1: i32, %arg2: i32) -> (i32, i32) {
    %c0_i32 = arith.constant 0 : i32
    %c0_i32_0 = arith.constant 0 : i32
    return %c0_i32, %arg1 : i32, i32
  }
  func.func @transform_3(%arg0: i32, %arg1: i32, %arg2: i32) -> (i32, i32) {
    %c0_i32 = arith.constant 0 : i32
    return %arg0, %arg1 : i32, i32
  }
}

module attributes {stable_mosaic.version = 11 : i64} {
  func.func @_attn_kernel(%arg0: i32, %arg1: memref<1x4x8x8xbf16, #tpu.memory_space<vmem>>, %arg2: memref<1x4x8x8xbf16, #tpu.memory_space<vmem>>, %arg3: memref<1x4x8x8xbf16, #tpu.memory_space<vmem>>, %arg4: memref<1x8x32xf32, #tpu.memory_space<vmem>>, %arg5: memref<4x8x32xbf16, #tpu.memory_space<vmem>>, %arg6: memref<1x32xf32, #tpu.memory_space<vmem>>, %arg7: memref<1x32xf32, #tpu.memory_space<vmem>>, %arg8: memref<1x32xf32, #tpu.memory_space<vmem>>, %arg9: memref<1x8x32xf32, #tpu.memory_space<vmem>>) attributes {dimension_semantics = [#tpu.dimension_semantics<parallel>], iteration_bounds = array<i64: 2>, scalar_prefetch = 0 : i64, scratch_operands = 0 : i64, tpu.core_type = #tpu.core_type<tc>, window_params = [{transform_indices = @transform_0, window_bounds = array<i64: 1, 4, 8, 8>}, {transform_indices = @transform_1, window_bounds = array<i64: 1, 4, 8, 8>}, {transform_indices = @transform_2, window_bounds = array<i64: 1, 4, 8, 8>}, {transform_indices = @transform_3, window_bounds = array<i64: 1, 8, 32>}, {pipeline_mode = #tpu.pipeline_mode<synchronous>, transform_indices = @transform_4, window_bounds = array<i64: 4, 8, 32>}, {pipeline_mode = #tpu.pipeline_mode<synchronous>, transform_indices = @transform_5, window_bounds = array<i64: 1, 32>}, {pipeline_mode = #tpu.pipeline_mode<synchronous>, transform_indices = @transform_6, window_bounds = array<i64: 1, 32>}, {pipeline_mode = #tpu.pipeline_mode<synchronous>, transform_indices = @transform_7, window_bounds = array<i64: 1, 32>}, {transform_indices = @transform_8, window_bounds = array<i64: 1, 8, 32>}]} {
    %c0 = arith.constant 0 : index
    %c0_0 = arith.constant 0 : index
    %c0_1 = arith.constant 0 : index
    %c0_2 = arith.constant 0 : index
    %0 = vector.load %arg1[%c0, %c0_0, %c0_1, %c0_2] : memref<1x4x8x8xbf16, #tpu.memory_space<vmem>>, vector<1x4x8x8xbf16>
    %1 = vector.shape_cast %0 : vector<1x4x8x8xbf16> to vector<4x8x8xbf16>
    %c0_3 = arith.constant 0 : index
    %c0_4 = arith.constant 0 : index
    %c0_5 = arith.constant 0 : index
    %c0_6 = arith.constant 0 : index
    %2 = vector.load %arg2[%c0_3, %c0_4, %c0_5, %c0_6] : memref<1x4x8x8xbf16, #tpu.memory_space<vmem>>, vector<1x4x8x8xbf16>
    %3 = vector.shape_cast %2 : vector<1x4x8x8xbf16> to vector<4x8x8xbf16>
    %c0_7 = arith.constant 0 : index
    %c0_8 = arith.constant 0 : index
    %c0_9 = arith.constant 0 : index
    %c0_10 = arith.constant 0 : index
    %4 = vector.load %arg3[%c0_7, %c0_8, %c0_9, %c0_10] : memref<1x4x8x8xbf16, #tpu.memory_space<vmem>>, vector<1x4x8x8xbf16>
    %5 = vector.shape_cast %4 : vector<1x4x8x8xbf16> to vector<4x8x8xbf16>
    "tpu.trace_start"() <{level = 10 : i32, message = "hqd,hkd->hqk"}> : () -> ()
    %cst = arith.constant dense<0.000000e+00> : vector<4x8x8xf32>
    %6 = tpu.matmul %1, %3, %cst {dimension_numbers = #tpu.dot_dimension_numbers<[2], [2], [1], [1], [0, 0, 0, 1, 1, 1], [0], [0]>} : vector<4x8x8xbf16>, vector<4x8x8xbf16>, vector<4x8x8xf32> -> vector<4x8x8xf32>
    "tpu.trace_stop"() : () -> ()
    %cst_11 = arith.constant 0.353553385 : f32
    %7 = vector.broadcast %cst_11 : f32 to vector<4x8x8xf32>
    %8 = arith.mulf %6, %7 : vector<4x8x8xf32>
    %cst_12 = arith.constant dense<0xFF800000> : vector<4x8xf32>
    %9 = vector.multi_reduction <maximumf>, %8, %cst_12 [2] : vector<4x8x8xf32> to vector<4x8xf32>
    %10 = vector.shape_cast %9 : vector<4x8xf32> to vector<4x8x1xf32>
    %11 = vector.broadcast %10 : vector<4x8x1xf32> to vector<4x8x8xf32>
    %12 = arith.subf %8, %11 : vector<4x8x8xf32>
    %13 = math.exp %12 : vector<4x8x8xf32>
    %cst_13 = arith.constant dense<0.000000e+00> : vector<4x8xf32>
    %14 = vector.multi_reduction <add>, %13, %cst_13 [2] : vector<4x8x8xf32> to vector<4x8xf32>
    %15 = vector.shape_cast %14 : vector<4x8xf32> to vector<4x8x1xf32>
    %16 = tpu.reciprocal %15 {approx = true} : vector<4x8x1xf32> -> vector<4x8x1xf32>
    %17 = vector.broadcast %16 : vector<4x8x1xf32> to vector<4x8x8xf32>
    %18 = arith.mulf %13, %17 : vector<4x8x8xf32>
    %19 = arith.truncf %18 : vector<4x8x8xf32> to vector<4x8x8xbf16>
    "tpu.trace_start"() <{level = 10 : i32, message = "hqk,hkd->hqd"}> : () -> ()
    %cst_14 = arith.constant dense<0.000000e+00> : vector<4x8x8xf32>
    %20 = tpu.matmul %19, %5, %cst_14 {dimension_numbers = #tpu.dot_dimension_numbers<[2], [1], [1], [2], [0, 0, 0, 1, 1, 2], [0], [0]>} : vector<4x8x8xbf16>, vector<4x8x8xbf16>, vector<4x8x8xf32> -> vector<4x8x8xf32>
    "tpu.trace_stop"() : () -> ()
    %21 = arith.truncf %20 : vector<4x8x8xf32> to vector<4x8x8xbf16>
    %22 = vector.extract_strided_slice %21 {offsets = [0, 0, 0], sizes = [1, 8, 8], strides = [1, 1, 1]} : vector<4x8x8xbf16> to vector<1x8x8xbf16>
    %23 = vector.shape_cast %22 : vector<1x8x8xbf16> to vector<8x8xbf16>
    %c0_15 = arith.constant 0 : index
    %c0_16 = arith.constant 0 : index
    %c0_17 = arith.constant 0 : index
    %24 = vector.load %arg5[%c0_15, %c0_16, %c0_17] : memref<4x8x32xbf16, #tpu.memory_space<vmem>>, vector<1x8x32xbf16>
    %25 = vector.shape_cast %24 : vector<1x8x32xbf16> to vector<8x32xbf16>
    %cst_18 = arith.constant dense<0.000000e+00> : vector<8x32xf32>
    %26 = tpu.matmul %23, %25, %cst_18 {dimension_numbers = #tpu.dot_dimension_numbers<[1], [0], [0], [1], [0, 0, 1, 1], [], []>} : vector<8x8xbf16>, vector<8x32xbf16>, vector<8x32xf32> -> vector<8x32xf32>
    %27 = vector.extract_strided_slice %21 {offsets = [1, 0, 0], sizes = [1, 8, 8], strides = [1, 1, 1]} : vector<4x8x8xbf16> to vector<1x8x8xbf16>
    %28 = vector.shape_cast %27 : vector<1x8x8xbf16> to vector<8x8xbf16>
    %c1 = arith.constant 1 : index
    %c0_19 = arith.constant 0 : index
    %c0_20 = arith.constant 0 : index
    %29 = vector.load %arg5[%c1, %c0_19, %c0_20] : memref<4x8x32xbf16, #tpu.memory_space<vmem>>, vector<1x8x32xbf16>
    %30 = vector.shape_cast %29 : vector<1x8x32xbf16> to vector<8x32xbf16>
    %cst_21 = arith.constant dense<0.000000e+00> : vector<8x32xf32>
    %31 = tpu.matmul %28, %30, %cst_21 {dimension_numbers = #tpu.dot_dimension_numbers<[1], [0], [0], [1], [0, 0, 1, 1], [], []>} : vector<8x8xbf16>, vector<8x32xbf16>, vector<8x32xf32> -> vector<8x32xf32>
    %32 = arith.addf %26, %31 : vector<8x32xf32>
    %33 = vector.extract_strided_slice %21 {offsets = [2, 0, 0], sizes = [1, 8, 8], strides = [1, 1, 1]} : vector<4x8x8xbf16> to vector<1x8x8xbf16>
    %34 = vector.shape_cast %33 : vector<1x8x8xbf16> to vector<8x8xbf16>
    %c2 = arith.constant 2 : index
    %c0_22 = arith.constant 0 : index
    %c0_23 = arith.constant 0 : index
    %35 = vector.load %arg5[%c2, %c0_22, %c0_23] : memref<4x8x32xbf16, #tpu.memory_space<vmem>>, vector<1x8x32xbf16>
    %36 = vector.shape_cast %35 : vector<1x8x32xbf16> to vector<8x32xbf16>
    %cst_24 = arith.constant dense<0.000000e+00> : vector<8x32xf32>
    %37 = tpu.matmul %34, %36, %cst_24 {dimension_numbers = #tpu.dot_dimension_numbers<[1], [0], [0], [1], [0, 0, 1, 1], [], []>} : vector<8x8xbf16>, vector<8x32xbf16>, vector<8x32xf32> -> vector<8x32xf32>
    %38 = arith.addf %32, %37 : vector<8x32xf32>
    %39 = vector.extract_strided_slice %21 {offsets = [3, 0, 0], sizes = [1, 8, 8], strides = [1, 1, 1]} : vector<4x8x8xbf16> to vector<1x8x8xbf16>
    %40 = vector.shape_cast %39 : vector<1x8x8xbf16> to vector<8x8xbf16>
    %c3 = arith.constant 3 : index
    %c0_25 = arith.constant 0 : index
    %c0_26 = arith.constant 0 : index
    %41 = vector.load %arg5[%c3, %c0_25, %c0_26] : memref<4x8x32xbf16, #tpu.memory_space<vmem>>, vector<1x8x32xbf16>
    %42 = vector.shape_cast %41 : vector<1x8x32xbf16> to vector<8x32xbf16>
    %cst_27 = arith.constant dense<0.000000e+00> : vector<8x32xf32>
    %43 = tpu.matmul %40, %42, %cst_27 {dimension_numbers = #tpu.dot_dimension_numbers<[1], [0], [0], [1], [0, 0, 1, 1], [], []>} : vector<8x8xbf16>, vector<8x32xbf16>, vector<8x32xf32> -> vector<8x32xf32>
    %44 = arith.addf %38, %43 : vector<8x32xf32>
    %c0_28 = arith.constant 0 : index
    %c0_29 = arith.constant 0 : index
    %45 = vector.load %arg6[%c0_28, %c0_29] : memref<1x32xf32, #tpu.memory_space<vmem>>, vector<1x32xf32>
    %46 = vector.broadcast %45 : vector<1x32xf32> to vector<8x32xf32>
    %47 = arith.addf %44, %46 : vector<8x32xf32>
    %c0_30 = arith.constant 0 : index
    %c0_31 = arith.constant 0 : index
    %c0_32 = arith.constant 0 : index
    %48 = vector.load %arg4[%c0_30, %c0_31, %c0_32] : memref<1x8x32xf32, #tpu.memory_space<vmem>>, vector<1x8x32xf32>
    %49 = vector.shape_cast %48 : vector<1x8x32xf32> to vector<8x32xf32>
    %50 = arith.addf %47, %49 : vector<8x32xf32>
    %cst_33 = arith.constant dense<0.000000e+00> : vector<8xf32>
    %51 = vector.multi_reduction <add>, %50, %cst_33 [1] : vector<8x32xf32> to vector<8xf32>
    %52 = vector.shape_cast %51 : vector<8xf32> to vector<8x1xf32>
    %cst_34 = arith.constant 3.200000e+01 : f32
    %53 = vector.broadcast %cst_34 : f32 to vector<8x1xf32>
    %54 = arith.divf %52, %53 : vector<8x1xf32>
    %55 = vector.broadcast %54 : vector<8x1xf32> to vector<8x32xf32>
    %56 = arith.subf %50, %55 : vector<8x32xf32>
    %57 = arith.mulf %56, %56 : vector<8x32xf32>
    %cst_35 = arith.constant dense<0.000000e+00> : vector<8xf32>
    %58 = vector.multi_reduction <add>, %57, %cst_35 [1] : vector<8x32xf32> to vector<8xf32>
    %59 = vector.shape_cast %58 : vector<8xf32> to vector<8x1xf32>
    %cst_36 = arith.constant 3.200000e+01 : f32
    %60 = vector.broadcast %cst_36 : f32 to vector<8x1xf32>
    %61 = arith.divf %59, %60 : vector<8x1xf32>
    %62 = vector.broadcast %54 : vector<8x1xf32> to vector<8x32xf32>
    %63 = arith.subf %50, %62 : vector<8x32xf32>
    %cst_37 = arith.constant 9.99999974E-6 : f32
    %64 = vector.broadcast %cst_37 : f32 to vector<8x1xf32>
    %65 = arith.addf %61, %64 : vector<8x1xf32>
    %66 = math.rsqrt %65 : vector<8x1xf32>
    %67 = vector.broadcast %66 : vector<8x1xf32> to vector<8x32xf32>
    %68 = arith.mulf %63, %67 : vector<8x32xf32>
    %c0_38 = arith.constant 0 : index
    %c0_39 = arith.constant 0 : index
    %69 = vector.load %arg7[%c0_38, %c0_39] : memref<1x32xf32, #tpu.memory_space<vmem>>, vector<1x32xf32>
    %70 = vector.broadcast %69 : vector<1x32xf32> to vector<8x32xf32>
    %71 = arith.mulf %68, %70 : vector<8x32xf32>
    %c0_40 = arith.constant 0 : index
    %c0_41 = arith.constant 0 : index
    %72 = vector.load %arg8[%c0_40, %c0_41] : memref<1x32xf32, #tpu.memory_space<vmem>>, vector<1x32xf32>
    %73 = vector.broadcast %72 : vector<1x32xf32> to vector<8x32xf32>
    %74 = arith.addf %71, %73 : vector<8x32xf32>
    %c0_42 = arith.constant 0 : index
    %c0_43 = arith.constant 0 : index
    %c0_44 = arith.constant 0 : index
    %75 = vector.load %arg9[%c0_42, %c0_43, %c0_44] : memref<1x8x32xf32, #tpu.memory_space<vmem>>, vector<1x8x32xf32>
    %76 = vector.shape_cast %75 : vector<1x8x32xf32> to vector<8x32xf32>
    %77 = vector.shape_cast %74 : vector<8x32xf32> to vector<1x8x32xf32>
    tpu.vector_store %arg9[%c0_42, %c0_43, %c0_44], %77 {strides = array<i32>} : memref<1x8x32xf32, #tpu.memory_space<vmem>>, vector<1x8x32xf32>,
    return
  }
  func.func @transform_0(%arg0: i32) -> (i32, i32, i32, i32) {
    %c0_i32 = arith.constant 0 : i32
    %c0_i32_0 = arith.constant 0 : i32
    %c0_i32_1 = arith.constant 0 : i32
    %c0_i32_2 = arith.constant 0 : i32
    return %arg0, %c0_i32, %c0_i32_0, %c0_i32_1 : i32, i32, i32, i32
  }
  func.func @transform_1(%arg0: i32) -> (i32, i32, i32, i32) {
    %c0_i32 = arith.constant 0 : i32
    %c0_i32_0 = arith.constant 0 : i32
    %c0_i32_1 = arith.constant 0 : i32
    %c0_i32_2 = arith.constant 0 : i32
    return %arg0, %c0_i32, %c0_i32_0, %c0_i32_1 : i32, i32, i32, i32
  }
  func.func @transform_2(%arg0: i32) -> (i32, i32, i32, i32) {
    %c0_i32 = arith.constant 0 : i32
    %c0_i32_0 = arith.constant 0 : i32
    %c0_i32_1 = arith.constant 0 : i32
    %c0_i32_2 = arith.constant 0 : i32
    return %arg0, %c0_i32, %c0_i32_0, %c0_i32_1 : i32, i32, i32, i32
  }
  func.func @transform_3(%arg0: i32) -> (i32, i32, i32) {
    %c0_i32 = arith.constant 0 : i32
    %c0_i32_0 = arith.constant 0 : i32
    %c0_i32_1 = arith.constant 0 : i32
    return %arg0, %c0_i32, %c0_i32_0 : i32, i32, i32
  }
  func.func @transform_4(%arg0: i32) -> (i32, i32, i32) {
    %c0_i32 = arith.constant 0 : i32
    %c0_i32_0 = arith.constant 0 : i32
    %c0_i32_1 = arith.constant 0 : i32
    %c0_i32_2 = arith.constant 0 : i32
    return %c0_i32, %c0_i32_0, %c0_i32_1 : i32, i32, i32
  }
  func.func @transform_5(%arg0: i32) -> (i32, i32) {
    %c0_i32 = arith.constant 0 : i32
    %c0_i32_0 = arith.constant 0 : i32
    %c0_i32_1 = arith.constant 0 : i32
    return %c0_i32, %c0_i32_0 : i32, i32
  }
  func.func @transform_6(%arg0: i32) -> (i32, i32) {
    %c0_i32 = arith.constant 0 : i32
    %c0_i32_0 = arith.constant 0 : i32
    %c0_i32_1 = arith.constant 0 : i32
    return %c0_i32, %c0_i32_0 : i32, i32
  }
  func.func @transform_7(%arg0: i32) -> (i32, i32) {
    %c0_i32 = arith.constant 0 : i32
    %c0_i32_0 = arith.constant 0 : i32
    %c0_i32_1 = arith.constant 0 : i32
    return %c0_i32, %c0_i32_0 : i32, i32
  }
  func.func @transform_8(%arg0: i32) -> (i32, i32, i32) {
    %c0_i32 = arith.constant 0 : i32
    %c0_i32_0 = arith.constant 0 : i32
    %c0_i32_1 = arith.constant 0 : i32
    return %arg0, %c0_i32, %c0_i32_0 : i32, i32, i32
  }
}

module attributes {stable_mosaic.version = 11 : i64} {
  func.func @_attn_kernel_with_weights(%arg0: i32, %arg1: memref<1x4x8x8xbf16, #tpu.memory_space<vmem>>, %arg2: memref<1x4x8x8xbf16, #tpu.memory_space<vmem>>, %arg3: memref<1x4x8x8xbf16, #tpu.memory_space<vmem>>, %arg4: memref<1x8x32xf32, #tpu.memory_space<vmem>>, %arg5: memref<4x8x32xbf16, #tpu.memory_space<vmem>>, %arg6: memref<1x32xf32, #tpu.memory_space<vmem>>, %arg7: memref<1x32xf32, #tpu.memory_space<vmem>>, %arg8: memref<1x32xf32, #tpu.memory_space<vmem>>, %arg9: memref<1x8x32xf32, #tpu.memory_space<vmem>>, %arg10: memref<1x4x8x8xf32, #tpu.memory_space<vmem>>) attributes {dimension_semantics = [#tpu.dimension_semantics<parallel>], iteration_bounds = array<i64: 2>, scalar_prefetch = 0 : i64, scratch_operands = 0 : i64, tpu.core_type = #tpu.core_type<tc>, window_params = [{transform_indices = @transform_0, window_bounds = array<i64: 1, 4, 8, 8>}, {transform_indices = @transform_1, window_bounds = array<i64: 1, 4, 8, 8>}, {transform_indices = @transform_2, window_bounds = array<i64: 1, 4, 8, 8>}, {transform_indices = @transform_3, window_bounds = array<i64: 1, 8, 32>}, {pipeline_mode = #tpu.pipeline_mode<synchronous>, transform_indices = @transform_4, window_bounds = array<i64: 4, 8, 32>}, {pipeline_mode = #tpu.pipeline_mode<synchronous>, transform_indices = @transform_5, window_bounds = array<i64: 1, 32>}, {pipeline_mode = #tpu.pipeline_mode<synchronous>, transform_indices = @transform_6, window_bounds = array<i64: 1, 32>}, {pipeline_mode = #tpu.pipeline_mode<synchronous>, transform_indices = @transform_7, window_bounds = array<i64: 1, 32>}, {transform_indices = @transform_8, window_bounds = array<i64: 1, 8, 32>}, {transform_indices = @transform_9, window_bounds = array<i64: 1, 4, 8, 8>}]} {
    %c0 = arith.constant 0 : index
    %c0_0 = arith.constant 0 : index
    %c0_1 = arith.constant 0 : index
    %c0_2 = arith.constant 0 : index
    %0 = vector.load %arg1[%c0, %c0_0, %c0_1, %c0_2] : memref<1x4x8x8xbf16, #tpu.memory_space<vmem>>, vector<1x4x8x8xbf16>
    %1 = vector.shape_cast %0 : vector<1x4x8x8xbf16> to vector<4x8x8xbf16>
    %c0_3 = arith.constant 0 : index
    %c0_4 = arith.constant 0 : index
    %c0_5 = arith.constant 0 : index
    %c0_6 = arith.constant 0 : index
    %2 = vector.load %arg2[%c0_3, %c0_4, %c0_5, %c0_6] : memref<1x4x8x8xbf16, #tpu.memory_space<vmem>>, vector<1x4x8x8xbf16>
    %3 = vector.shape_cast %2 : vector<1x4x8x8xbf16> to vector<4x8x8xbf16>
    %c0_7 = arith.constant 0 : index
    %c0_8 = arith.constant 0 : index
    %c0_9 = arith.constant 0 : index
    %c0_10 = arith.constant 0 : index
    %4 = vector.load %arg3[%c0_7, %c0_8, %c0_9, %c0_10] : memref<1x4x8x8xbf16, #tpu.memory_space<vmem>>, vector<1x4x8x8xbf16>
    %5 = vector.shape_cast %4 : vector<1x4x8x8xbf16> to vector<4x8x8xbf16>
    "tpu.trace_start"() <{level = 10 : i32, message = "hqd,hkd->hqk"}> : () -> ()
    %cst = arith.constant dense<0.000000e+00> : vector<4x8x8xf32>
    %6 = tpu.matmul %1, %3, %cst {dimension_numbers = #tpu.dot_dimension_numbers<[2], [2], [1], [1], [0, 0, 0, 1, 1, 1], [0], [0]>} : vector<4x8x8xbf16>, vector<4x8x8xbf16>, vector<4x8x8xf32> -> vector<4x8x8xf32>
    "tpu.trace_stop"() : () -> ()
    %cst_11 = arith.constant 0.353553385 : f32
    %7 = vector.broadcast %cst_11 : f32 to vector<4x8x8xf32>
    %8 = arith.mulf %6, %7 : vector<4x8x8xf32>
    %cst_12 = arith.constant dense<0xFF800000> : vector<4x8xf32>
    %9 = vector.multi_reduction <maximumf>, %8, %cst_12 [2] : vector<4x8x8xf32> to vector<4x8xf32>
    %10 = vector.shape_cast %9 : vector<4x8xf32> to vector<4x8x1xf32>
    %11 = vector.broadcast %10 : vector<4x8x1xf32> to vector<4x8x8xf32>
    %12 = arith.subf %8, %11 : vector<4x8x8xf32>
    %13 = math.exp %12 : vector<4x8x8xf32>
    %cst_13 = arith.constant dense<0.000000e+00> : vector<4x8xf32>
    %14 = vector.multi_reduction <add>, %13, %cst_13 [2] : vector<4x8x8xf32> to vector<4x8xf32>
    %15 = vector.shape_cast %14 : vector<4x8xf32> to vector<4x8x1xf32>
    %16 = tpu.reciprocal %15 {approx = true} : vector<4x8x1xf32> -> vector<4x8x1xf32>
    %17 = vector.broadcast %16 : vector<4x8x1xf32> to vector<4x8x8xf32>
    %18 = arith.mulf %13, %17 : vector<4x8x8xf32>
    %19 = arith.truncf %18 : vector<4x8x8xf32> to vector<4x8x8xbf16>
    "tpu.trace_start"() <{level = 10 : i32, message = "hqk,hkd->hqd"}> : () -> ()
    %cst_14 = arith.constant dense<0.000000e+00> : vector<4x8x8xf32>
    %20 = tpu.matmul %19, %5, %cst_14 {dimension_numbers = #tpu.dot_dimension_numbers<[2], [1], [1], [2], [0, 0, 0, 1, 1, 2], [0], [0]>} : vector<4x8x8xbf16>, vector<4x8x8xbf16>, vector<4x8x8xf32> -> vector<4x8x8xf32>
    "tpu.trace_stop"() : () -> ()
    %21 = arith.truncf %20 : vector<4x8x8xf32> to vector<4x8x8xbf16>
    %22 = vector.extract_strided_slice %21 {offsets = [0, 0, 0], sizes = [1, 8, 8], strides = [1, 1, 1]} : vector<4x8x8xbf16> to vector<1x8x8xbf16>
    %23 = vector.shape_cast %22 : vector<1x8x8xbf16> to vector<8x8xbf16>
    %c0_15 = arith.constant 0 : index
    %c0_16 = arith.constant 0 : index
    %c0_17 = arith.constant 0 : index
    %24 = vector.load %arg5[%c0_15, %c0_16, %c0_17] : memref<4x8x32xbf16, #tpu.memory_space<vmem>>, vector<1x8x32xbf16>
    %25 = vector.shape_cast %24 : vector<1x8x32xbf16> to vector<8x32xbf16>
    %cst_18 = arith.constant dense<0.000000e+00> : vector<8x32xf32>
    %26 = tpu.matmul %23, %25, %cst_18 {dimension_numbers = #tpu.dot_dimension_numbers<[1], [0], [0], [1], [0, 0, 1, 1], [], []>} : vector<8x8xbf16>, vector<8x32xbf16>, vector<8x32xf32> -> vector<8x32xf32>
    %27 = vector.extract_strided_slice %21 {offsets = [1, 0, 0], sizes = [1, 8, 8], strides = [1, 1, 1]} : vector<4x8x8xbf16> to vector<1x8x8xbf16>
    %28 = vector.shape_cast %27 : vector<1x8x8xbf16> to vector<8x8xbf16>
    %c1 = arith.constant 1 : index
    %c0_19 = arith.constant 0 : index
    %c0_20 = arith.constant 0 : index
    %29 = vector.load %arg5[%c1, %c0_19, %c0_20] : memref<4x8x32xbf16, #tpu.memory_space<vmem>>, vector<1x8x32xbf16>
    %30 = vector.shape_cast %29 : vector<1x8x32xbf16> to vector<8x32xbf16>
    %cst_21 = arith.constant dense<0.000000e+00> : vector<8x32xf32>
    %31 = tpu.matmul %28, %30, %cst_21 {dimension_numbers = #tpu.dot_dimension_numbers<[1], [0], [0], [1], [0, 0, 1, 1], [], []>} : vector<8x8xbf16>, vector<8x32xbf16>, vector<8x32xf32> -> vector<8x32xf32>
    %32 = arith.addf %26, %31 : vector<8x32xf32>
    %33 = vector.extract_strided_slice %21 {offsets = [2, 0, 0], sizes = [1, 8, 8], strides = [1, 1, 1]} : vector<4x8x8xbf16> to vector<1x8x8xbf16>
    %34 = vector.shape_cast %33 : vector<1x8x8xbf16> to vector<8x8xbf16>
    %c2 = arith.constant 2 : index
    %c0_22 = arith.constant 0 : index
    %c0_23 = arith.constant 0 : index
    %35 = vector.load %arg5[%c2, %c0_22, %c0_23] : memref<4x8x32xbf16, #tpu.memory_space<vmem>>, vector<1x8x32xbf16>
    %36 = vector.shape_cast %35 : vector<1x8x32xbf16> to vector<8x32xbf16>
    %cst_24 = arith.constant dense<0.000000e+00> : vector<8x32xf32>
    %37 = tpu.matmul %34, %36, %cst_24 {dimension_numbers = #tpu.dot_dimension_numbers<[1], [0], [0], [1], [0, 0, 1, 1], [], []>} : vector<8x8xbf16>, vector<8x32xbf16>, vector<8x32xf32> -> vector<8x32xf32>
    %38 = arith.addf %32, %37 : vector<8x32xf32>
    %39 = vector.extract_strided_slice %21 {offsets = [3, 0, 0], sizes = [1, 8, 8], strides = [1, 1, 1]} : vector<4x8x8xbf16> to vector<1x8x8xbf16>
    %40 = vector.shape_cast %39 : vector<1x8x8xbf16> to vector<8x8xbf16>
    %c3 = arith.constant 3 : index
    %c0_25 = arith.constant 0 : index
    %c0_26 = arith.constant 0 : index
    %41 = vector.load %arg5[%c3, %c0_25, %c0_26] : memref<4x8x32xbf16, #tpu.memory_space<vmem>>, vector<1x8x32xbf16>
    %42 = vector.shape_cast %41 : vector<1x8x32xbf16> to vector<8x32xbf16>
    %cst_27 = arith.constant dense<0.000000e+00> : vector<8x32xf32>
    %43 = tpu.matmul %40, %42, %cst_27 {dimension_numbers = #tpu.dot_dimension_numbers<[1], [0], [0], [1], [0, 0, 1, 1], [], []>} : vector<8x8xbf16>, vector<8x32xbf16>, vector<8x32xf32> -> vector<8x32xf32>
    %44 = arith.addf %38, %43 : vector<8x32xf32>
    %c0_28 = arith.constant 0 : index
    %c0_29 = arith.constant 0 : index
    %45 = vector.load %arg6[%c0_28, %c0_29] : memref<1x32xf32, #tpu.memory_space<vmem>>, vector<1x32xf32>
    %46 = vector.broadcast %45 : vector<1x32xf32> to vector<8x32xf32>
    %47 = arith.addf %44, %46 : vector<8x32xf32>
    %c0_30 = arith.constant 0 : index
    %c0_31 = arith.constant 0 : index
    %c0_32 = arith.constant 0 : index
    %48 = vector.load %arg4[%c0_30, %c0_31, %c0_32] : memref<1x8x32xf32, #tpu.memory_space<vmem>>, vector<1x8x32xf32>
    %49 = vector.shape_cast %48 : vector<1x8x32xf32> to vector<8x32xf32>
    %50 = arith.addf %47, %49 : vector<8x32xf32>
    %cst_33 = arith.constant dense<0.000000e+00> : vector<8xf32>
    %51 = vector.multi_reduction <add>, %50, %cst_33 [1] : vector<8x32xf32> to vector<8xf32>
    %52 = vector.shape_cast %51 : vector<8xf32> to vector<8x1xf32>
    %cst_34 = arith.constant 3.200000e+01 : f32
    %53 = vector.broadcast %cst_34 : f32 to vector<8x1xf32>
    %54 = arith.divf %52, %53 : vector<8x1xf32>
    %55 = vector.broadcast %54 : vector<8x1xf32> to vector<8x32xf32>
    %56 = arith.subf %50, %55 : vector<8x32xf32>
    %57 = arith.mulf %56, %56 : vector<8x32xf32>
    %cst_35 = arith.constant dense<0.000000e+00> : vector<8xf32>
    %58 = vector.multi_reduction <add>, %57, %cst_35 [1] : vector<8x32xf32> to vector<8xf32>
    %59 = vector.shape_cast %58 : vector<8xf32> to vector<8x1xf32>
    %cst_36 = arith.constant 3.200000e+01 : f32
    %60 = vector.broadcast %cst_36 : f32 to vector<8x1xf32>
    %61 = arith.divf %59, %60 : vector<8x1xf32>
    %62 = vector.broadcast %54 : vector<8x1xf32> to vector<8x32xf32>
    %63 = arith.subf %50, %62 : vector<8x32xf32>
    %cst_37 = arith.constant 9.99999974E-6 : f32
    %64 = vector.broadcast %cst_37 : f32 to vector<8x1xf32>
    %65 = arith.addf %61, %64 : vector<8x1xf32>
    %66 = math.rsqrt %65 : vector<8x1xf32>
    %67 = vector.broadcast %66 : vector<8x1xf32> to vector<8x32xf32>
    %68 = arith.mulf %63, %67 : vector<8x32xf32>
    %c0_38 = arith.constant 0 : index
    %c0_39 = arith.constant 0 : index
    %69 = vector.load %arg7[%c0_38, %c0_39] : memref<1x32xf32, #tpu.memory_space<vmem>>, vector<1x32xf32>
    %70 = vector.broadcast %69 : vector<1x32xf32> to vector<8x32xf32>
    %71 = arith.mulf %68, %70 : vector<8x32xf32>
    %c0_40 = arith.constant 0 : index
    %c0_41 = arith.constant 0 : index
    %72 = vector.load %arg8[%c0_40, %c0_41] : memref<1x32xf32, #tpu.memory_space<vmem>>, vector<1x32xf32>
    %73 = vector.broadcast %72 : vector<1x32xf32> to vector<8x32xf32>
    %74 = arith.addf %71, %73 : vector<8x32xf32>
    %c0_42 = arith.constant 0 : index
    %c0_43 = arith.constant 0 : index
    %c0_44 = arith.constant 0 : index
    %75 = vector.load %arg9[%c0_42, %c0_43, %c0_44] : memref<1x8x32xf32, #tpu.memory_space<vmem>>, vector<1x8x32xf32>
    %76 = vector.shape_cast %75 : vector<1x8x32xf32> to vector<8x32xf32>
    %77 = vector.shape_cast %74 : vector<8x32xf32> to vector<1x8x32xf32>
    tpu.vector_store %arg9[%c0_42, %c0_43, %c0_44], %77 {strides = array<i32>} : memref<1x8x32xf32, #tpu.memory_space<vmem>>, vector<1x8x32xf32>,
    %c0_45 = arith.constant 0 : index
    %c0_46 = arith.constant 0 : index
    %c0_47 = arith.constant 0 : index
    %c0_48 = arith.constant 0 : index
    %78 = vector.load %arg10[%c0_45, %c0_46, %c0_47, %c0_48] : memref<1x4x8x8xf32, #tpu.memory_space<vmem>>, vector<1x4x8x8xf32>
    %79 = vector.shape_cast %78 : vector<1x4x8x8xf32> to vector<4x8x8xf32>
    %80 = vector.shape_cast %18 : vector<4x8x8xf32> to vector<1x4x8x8xf32>
    tpu.vector_store %arg10[%c0_45, %c0_46, %c0_47, %c0_48], %80 {strides = array<i32>} : memref<1x4x8x8xf32, #tpu.memory_space<vmem>>, vector<1x4x8x8xf32>,
    return
  }
  func.func @transform_0(%arg0: i32) -> (i32, i32, i32, i32) {
    %c0_i32 = arith.constant 0 : i32
    %c0_i32_0 = arith.constant 0 : i32
    %c0_i32_1 = arith.constant 0 : i32
    %c0_i32_2 = arith.constant 0 : i32
    return %arg0, %c0_i32, %c0_i32_0, %c0_i32_1 : i32, i32, i32, i32
  }
  func.func @transform_1(%arg0: i32) -> (i32, i32, i32, i32) {
    %c0_i32 = arith.constant 0 : i32
    %c0_i32_0 = arith.constant 0 : i32
    %c0_i32_1 = arith.constant 0 : i32
    %c0_i32_2 = arith.constant 0 : i32
    return %arg0, %c0_i32, %c0_i32_0, %c0_i32_1 : i32, i32, i32, i32
  }
  func.func @transform_2(%arg0: i32) -> (i32, i32, i32, i32) {
    %c0_i32 = arith.constant 0 : i32
    %c0_i32_0 = arith.constant 0 : i32
    %c0_i32_1 = arith.constant 0 : i32
    %c0_i32_2 = arith.constant 0 : i32
    return %arg0, %c0_i32, %c0_i32_0, %c0_i32_1 : i32, i32, i32, i32
  }
  func.func @transform_3(%arg0: i32) -> (i32, i32, i32) {
    %c0_i32 = arith.constant 0 : i32
    %c0_i32_0 = arith.constant 0 : i32
    %c0_i32_1 = arith.constant 0 : i32
    return %arg0, %c0_i32, %c0_i32_0 : i32, i32, i32
  }
  func.func @transform_4(%arg0: i32) -> (i32, i32, i32) {
    %c0_i32 = arith.constant 0 : i32
    %c0_i32_0 = arith.constant 0 : i32
    %c0_i32_1 = arith.constant 0 : i32
    %c0_i32_2 = arith.constant 0 : i32
    return %c0_i32, %c0_i32_0, %c0_i32_1 : i32, i32, i32
  }
  func.func @transform_5(%arg0: i32) -> (i32, i32) {
    %c0_i32 = arith.constant 0 : i32
    %c0_i32_0 = arith.constant 0 : i32
    %c0_i32_1 = arith.constant 0 : i32
    return %c0_i32, %c0_i32_0 : i32, i32
  }
  func.func @transform_6(%arg0: i32) -> (i32, i32) {
    %c0_i32 = arith.constant 0 : i32
    %c0_i32_0 = arith.constant 0 : i32
    %c0_i32_1 = arith.constant 0 : i32
    return %c0_i32, %c0_i32_0 : i32, i32
  }
  func.func @transform_7(%arg0: i32) -> (i32, i32) {
    %c0_i32 = arith.constant 0 : i32
    %c0_i32_0 = arith.constant 0 : i32
    %c0_i32_1 = arith.constant 0 : i32
    return %c0_i32, %c0_i32_0 : i32, i32
  }
  func.func @transform_8(%arg0: i32) -> (i32, i32, i32) {
    %c0_i32 = arith.constant 0 : i32
    %c0_i32_0 = arith.constant 0 : i32
    %c0_i32_1 = arith.constant 0 : i32
    return %arg0, %c0_i32, %c0_i32_0 : i32, i32, i32
  }
  func.func @transform_9(%arg0: i32) -> (i32, i32, i32, i32) {
    %c0_i32 = arith.constant 0 : i32
    %c0_i32_0 = arith.constant 0 : i32
    %c0_i32_1 = arith.constant 0 : i32
    %c0_i32_2 = arith.constant 0 : i32
    return %arg0, %c0_i32, %c0_i32_0, %c0_i32_1 : i32, i32, i32, i32
  }
}

module attributes {stable_mosaic.version = 11 : i64} {
  func.func @_ffn_res_ln_kernel(%arg0: i32, %arg1: memref<16x32xf32, #tpu.memory_space<vmem>>, %arg2: memref<32x64xbf16, #tpu.memory_space<vmem>>, %arg3: memref<1x64xf32, #tpu.memory_space<vmem>>, %arg4: memref<64x32xbf16, #tpu.memory_space<vmem>>, %arg5: memref<1x32xf32, #tpu.memory_space<vmem>>, %arg6: memref<1x32xf32, #tpu.memory_space<vmem>>, %arg7: memref<1x32xf32, #tpu.memory_space<vmem>>, %arg8: memref<16x32xf32, #tpu.memory_space<vmem>>) attributes {dimension_semantics = [#tpu.dimension_semantics<parallel>], iteration_bounds = array<i64: 1>, scalar_prefetch = 0 : i64, scratch_operands = 0 : i64, tpu.core_type = #tpu.core_type<tc>, window_params = [{transform_indices = @transform_0, window_bounds = array<i64: 16, 32>}, {pipeline_mode = #tpu.pipeline_mode<synchronous>, transform_indices = @transform_1, window_bounds = array<i64: 32, 64>}, {pipeline_mode = #tpu.pipeline_mode<synchronous>, transform_indices = @transform_2, window_bounds = array<i64: 1, 64>}, {pipeline_mode = #tpu.pipeline_mode<synchronous>, transform_indices = @transform_3, window_bounds = array<i64: 64, 32>}, {pipeline_mode = #tpu.pipeline_mode<synchronous>, transform_indices = @transform_4, window_bounds = array<i64: 1, 32>}, {pipeline_mode = #tpu.pipeline_mode<synchronous>, transform_indices = @transform_5, window_bounds = array<i64: 1, 32>}, {pipeline_mode = #tpu.pipeline_mode<synchronous>, transform_indices = @transform_6, window_bounds = array<i64: 1, 32>}, {transform_indices = @transform_7, window_bounds = array<i64: 16, 32>}]} {
    %c0 = arith.constant 0 : index
    %c0_0 = arith.constant 0 : index
    %0 = vector.load %arg1[%c0, %c0_0] : memref<16x32xf32, #tpu.memory_space<vmem>>, vector<16x32xf32>
    %1 = arith.truncf %0 : vector<16x32xf32> to vector<16x32xbf16>
    %c0_1 = arith.constant 0 : index
    %c0_2 = arith.constant 0 : index
    %2 = vector.load %arg2[%c0_1, %c0_2] : memref<32x64xbf16, #tpu.memory_space<vmem>>, vector<32x64xbf16>
    %cst = arith.constant dense<0.000000e+00> : vector<16x64xf32>
    %3 = tpu.matmul %1, %2, %cst {dimension_numbers = #tpu.dot_dimension_numbers<[1], [0], [0], [1], [0, 0, 1, 1], [], []>} : vector<16x32xbf16>, vector<32x64xbf16>, vector<16x64xf32> -> vector<16x64xf32>
    %c0_3 = arith.constant 0 : index
    %c0_4 = arith.constant 0 : index
    %4 = vector.load %arg3[%c0_3, %c0_4] : memref<1x64xf32, #tpu.memory_space<vmem>>, vector<1x64xf32>
    %5 = vector.broadcast %4 : vector<1x64xf32> to vector<16x64xf32>
    %6 = arith.addf %3, %5 : vector<16x64xf32>
    %cst_5 = arith.constant 0.000000e+00 : f32
    %7 = vector.broadcast %cst_5 : f32 to vector<16x64xf32>
    %8 = arith.maximumf %6, %7 : vector<16x64xf32>
    %9 = arith.truncf %8 : vector<16x64xf32> to vector<16x64xbf16>
    %c0_6 = arith.constant 0 : index
    %c0_7 = arith.constant 0 : index
    %10 = vector.load %arg4[%c0_6, %c0_7] : memref<64x32xbf16, #tpu.memory_space<vmem>>, vector<64x32xbf16>
    %cst_8 = arith.constant dense<0.000000e+00> : vector<16x32xf32>
    %11 = tpu.matmul %9, %10, %cst_8 {dimension_numbers = #tpu.dot_dimension_numbers<[1], [0], [0], [1], [0, 0, 1, 1], [], []>} : vector<16x64xbf16>, vector<64x32xbf16>, vector<16x32xf32> -> vector<16x32xf32>
    %c0_9 = arith.constant 0 : index
    %c0_10 = arith.constant 0 : index
    %12 = vector.load %arg5[%c0_9, %c0_10] : memref<1x32xf32, #tpu.memory_space<vmem>>, vector<1x32xf32>
    %13 = vector.broadcast %12 : vector<1x32xf32> to vector<16x32xf32>
    %14 = arith.addf %11, %13 : vector<16x32xf32>
    %15 = arith.addf %14, %0 : vector<16x32xf32>
    %cst_11 = arith.constant dense<0.000000e+00> : vector<16xf32>
    %16 = vector.multi_reduction <add>, %15, %cst_11 [1] : vector<16x32xf32> to vector<16xf32>
    %17 = vector.shape_cast %16 : vector<16xf32> to vector<16x1xf32>
    %cst_12 = arith.constant 3.200000e+01 : f32
    %18 = vector.broadcast %cst_12 : f32 to vector<16x1xf32>
    %19 = arith.divf %17, %18 : vector<16x1xf32>
    %20 = vector.broadcast %19 : vector<16x1xf32> to vector<16x32xf32>
    %21 = arith.subf %15, %20 : vector<16x32xf32>
    %22 = arith.mulf %21, %21 : vector<16x32xf32>
    %cst_13 = arith.constant dense<0.000000e+00> : vector<16xf32>
    %23 = vector.multi_reduction <add>, %22, %cst_13 [1] : vector<16x32xf32> to vector<16xf32>
    %24 = vector.shape_cast %23 : vector<16xf32> to vector<16x1xf32>
    %cst_14 = arith.constant 3.200000e+01 : f32
    %25 = vector.broadcast %cst_14 : f32 to vector<16x1xf32>
    %26 = arith.divf %24, %25 : vector<16x1xf32>
    %27 = vector.broadcast %19 : vector<16x1xf32> to vector<16x32xf32>
    %28 = arith.subf %15, %27 : vector<16x32xf32>
    %cst_15 = arith.constant 9.99999974E-6 : f32
    %29 = vector.broadcast %cst_15 : f32 to vector<16x1xf32>
    %30 = arith.addf %26, %29 : vector<16x1xf32>
    %31 = math.rsqrt %30 : vector<16x1xf32>
    %32 = vector.broadcast %31 : vector<16x1xf32> to vector<16x32xf32>
    %33 = arith.mulf %28, %32 : vector<16x32xf32>
    %c0_16 = arith.constant 0 : index
    %c0_17 = arith.constant 0 : index
    %34 = vector.load %arg6[%c0_16, %c0_17] : memref<1x32xf32, #tpu.memory_space<vmem>>, vector<1x32xf32>
    %35 = vector.broadcast %34 : vector<1x32xf32> to vector<16x32xf32>
    %36 = arith.mulf %33, %35 : vector<16x32xf32>
    %c0_18 = arith.constant 0 : index
    %c0_19 = arith.constant 0 : index
    %37 = vector.load %arg7[%c0_18, %c0_19] : memref<1x32xf32, #tpu.memory_space<vmem>>, vector<1x32xf32>
    %38 = vector.broadcast %37 : vector<1x32xf32> to vector<16x32xf32>
    %39 = arith.addf %36, %38 : vector<16x32xf32>
    %c0_20 = arith.constant 0 : index
    %c0_21 = arith.constant 0 : index
    %40 = vector.load %arg8[%c0_20, %c0_21] : memref<16x32xf32, #tpu.memory_space<vmem>>, vector<16x32xf32>
    tpu.vector_store %arg8[%c0_20, %c0_21], %39 {strides = array<i32>} : memref<16x32xf32, #tpu.memory_space<vmem>>, vector<16x32xf32>,
    return
  }
  func.func @transform_0(%arg0: i32) -> (i32, i32) {
    %c0_i32 = arith.constant 0 : i32
    %c0_i32_0 = arith.constant 0 : i32
    return %arg0, %c0_i32 : i32, i32
  }
  func.func @transform_1(%arg0: i32) -> (i32, i32) {
    %c0_i32 = arith.constant 0 : i32
    %c0_i32_0 = arith.constant 0 : i32
    %c0_i32_1 = arith.constant 0 : i32
    return %c0_i32, %c0_i32_0 : i32, i32
  }
  func.func @transform_2(%arg0: i32) -> (i32, i32) {
    %c0_i32 = arith.constant 0 : i32
    %c0_i32_0 = arith.constant 0 : i32
    %c0_i32_1 = arith.constant 0 : i32
    return %c0_i32, %c0_i32_0 : i32, i32
  }
  func.func @transform_3(%arg0: i32) -> (i32, i32) {
    %c0_i32 = arith.constant 0 : i32
    %c0_i32_0 = arith.constant 0 : i32
    %c0_i32_1 = arith.constant 0 : i32
    return %c0_i32, %c0_i32_0 : i32, i32
  }
  func.func @transform_4(%arg0: i32) -> (i32, i32) {
    %c0_i32 = arith.constant 0 : i32
    %c0_i32_0 = arith.constant 0 : i32
    %c0_i32_1 = arith.constant 0 : i32
    return %c0_i32, %c0_i32_0 : i32, i32
  }
  func.func @transform_5(%arg0: i32) -> (i32, i32) {
    %c0_i32 = arith.constant 0 : i32
    %c0_i32_0 = arith.constant 0 : i32
    %c0_i32_1 = arith.constant 0 : i32
    return %c0_i32, %c0_i32_0 : i32, i32
  }
  func.func @transform_6(%arg0: i32) -> (i32, i32) {
    %c0_i32 = arith.constant 0 : i32
    %c0_i32_0 = arith.constant 0 : i32
    %c0_i32_1 = arith.constant 0 : i32
    return %c0_i32, %c0_i32_0 : i32, i32
  }
  func.func @transform_7(%arg0: i32) -> (i32, i32) {
    %c0_i32 = arith.constant 0 : i32
    %c0_i32_0 = arith.constant 0 : i32
    return %arg0, %c0_i32 : i32, i32
  }
}

module attributes {stable_mosaic.version = 11 : i64} {
  func.func @_ffn_res_ln_kernel(%arg0: i32, %arg1: memref<16x32xf32, #tpu.memory_space<vmem>>, %arg2: memref<32x64xbf16, #tpu.memory_space<vmem>>, %arg3: memref<1x64xf32, #tpu.memory_space<vmem>>, %arg4: memref<64x32xbf16, #tpu.memory_space<vmem>>, %arg5: memref<1x32xf32, #tpu.memory_space<vmem>>, %arg6: memref<1x32xf32, #tpu.memory_space<vmem>>, %arg7: memref<1x32xf32, #tpu.memory_space<vmem>>, %arg8: memref<16x32xf32, #tpu.memory_space<vmem>>) attributes {dimension_semantics = [#tpu.dimension_semantics<parallel>], iteration_bounds = array<i64: 1>, scalar_prefetch = 0 : i64, scratch_operands = 0 : i64, tpu.core_type = #tpu.core_type<tc>, window_params = [{transform_indices = @transform_0, window_bounds = array<i64: 16, 32>}, {pipeline_mode = #tpu.pipeline_mode<synchronous>, transform_indices = @transform_1, window_bounds = array<i64: 32, 64>}, {pipeline_mode = #tpu.pipeline_mode<synchronous>, transform_indices = @transform_2, window_bounds = array<i64: 1, 64>}, {pipeline_mode = #tpu.pipeline_mode<synchronous>, transform_indices = @transform_3, window_bounds = array<i64: 64, 32>}, {pipeline_mode = #tpu.pipeline_mode<synchronous>, transform_indices = @transform_4, window_bounds = array<i64: 1, 32>}, {pipeline_mode = #tpu.pipeline_mode<synchronous>, transform_indices = @transform_5, window_bounds = array<i64: 1, 32>}, {pipeline_mode = #tpu.pipeline_mode<synchronous>, transform_indices = @transform_6, window_bounds = array<i64: 1, 32>}, {transform_indices = @transform_7, window_bounds = array<i64: 16, 32>}]} {
    %c0 = arith.constant 0 : index
    %c0_0 = arith.constant 0 : index
    %0 = vector.load %arg1[%c0, %c0_0] : memref<16x32xf32, #tpu.memory_space<vmem>>, vector<16x32xf32>
    %1 = arith.truncf %0 : vector<16x32xf32> to vector<16x32xbf16>
    %c0_1 = arith.constant 0 : index
    %c0_2 = arith.constant 0 : index
    %2 = vector.load %arg2[%c0_1, %c0_2] : memref<32x64xbf16, #tpu.memory_space<vmem>>, vector<32x64xbf16>
    %cst = arith.constant dense<0.000000e+00> : vector<16x64xf32>
    %3 = tpu.matmul %1, %2, %cst {dimension_numbers = #tpu.dot_dimension_numbers<[1], [0], [0], [1], [0, 0, 1, 1], [], []>} : vector<16x32xbf16>, vector<32x64xbf16>, vector<16x64xf32> -> vector<16x64xf32>
    %c0_3 = arith.constant 0 : index
    %c0_4 = arith.constant 0 : index
    %4 = vector.load %arg3[%c0_3, %c0_4] : memref<1x64xf32, #tpu.memory_space<vmem>>, vector<1x64xf32>
    %5 = vector.broadcast %4 : vector<1x64xf32> to vector<16x64xf32>
    %6 = arith.addf %3, %5 : vector<16x64xf32>
    %cst_5 = arith.constant 0.000000e+00 : f32
    %7 = vector.broadcast %cst_5 : f32 to vector<16x64xf32>
    %8 = arith.maximumf %6, %7 : vector<16x64xf32>
    %9 = arith.truncf %8 : vector<16x64xf32> to vector<16x64xbf16>
    %c0_6 = arith.constant 0 : index
    %c0_7 = arith.constant 0 : index
    %10 = vector.load %arg4[%c0_6, %c0_7] : memref<64x32xbf16, #tpu.memory_space<vmem>>, vector<64x32xbf16>
    %cst_8 = arith.constant dense<0.000000e+00> : vector<16x32xf32>
    %11 = tpu.matmul %9, %10, %cst_8 {dimension_numbers = #tpu.dot_dimension_numbers<[1], [0], [0], [1], [0, 0, 1, 1], [], []>} : vector<16x64xbf16>, vector<64x32xbf16>, vector<16x32xf32> -> vector<16x32xf32>
    %c0_9 = arith.constant 0 : index
    %c0_10 = arith.constant 0 : index
    %12 = vector.load %arg5[%c0_9, %c0_10] : memref<1x32xf32, #tpu.memory_space<vmem>>, vector<1x32xf32>
    %13 = vector.broadcast %12 : vector<1x32xf32> to vector<16x32xf32>
    %14 = arith.addf %11, %13 : vector<16x32xf32>
    %15 = arith.addf %14, %0 : vector<16x32xf32>
    %cst_11 = arith.constant dense<0.000000e+00> : vector<16xf32>
    %16 = vector.multi_reduction <add>, %15, %cst_11 [1] : vector<16x32xf32> to vector<16xf32>
    %17 = vector.shape_cast %16 : vector<16xf32> to vector<16x1xf32>
    %cst_12 = arith.constant 3.200000e+01 : f32
    %18 = vector.broadcast %cst_12 : f32 to vector<16x1xf32>
    %19 = arith.divf %17, %18 : vector<16x1xf32>
    %20 = vector.broadcast %19 : vector<16x1xf32> to vector<16x32xf32>
    %21 = arith.subf %15, %20 : vector<16x32xf32>
    %22 = arith.mulf %21, %21 : vector<16x32xf32>
    %cst_13 = arith.constant dense<0.000000e+00> : vector<16xf32>
    %23 = vector.multi_reduction <add>, %22, %cst_13 [1] : vector<16x32xf32> to vector<16xf32>
    %24 = vector.shape_cast %23 : vector<16xf32> to vector<16x1xf32>
    %cst_14 = arith.constant 3.200000e+01 : f32
    %25 = vector.broadcast %cst_14 : f32 to vector<16x1xf32>
    %26 = arith.divf %24, %25 : vector<16x1xf32>
    %27 = vector.broadcast %19 : vector<16x1xf32> to vector<16x32xf32>
    %28 = arith.subf %15, %27 : vector<16x32xf32>
    %cst_15 = arith.constant 9.99999974E-6 : f32
    %29 = vector.broadcast %cst_15 : f32 to vector<16x1xf32>
    %30 = arith.addf %26, %29 : vector<16x1xf32>
    %31 = math.rsqrt %30 : vector<16x1xf32>
    %32 = vector.broadcast %31 : vector<16x1xf32> to vector<16x32xf32>
    %33 = arith.mulf %28, %32 : vector<16x32xf32>
    %c0_16 = arith.constant 0 : index
    %c0_17 = arith.constant 0 : index
    %34 = vector.load %arg6[%c0_16, %c0_17] : memref<1x32xf32, #tpu.memory_space<vmem>>, vector<1x32xf32>
    %35 = vector.broadcast %34 : vector<1x32xf32> to vector<16x32xf32>
    %36 = arith.mulf %33, %35 : vector<16x32xf32>
    %c0_18 = arith.constant 0 : index
    %c0_19 = arith.constant 0 : index
    %37 = vector.load %arg7[%c0_18, %c0_19] : memref<1x32xf32, #tpu.memory_space<vmem>>, vector<1x32xf32>
    %38 = vector.broadcast %37 : vector<1x32xf32> to vector<16x32xf32>
    %39 = arith.addf %36, %38 : vector<16x32xf32>
    %c0_20 = arith.constant 0 : index
    %c0_21 = arith.constant 0 : index
    %40 = vector.load %arg8[%c0_20, %c0_21] : memref<16x32xf32, #tpu.memory_space<vmem>>, vector<16x32xf32>
    tpu.vector_store %arg8[%c0_20, %c0_21], %39 {strides = array<i32>} : memref<16x32xf32, #tpu.memory_space<vmem>>, vector<16x32xf32>,
    return
  }
  func.func @transform_0(%arg0: i32) -> (i32, i32) {
    %c0_i32 = arith.constant 0 : i32
    %c0_i32_0 = arith.constant 0 : i32
    return %arg0, %c0_i32 : i32, i32
  }
  func.func @transform_1(%arg0: i32) -> (i32, i32) {
    %c0_i32 = arith.constant 0 : i32
    %c0_i32_0 = arith.constant 0 : i32
    %c0_i32_1 = arith.constant 0 : i32
    return %c0_i32, %c0_i32_0 : i32, i32
  }
  func.func @transform_2(%arg0: i32) -> (i32, i32) {
    %c0_i32 = arith.constant 0 : i32
    %c0_i32_0 = arith.constant 0 : i32
    %c0_i32_1 = arith.constant 0 : i32
    return %c0_i32, %c0_i32_0 : i32, i32
  }
  func.func @transform_3(%arg0: i32) -> (i32, i32) {
    %c0_i32 = arith.constant 0 : i32
    %c0_i32_0 = arith.constant 0 : i32
    %c0_i32_1 = arith.constant 0 : i32
    return %c0_i32, %c0_i32_0 : i32, i32
  }
  func.func @transform_4(%arg0: i32) -> (i32, i32) {
    %c0_i32 = arith.constant 0 : i32
    %c0_i32_0 = arith.constant 0 : i32
    %c0_i32_1 = arith.constant 0 : i32
    return %c0_i32, %c0_i32_0 : i32, i32
  }
  func.func @transform_5(%arg0: i32) -> (i32, i32) {
    %c0_i32 = arith.constant 0 : i32
    %c0_i32_0 = arith.constant 0 : i32
    %c0_i32_1 = arith.constant 0 : i32
    return %c0_i32, %c0_i32_0 : i32, i32
  }
  func.func @transform_6(%arg0: i32) -> (i32, i32) {
    %c0_i32 = arith.constant 0 : i32
    %c0_i32_0 = arith.constant 0 : i32
    %c0_i32_1 = arith.constant 0 : i32
    return %c0_i32, %c0_i32_0 : i32, i32
  }
  func.func @transform_7(%arg0: i32) -> (i32, i32) {
    %c0_i32 = arith.constant 0 : i32
    %c0_i32_0 = arith.constant 0 : i32
    return %arg0, %c0_i32 : i32, i32
  }
}

</mosaic_0001>

<llo_original>
// kernel: encoder_forward.8
$region0: #{encoder_forward.8}
  #allocation0 [shape = 'u32[]', space=smem, size = 0x4, offset = 0x4, fixed_abs, tag = 'smem constant byte address 0x4 - core index']
  #allocation1 [shape = 'u32[144,128]{1,0:T(1,128)}', space=vmem, size = 0x12000, scoped, tag = 'internal scratch']
  #allocation2 [shape = 'f32[16,96]{1,0:T(8,128)}', space=vmem, size = 0x2000, scoped, tag = 'scratch operand']
  %s0 = inlined_call_operand.vmem [shape: f32[16,32], index: 0, kind: input, shape index: {}]
  %s1 = inlined_call_operand.vmem [shape: bf16[32,96], index: 1, kind: input, shape index: {}]
  %s2 = inlined_call_operand.vmem [shape: f32[1,96], index: 2, kind: input, shape index: {}]
  %s3 = inlined_call_operand.vmem [shape: bf16[16,96], index: 3, kind: output, shape index: {}]
  %s4 = sld [smem:[#allocation0]]
  $region30: #{encoder_forward.8} parent=0
    _
  %s6 = ssub.s32 1, %s4
  %s7 = scalar_select 0, %s6, %s4
  // Predicated region
  $region2: #{encoder_forward.8} parent=0 // pred_check
    _
  $region3: #{encoder_forward.8} parent=0 // pred_check_branch
    %9 = sbr.rel (0) target = $region5
  $region4: #{encoder_forward.8} parent=0 // pred_region
    _
  $region5: #{encoder_forward.8} parent=0 // pred_fallthru
    _
  // Predicated region
  $region6: #{encoder_forward.8} parent=0 // pred_check
    _
  $region7: #{encoder_forward.8} parent=0 // pred_check_branch
    %11 = sbr.rel (0) target = $region9
  $region8: #{encoder_forward.8} parent=0 // pred_region
    _
  $region9: #{encoder_forward.8} parent=0 // pred_fallthru
    _
  // Predicated region
  $region10: #{encoder_forward.8} parent=0 // pred_check
    _
  $region11: #{encoder_forward.8} parent=0 // pred_check_branch
    %13 = sbr.rel (0) target = $region13
  $region12: #{encoder_forward.8} parent=0 // pred_region
    _
  $region13: #{encoder_forward.8} parent=0 // pred_fallthru
    _
  %p15 = scmp.eq.s32.totalorder 0, 0
  // Predicated region
  $region14: #{encoder_forward.8} parent=0 // pred_check
    %p16 = pneg %p15
  $region15: #{encoder_forward.8} parent=0 // pred_check_branch
    %18 = sbr.rel (%p16) target = $region17
  $region16: #{encoder_forward.8} parent=0 // pred_region
    %vm19 = vcmask 785408
    %20 = vst.msk [vmem:[#allocation2] sm:$0xff] %vm19, 0.0
    %21 = vst.msk [vmem:[#allocation2 + $0x8] sm:$0xff] %vm19, 0.0
  $region17: #{encoder_forward.8} parent=0 // pred_fallthru
    _
  %v22 = vld [vmem:[%s0] sm:$0xff]
  %v23 = vld [vmem:[%s0 + $0x8] sm:$0xff]
  %v24 = vpack.c.bf16 %v23, %v22
  %v25 = vld [vmem:[#allocation2] sm:$0xff]
  %v26 = vld [vmem:[#allocation2 + $0x8] sm:$0xff]
  %v27 = vld [vmem:[%s1] sm:$0xf]
  %v28 = vld [vmem:[%s1 + $0x4] sm:$0xf]
  %v29 = vld [vmem:[%s1 + $0x8] sm:$0xf]
  %v30 = vld [vmem:[%s1 + $0xc] sm:$0xf]
  %v35 = vunpack.c.l.b16 %v27
  %v36 = vunpack.c.l.b16 %v28
  %v37 = vunpack.c.l.b16 %v29
  %v38 = vunpack.c.l.b16 %v30
  %v39 = vpack.c.b16 %v36, %v35
  %v40 = vpack.c.b16 %v38, %v37
  %vm43 = vcmask 261120
  %v45 = vsel %vm43, %v24, 0
  %47 = vmatprep.subr.bf16.mxu0 0
  %48 = vmatpush1.bf16.msra.mxu0 0
  %49 = vmatprep.subr.bf16.mxu0 0
  %50 = vmatpush1.bf16.msra.mxu0 0
  %51 = vmatprep.subr.bf16.mxu0 0
  %52 = vmatpush1.bf16.msra.mxu0 0
  %53 = vmatprep.subr.bf16.mxu0 0
  %54 = vmatpush1.bf16.msra.mxu0 0
  %55 = vmatprep.subr.bf16.mxu0 0
  %56 = vmatpush1.bf16.msra.mxu0 0
  %57 = vmatprep.subr.bf16.mxu0 0
  %58 = vmatpush1.bf16.msra.mxu0 0
  %59 = vmatprep.subr.bf16.mxu0 0
  %60 = vmatpush1.bf16.msra.mxu0 %v40
  %61 = vmatprep.subr.bf16.mxu0 0
  %62 = vmatpush1.bf16.msra.mxu0 %v39
  %63 = vmatprep.subr.bf16.mxu0 0
  %64 = vmatpush2.bf16.msra.mxu0 0
  %65 = vmatprep.subr.bf16.mxu0 0
  %66 = vmatpush2.bf16.msra.mxu0 0
  %67 = vmatprep.subr.bf16.mxu0 0
  %68 = vmatpush2.bf16.msra.mxu0 0
  %69 = vmatprep.subr.bf16.mxu0 0
  %70 = vmatpush2.bf16.msra.mxu0 0
  %71 = vmatprep.subr.bf16.mxu0 0
  %72 = vmatpush2.bf16.msra.mxu0 0
  %73 = vmatprep.subr.bf16.mxu0 0
  %74 = vmatpush2.bf16.msra.mxu0 0
  %75 = vmatprep.subr.bf16.mxu0 0
  %76 = vmatpush2.bf16.msra.mxu0 0
  %77 = vmatprep.subr.bf16.mxu0 0
  %78 = vmatpush2.bf16.msra.mxu0 0
  %79 = vmatprep.mubr.bf16.mxu0 0
  %80 = vmatmul.mubr.bf16.gmra.mxu0 %v45
  %v81 = vpop.f32.mrf.mxu0
  %v82 = vadd.f32 0.0, %v81
  %v83 = vpop.f32.mrf.mxu0
  %v84 = vpop.f32.mrf.mxu0
  %v85 = vadd.f32 0.0, %v84
  %v86 = vpop.f32.mrf.mxu0
  %87 = vdwg.mxu0
  %v88 = vadd.f32 %v25, %v82
  %v89 = vadd.f32 %v26, %v85
  %vm90 = vcmask 785408
  %91 = vst.msk [vmem:[#allocation2] sm:$0xff] %vm90, %v88
  %92 = vst.msk [vmem:[#allocation2 + $0x8] sm:$0xff] %vm90, %v89
  // Predicated region
  $region18: #{encoder_forward.8} parent=0 // pred_check
    %p93 = pneg %p15
  $region19: #{encoder_forward.8} parent=0 // pred_check_branch
    %95 = sbr.rel (%p93) target = $region21
  $region20: #{encoder_forward.8} parent=0 // pred_region
    %v96 = vld [vmem:[#allocation2] sm:$0xff]
    %v97 = vld [vmem:[#allocation2 + $0x8] sm:$0xff]
    %v98 = vld [vmem:[%s2] sm:$0x1]
    %v100 = vlaneseq
    %v101 = vshrl.u32 %v100, 7
    %v102 = vsub.s32 0, %v101
    %v103 = vrot.slane %v98, %v102
    %v105 = vadd.f32 %v96, %v103
    %v106 = vadd.f32 %v97, %v103
    %v107 = vpack.c.bf16 %v106, %v105
    %v109 = vunpack.c.l.b16 %v107
    %v110 = vunpack.c.h.b16 %v107
    %v111 = vpack.c.b16 %v109, %v109
    %v112 = vpack.c.b16 %v110, %v110
    %vm115 = vcmask 781312
    %116 = vst.msk [vmem:[%s3] sm:$0xf] %vm115, %v111
    %117 = vst.msk [vmem:[%s3 + $0x4] sm:$0xf] %vm115, %v112
  $region21: #{encoder_forward.8} parent=0 // pred_fallthru
    _
  // Predicated region
  $region22: #{encoder_forward.8} parent=0 // pred_check
    _
  $region23: #{encoder_forward.8} parent=0 // pred_check_branch
    %119 = sbr.rel (0) target = $region25
  $region24: #{encoder_forward.8} parent=0 // pred_region
    _
  $region25: #{encoder_forward.8} parent=0 // pred_fallthru
    _
  // Predicated region
  $region26: #{encoder_forward.8} parent=0 // pred_check
    _
  $region27: #{encoder_forward.8} parent=0 // pred_check_branch
    %121 = sbr.rel (0) target = $region29
  $region28: #{encoder_forward.8} parent=0 // pred_region
    _
  $region29: #{encoder_forward.8} parent=0 // pred_fallthru
    _

// kernel: encoder_forward.7
$region0: #{encoder_forward.7}
  #allocation0 [shape = 'u32[]', space=smem, size = 0x4, offset = 0x4, fixed_abs, tag = 'smem constant byte address 0x4 - core index']
  #allocation1 [shape = 'u32[144,128]{1,0:T(1,128)}', space=vmem, size = 0x12000, scoped, tag = 'internal scratch']
  %s0 = inlined_call_operand.vmem [shape: f32[2,8,16], index: 0, kind: input, shape index: {}]
  %s1 = inlined_call_operand.vmem [shape: f32[2,8,16], index: 1, kind: input, shape index: {}]
  %s2 = inlined_call_operand.vmem [shape: bf16[3,16,32], index: 2, kind: input, shape index: {}]
  %s3 = inlined_call_operand.vmem [shape: f32[1,32], index: 3, kind: input, shape index: {}]
  %s4 = inlined_call_operand.vmem [shape: bf16[3,32,32], index: 4, kind: input, shape index: {}]
  %s5 = inlined_call_operand.vmem [shape: f32[1,32], index: 5, kind: input, shape index: {}]
  %s6 = inlined_call_operand.vmem [shape: bf16[16,32], index: 6, kind: input, shape index: {}]
  %s7 = inlined_call_operand.vmem [shape: f32[1,32], index: 7, kind: input, shape index: {}]
  %s8 = inlined_call_operand.vmem [shape: f32[8,32], index: 8, kind: input, shape index: {}]
  %s9 = inlined_call_operand.vmem [shape: f32[2,8,32], index: 9, kind: output, shape index: {}]
  %s10 = sld [smem:[#allocation0]]
  $region69: #{encoder_forward.7} parent=0
    _
  %s12 = ssub.s32 1, %s10
  %s13 = scalar_select 0, %s12, %s10
  loop: start=0, step=1, limit=4
  $region2: #{encoder_forward.7} parent=0 // loop_pre_header
    _
  $region3: #{encoder_forward.7} parent=0 // loop_header
    %s15 = sphi 0, %s19
    %p16 = scmp.ge.s32.totalorder %s15, 4
    %s25 = sphi 0, %s27
    %s28 = sphi 0, %s25
    %s29 = sphi 0, %s28
    %s45 = sphi 0, %s29
    %s51 = sphi 0, %s53
    %s54 = sphi 0, %s51
    %s55 = sphi 0, %s54
    %s71 = sphi 0, %s55
    %s75 = sphi 0, %s75
    %s77 = sphi 0, %s75
    %s78 = sphi 0, %s77
    %s92 = sphi 0, %s78
    %s96 = sphi 0, %s96
    %s98 = sphi 0, %s96
    %s99 = sphi 0, %s98
    %s113 = sphi 0, %s99
    %s117 = sphi 0, %s117
    %s119 = sphi 0, %s117
    %s120 = sphi 0, %s119
    %s134 = sphi 0, %s120
    %s138 = sphi 0, %s138
    %s140 = sphi 0, %s138
    %s141 = sphi 0, %s140
    %s155 = sphi 0, %s141
    %s159 = sphi 0, %s159
    %s161 = sphi 0, %s159
    %s162 = sphi 0, %s161
    %s176 = sphi 0, %s162
    %s180 = sphi 0, %s180
    %s182 = sphi 0, %s180
    %s183 = sphi 0, %s182
    %s197 = sphi 0, %s183
    %s201 = sphi 0, %s201
    %s203 = sphi 0, %s201
    %s204 = sphi 0, %s203
    %s218 = sphi 0, %s204
    %s224 = sphi 0, %s226
    %s227 = sphi 0, %s224
    %s228 = sphi 0, %s227
    %s244 = sphi 0, %s228
  $region4: #{encoder_forward.7} parent=0 // loop_header_branch
    %18 = sbr.rel (%p16) target = $region8
  $region5: #{encoder_forward.7} parent=0 // loop_body
    %s20 = ssub.s32 %s15, 1
    %s21 = ssub.s32 %s15, 2
    %s22 = sadd.s32 %s15, 1
    %s23 = ssub.s32 %s15, %s22
    %p24 = scmp.eq.s32.totalorder %s23, 0
    %s26 = sadd.s32 %s25, 1
    %s27 = scalar_select %p24, %s25, %s26
    %p30 = pneg %p24
    %p31 = scmp.eq.s32.totalorder %s15, 1
    %p32 = por %p30, %p31
    %p33 = scmp.ne.s32.totalorder %s25, %s28
    %p34 = scmp.eq.s32.totalorder %s15, 0
    %p35 = por %p33, %p34
    %p36 = scmp.ne.s32.totalorder %s25, %s28
    %p37 = scmp.eq.s32.totalorder %s20, 1
    %p38 = por %p36, %p37
    %p39 = scmp.ne.s32.totalorder %s28, %s29
    %p40 = scmp.eq.s32.totalorder %s20, 0
    %p41 = por %p39, %p40
    %p42 = scmp.ne.s32.totalorder %s28, %s29
    %p43 = scmp.eq.s32.totalorder %s21, 1
    %p44 = por %p42, %p43
    %p46 = scmp.ne.s32.totalorder %s29, %s45
    %p47 = scmp.eq.s32.totalorder %s21, 0
    %p48 = por %p46, %p47
    %s49 = ssub.s32 %s15, %s22
    %p50 = scmp.eq.s32.totalorder %s49, 0
    %s52 = sadd.s32 %s51, 1
    %s53 = scalar_select %p50, %s51, %s52
    %p56 = pneg %p50
    %p57 = scmp.eq.s32.totalorder %s15, 1
    %p58 = por %p56, %p57
    %p59 = scmp.ne.s32.totalorder %s51, %s54
    %p60 = scmp.eq.s32.totalorder %s15, 0
    %p61 = por %p59, %p60
    %p62 = scmp.ne.s32.totalorder %s51, %s54
    %p63 = scmp.eq.s32.totalorder %s20, 1
    %p64 = por %p62, %p63
    %p65 = scmp.ne.s32.totalorder %s54, %s55
    %p66 = scmp.eq.s32.totalorder %s20, 0
    %p67 = por %p65, %p66
    %p68 = scmp.ne.s32.totalorder %s54, %s55
    %p69 = scmp.eq.s32.totalorder %s21, 1
    %p70 = por %p68, %p69
    %p72 = scmp.ne.s32.totalorder %s55, %s71
    %p73 = scmp.eq.s32.totalorder %s21, 0
    %p74 = por %p72, %p73
    %s76 = sadd.s32 %s75, 1
    %p79 = scmp.eq.s32.totalorder %s15, 1
    %p80 = scmp.ne.s32.totalorder %s75, %s77
    %p81 = scmp.eq.s32.totalorder %s15, 0
    %p82 = por %p80, %p81
    %p83 = scmp.ne.s32.totalorder %s75, %s77
    %p84 = scmp.eq.s32.totalorder %s20, 1
    %p85 = por %p83, %p84
    %p86 = scmp.ne.s32.totalorder %s77, %s78
    %p87 = scmp.eq.s32.totalorder %s20, 0
    %p88 = por %p86, %p87
    %p89 = scmp.ne.s32.totalorder %s77, %s78
    %p90 = scmp.eq.s32.totalorder %s21, 1
    %p91 = por %p89, %p90
    %p93 = scmp.ne.s32.totalorder %s78, %s92
    %p94 = scmp.eq.s32.totalorder %s21, 0
    %p95 = por %p93, %p94
    %s97 = sadd.s32 %s96, 1
    %p100 = scmp.eq.s32.totalorder %s15, 1
    %p101 = scmp.ne.s32.totalorder %s96, %s98
    %p102 = scmp.eq.s32.totalorder %s15, 0
    %p103 = por %p101, %p102
    %p104 = scmp.ne.s32.totalorder %s96, %s98
    %p105 = scmp.eq.s32.totalorder %s20, 1
    %p106 = por %p104, %p105
    %p107 = scmp.ne.s32.totalorder %s98, %s99
    %p108 = scmp.eq.s32.totalorder %s20, 0
    %p109 = por %p107, %p108
    %p110 = scmp.ne.s32.totalorder %s98, %s99
    %p111 = scmp.eq.s32.totalorder %s21, 1
    %p112 = por %p110, %p111
    %p114 = scmp.ne.s32.totalorder %s99, %s113
    %p115 = scmp.eq.s32.totalorder %s21, 0
    %p116 = por %p114, %p115
    %s118 = sadd.s32 %s117, 1
    %p121 = scmp.eq.s32.totalorder %s15, 1
    %p122 = scmp.ne.s32.totalorder %s117, %s119
    %p123 = scmp.eq.s32.totalorder %s15, 0
    %p124 = por %p122, %p123
    %p125 = scmp.ne.s32.totalorder %s117, %s119
    %p126 = scmp.eq.s32.totalorder %s20, 1
    %p127 = por %p125, %p126
    %p128 = scmp.ne.s32.totalorder %s119, %s120
    %p129 = scmp.eq.s32.totalorder %s20, 0
    %p130 = por %p128, %p129
    %p131 = scmp.ne.s32.totalorder %s119, %s120
    %p132 = scmp.eq.s32.totalorder %s21, 1
    %p133 = por %p131, %p132
    %p135 = scmp.ne.s32.totalorder %s120, %s134
    %p136 = scmp.eq.s32.totalorder %s21, 0
    %p137 = por %p135, %p136
    %s139 = sadd.s32 %s138, 1
    %p142 = scmp.eq.s32.totalorder %s15, 1
    %p143 = scmp.ne.s32.totalorder %s138, %s140
    %p144 = scmp.eq.s32.totalorder %s15, 0
    %p145 = por %p143, %p144
    %p146 = scmp.ne.s32.totalorder %s138, %s140
    %p147 = scmp.eq.s32.totalorder %s20, 1
    %p148 = por %p146, %p147
    %p149 = scmp.ne.s32.totalorder %s140, %s141
    %p150 = scmp.eq.s32.totalorder %s20, 0
    %p151 = por %p149, %p150
    %p152 = scmp.ne.s32.totalorder %s140, %s141
    %p153 = scmp.eq.s32.totalorder %s21, 1
    %p154 = por %p152, %p153
    %p156 = scmp.ne.s32.totalorder %s141, %s155
    %p157 = scmp.eq.s32.totalorder %s21, 0
    %p158 = por %p156, %p157
    %s160 = sadd.s32 %s159, 1
    %p163 = scmp.eq.s32.totalorder %s15, 1
    %p164 = scmp.ne.s32.totalorder %s159, %s161
    %p165 = scmp.eq.s32.totalorder %s15, 0
    %p166 = por %p164, %p165
    %p167 = scmp.ne.s32.totalorder %s159, %s161
    %p168 = scmp.eq.s32.totalorder %s20, 1
    %p169 = por %p167, %p168
    %p170 = scmp.ne.s32.totalorder %s161, %s162
    %p171 = scmp.eq.s32.totalorder %s20, 0
    %p172 = por %p170, %p171
    %p173 = scmp.ne.s32.totalorder %s161, %s162
    %p174 = scmp.eq.s32.totalorder %s21, 1
    %p175 = por %p173, %p174
    %p177 = scmp.ne.s32.totalorder %s162, %s176
    %p178 = scmp.eq.s32.totalorder %s21, 0
    %p179 = por %p177, %p178
    %s181 = sadd.s32 %s180, 1
    %p184 = scmp.eq.s32.totalorder %s15, 1
    %p185 = scmp.ne.s32.totalorder %s180, %s182
    %p186 = scmp.eq.s32.totalorder %s15, 0
    %p187 = por %p185, %p186
    %p188 = scmp.ne.s32.totalorder %s180, %s182
    %p189 = scmp.eq.s32.totalorder %s20, 1
    %p190 = por %p188, %p189
    %p191 = scmp.ne.s32.totalorder %s182, %s183
    %p192 = scmp.eq.s32.totalorder %s20, 0
    %p193 = por %p191, %p192
    %p194 = scmp.ne.s32.totalorder %s182, %s183
    %p195 = scmp.eq.s32.totalorder %s21, 1
    %p196 = por %p194, %p195
    %p198 = scmp.ne.s32.totalorder %s183, %s197
    %p199 = scmp.eq.s32.totalorder %s21, 0
    %p200 = por %p198, %p199
    %s202 = sadd.s32 %s201, 1
    %p205 = scmp.eq.s32.totalorder %s15, 1
    %p206 = scmp.ne.s32.totalorder %s201, %s203
    %p207 = scmp.eq.s32.totalorder %s15, 0
    %p208 = por %p206, %p207
    %p209 = scmp.ne.s32.totalorder %s201, %s203
    %p210 = scmp.eq.s32.totalorder %s20, 1
    %p211 = por %p209, %p210
    %p212 = scmp.ne.s32.totalorder %s203, %s204
    %p213 = scmp.eq.s32.totalorder %s20, 0
    %p214 = por %p212, %p213
    %p215 = scmp.ne.s32.totalorder %s203, %s204
    %p216 = scmp.eq.s32.totalorder %s21, 1
    %p217 = por %p215, %p216
    %p219 = scmp.ne.s32.totalorder %s204, %s218
    %p220 = scmp.eq.s32.totalorder %s21, 0
    %p221 = por %p219, %p220
    %s222 = ssub.s32 %s15, %s22
    %p223 = scmp.eq.s32.totalorder %s222, 0
    %s225 = sadd.s32 %s224, 1
    %s226 = scalar_select %p223, %s224, %s225
    %p229 = pneg %p223
    %p230 = scmp.eq.s32.totalorder %s15, 1
    %p231 = por %p229, %p230
    %p232 = scmp.ne.s32.totalorder %s224, %s227
    %p233 = scmp.eq.s32.totalorder %s15, 0
    %p234 = por %p232, %p233
    %p235 = scmp.ne.s32.totalorder %s224, %s227
    %p236 = scmp.eq.s32.totalorder %s20, 1
    %p237 = por %p235, %p236
    %p238 = scmp.ne.s32.totalorder %s227, %s228
    %p239 = scmp.eq.s32.totalorder %s20, 0
    %p240 = por %p238, %p239
    %p241 = scmp.ne.s32.totalorder %s227, %s228
    %p242 = scmp.eq.s32.totalorder %s21, 1
    %p243 = por %p241, %p242
    %p245 = scmp.ne.s32.totalorder %s228, %s244
    %p246 = scmp.eq.s32.totalorder %s21, 0
    %p247 = por %p245, %p246
    %p248 = scmp.le.s32.totalorder 1, %s15
    %p249 = scmp.lt.s32.totalorder %s15, 3
    %p250 = pnand %p248, %p249
    %p251 = pneg %p250
    // Predicated region
    $region9: #{encoder_forward.7} parent=5 // pred_check
      _
    $region10: #{encoder_forward.7} parent=5 // pred_check_branch
      %253 = sbr.rel (%p250) target = $region12
    $region11: #{encoder_forward.7} parent=5 // pred_region
      %s254 = ssub.s32 %s15, 1
      // Predicated region
      $region13: #{encoder_forward.7} parent=11 // pred_check
        %p255 = pneg %p88
      $region14: #{encoder_forward.7} parent=11 // pred_check_branch
        %257 = sbr.rel (%p255) target = $region16
      $region15: #{encoder_forward.7} parent=11 // pred_region
        _
      $region16: #{encoder_forward.7} parent=11 // pred_fallthru
        _
      // Predicated region
      $region17: #{encoder_forward.7} parent=11 // pred_check
        %p258 = pneg %p109
      $region18: #{encoder_forward.7} parent=11 // pred_check_branch
        %260 = sbr.rel (%p258) target = $region20
      $region19: #{encoder_forward.7} parent=11 // pred_region
        _
      $region20: #{encoder_forward.7} parent=11 // pred_fallthru
        _
      // Predicated region
      $region21: #{encoder_forward.7} parent=11 // pred_check
        %p261 = pneg %p130
      $region22: #{encoder_forward.7} parent=11 // pred_check_branch
        %263 = sbr.rel (%p261) target = $region24
      $region23: #{encoder_forward.7} parent=11 // pred_region
        _
      $region24: #{encoder_forward.7} parent=11 // pred_fallthru
        _
      // Predicated region
      $region25: #{encoder_forward.7} parent=11 // pred_check
        %p264 = pneg %p151
      $region26: #{encoder_forward.7} parent=11 // pred_check_branch
        %266 = sbr.rel (%p264) target = $region28
      $region27: #{encoder_forward.7} parent=11 // pred_region
        _
      $region28: #{encoder_forward.7} parent=11 // pred_fallthru
        _
      // Predicated region
      $region29: #{encoder_forward.7} parent=11 // pred_check
        %p267 = pneg %p172
      $region30: #{encoder_forward.7} parent=11 // pred_check_branch
        %269 = sbr.rel (%p267) target = $region32
      $region31: #{encoder_forward.7} parent=11 // pred_region
        _
      $region32: #{encoder_forward.7} parent=11 // pred_fallthru
        _
      // Predicated region
      $region33: #{encoder_forward.7} parent=11 // pred_check
        %p270 = pneg %p193
      $region34: #{encoder_forward.7} parent=11 // pred_check_branch
        %272 = sbr.rel (%p270) target = $region36
      $region35: #{encoder_forward.7} parent=11 // pred_region
        _
      $region36: #{encoder_forward.7} parent=11 // pred_fallthru
        _
      // Predicated region
      $region37: #{encoder_forward.7} parent=11 // pred_check
        %p273 = pneg %p214
      $region38: #{encoder_forward.7} parent=11 // pred_check_branch
        %275 = sbr.rel (%p273) target = $region40
      $region39: #{encoder_forward.7} parent=11 // pred_region
        _
      $region40: #{encoder_forward.7} parent=11 // pred_fallthru
        _
    $region12: #{encoder_forward.7} parent=5 // pred_fallthru
      _
    %p276 = scmp.lt.s32.totalorder %s15, 2
    // Predicated region
    $region41: #{encoder_forward.7} parent=5 // pred_check
      %p277 = pneg %p276
    $region42: #{encoder_forward.7} parent=5 // pred_check_branch
      %279 = sbr.rel (%p277) target = $region44
    $region43: #{encoder_forward.7} parent=5 // pred_region
      // Predicated region
      $region45: #{encoder_forward.7} parent=43 // pred_check
        %p280 = pneg %p35
      $region46: #{encoder_forward.7} parent=43 // pred_check_branch
        %282 = sbr.rel (%p280) target = $region48
      $region47: #{encoder_forward.7} parent=43 // pred_region
        %p283 = scmp.lt.s32.totalorder %s15, 1
        %s284 = scalar_select %p283, %s15, 1
        %s285 = smul.addr %s284, 8
        %s286 = scalar_lea.vmem %s0, %s285
      $region48: #{encoder_forward.7} parent=43 // pred_fallthru
        _
      // Predicated region
      $region49: #{encoder_forward.7} parent=43 // pred_check
        %p287 = pneg %p61
      $region50: #{encoder_forward.7} parent=43 // pred_check_branch
        %289 = sbr.rel (%p287) target = $region52
      $region51: #{encoder_forward.7} parent=43 // pred_region
        %p290 = scmp.lt.s32.totalorder %s15, 1
        %s291 = scalar_select %p290, %s15, 1
        %s292 = smul.addr %s291, 8
        %s293 = scalar_lea.vmem %s1, %s292
      $region52: #{encoder_forward.7} parent=43 // pred_fallthru
        _
    $region44: #{encoder_forward.7} parent=5 // pred_fallthru
      _
    %p294 = scmp.le.s32.totalorder 1, %s15
    %p295 = scmp.lt.s32.totalorder %s15, 3
    %p296 = pnand %p294, %p295
    %p297 = pneg %p296
    // Predicated region
    $region53: #{encoder_forward.7} parent=5 // pred_check
      _
    $region54: #{encoder_forward.7} parent=5 // pred_check_branch
      %299 = sbr.rel (%p296) target = $region56
    $region55: #{encoder_forward.7} parent=5 // pred_region
      %s300 = ssub.s32 %s15, 1
      %p301 = scmp.lt.s32.totalorder %s20, 1
      %s302 = scalar_select %p301, %s20, 1
      %s303 = smul.addr %s302, 8
      %s304 = scalar_lea.vmem %s0, %s303
      %p305 = pneg %p41
      %p306 = pneg %p38
      %p307 = scmp.lt.s32.totalorder %s20, 1
      %s308 = scalar_select %p307, %s20, 1
      %s309 = smul.addr %s308, 8
      %s310 = scalar_lea.vmem %s1, %s309
      %p311 = pneg %p67
      %p312 = pneg %p64
      %p313 = pneg %p88
      %p314 = pneg %p85
      %p315 = pneg %p109
      %p316 = pneg %p106
      %p317 = pneg %p130
      %p318 = pneg %p127
      %p319 = pneg %p151
      %p320 = pneg %p148
      %p321 = pneg %p172
      %p322 = pneg %p169
      %p323 = pneg %p193
      %p324 = pneg %p190
      %p325 = pneg %p214
      %p326 = pneg %p211
      %p327 = pneg %p240
      %p328 = pneg %p237
      %p329 = scmp.lt.s32.totalorder %s20, 1
      %s330 = scalar_select %p329, %s20, 1
      %s331 = smul.addr %s330, 8
      %s332 = scalar_lea.vmem %s9, %s331
      %p333 = scmp.lt.s32.totalorder %s20, 1
      %s334 = scalar_select %p333, %s20, 1
      %s335 = smul.addr %s334, 8
      %s336 = scalar_lea.vmem %s0, %s335
      %p337 = scmp.lt.s32.totalorder %s20, 1
      %s338 = scalar_select %p337, %s20, 1
      %s339 = smul.addr %s338, 8
      %s340 = scalar_lea.vmem %s1, %s339
      %p341 = scmp.lt.s32.totalorder %s20, 1
      %s342 = scalar_select %p341, %s20, 1
      %s343 = smul.addr %s342, 8
      %s344 = scalar_lea.vmem %s9, %s343
      %v346 = vld [vmem:[%s336] sm:$0xff]
      %v347 = vpack.c.bf16 %v346, %v346
      %v348 = vld [vmem:[%s340] sm:$0xff]
      %v349 = vpack.c.bf16 %v348, %v348
      %s350 = scalar_lea.vmem %s2, 8
      %v351 = vld [vmem:[%s350] sm:$0xf]
      %v352 = vld [vmem:[%s350 + $0x4] sm:$0xf]
      %s353 = scalar_lea.vmem %s2, 16
      %v354 = vld [vmem:[%s353] sm:$0xf]
      %v355 = vld [vmem:[%s353 + $0x4] sm:$0xf]
      %v358 = vunpack.c.l.b16 %v354
      %v359 = vunpack.c.l.b16 %v355
      %v360 = vpack.c.b16 %v359, %v358
      %vm362 = vcmask 130048
      %v364 = vsel %vm362, %v349, 0
      %366 = vmatprep.subr.bf16.mxu0 0
      %367 = vmatpush1.bf16.msra.mxu0 0
      %368 = vmatprep.subr.bf16.mxu0 0
      %369 = vmatpush1.bf16.msra.mxu0 0
      %370 = vmatprep.subr.bf16.mxu0 0
      %371 = vmatpush1.bf16.msra.mxu0 0
      %372 = vmatprep.subr.bf16.mxu0 0
      %373 = vmatpush1.bf16.msra.mxu0 0
      %374 = vmatprep.subr.bf16.mxu0 0
      %375 = vmatpush1.bf16.msra.mxu0 0
      %376 = vmatprep.subr.bf16.mxu0 0
      %377 = vmatpush1.bf16.msra.mxu0 0
      %378 = vmatprep.subr.bf16.mxu0 0
      %379 = vmatpush1.bf16.msra.mxu0 0
      %380 = vmatprep.subr.bf16.mxu0 0
      %381 = vmatpush1.bf16.msra.mxu0 %v360
      %382 = vmatprep.subr.bf16.mxu0 0
      %383 = vmatpush2.bf16.msra.mxu0 0
      %384 = vmatprep.subr.bf16.mxu0 0
      %385 = vmatpush2.bf16.msra.mxu0 0
      %386 = vmatprep.subr.bf16.mxu0 0
      %387 = vmatpush2.bf16.msra.mxu0 0
      %388 = vmatprep.subr.bf16.mxu0 0
      %389 = vmatpush2.bf16.msra.mxu0 0
      %390 = vmatprep.subr.bf16.mxu0 0
      %391 = vmatpush2.bf16.msra.mxu0 0
      %392 = vmatprep.subr.bf16.mxu0 0
      %393 = vmatpush2.bf16.msra.mxu0 0
      %394 = vmatprep.subr.bf16.mxu0 0
      %395 = vmatpush2.bf16.msra.mxu0 0
      %396 = vmatprep.subr.bf16.mxu0 0
      %397 = vmatpush2.bf16.msra.mxu0 0
      %398 = vmatprep.mubr.bf16.mxu0 0
      %399 = vmatmul.mubr.bf16.gmra.mxu0 %v364
      %v400 = vpop.f32.mrf.mxu0
      %v401 = vadd.f32 0.0, %v400
      %v402 = vpop.f32.mrf.mxu0
      %v403 = vpop.f32.mrf.mxu0
      %v404 = vpop.f32.mrf.mxu0
      %405 = vdwg.mxu0
      %v408 = vunpack.c.l.b16 %v351
      %v409 = vunpack.c.l.b16 %v352
      %v410 = vpack.c.b16 %v409, %v408
      %v413 = vsel %vm362, %v347, 0
      %415 = vmatprep.subr.bf16.mxu0 0
      %416 = vmatpush1.bf16.msra.mxu0 0
      %417 = vmatprep.subr.bf16.mxu0 0
      %418 = vmatpush1.bf16.msra.mxu0 0
      %419 = vmatprep.subr.bf16.mxu0 0
      %420 = vmatpush1.bf16.msra.mxu0 0
      %421 = vmatprep.subr.bf16.mxu0 0
      %422 = vmatpush1.bf16.msra.mxu0 0
      %423 = vmatprep.subr.bf16.mxu0 0
      %424 = vmatpush1.bf16.msra.mxu0 0
      %425 = vmatprep.subr.bf16.mxu0 0
      %426 = vmatpush1.bf16.msra.mxu0 0
      %427 = vmatprep.subr.bf16.mxu0 0
      %428 = vmatpush1.bf16.msra.mxu0 0
      %429 = vmatprep.subr.bf16.mxu0 0
      %430 = vmatpush1.bf16.msra.mxu0 %v410
      %431 = vmatprep.subr.bf16.mxu0 0
      %432 = vmatpush2.bf16.msra.mxu0 0
      %433 = vmatprep.subr.bf16.mxu0 0
      %434 = vmatpush2.bf16.msra.mxu0 0
      %435 = vmatprep.subr.bf16.mxu0 0
      %436 = vmatpush2.bf16.msra.mxu0 0
      %437 = vmatprep.subr.bf16.mxu0 0
      %438 = vmatpush2.bf16.msra.mxu0 0
      %439 = vmatprep.subr.bf16.mxu0 0
      %440 = vmatpush2.bf16.msra.mxu0 0
      %441 = vmatprep.subr.bf16.mxu0 0
      %442 = vmatpush2.bf16.msra.mxu0 0
      %443 = vmatprep.subr.bf16.mxu0 0
      %444 = vmatpush2.bf16.msra.mxu0 0
      %445 = vmatprep.subr.bf16.mxu0 0
      %446 = vmatpush2.bf16.msra.mxu0 0
      %447 = vmatprep.mubr.bf16.mxu0 0
      %448 = vmatmul.mubr.bf16.gmra.mxu0 %v413
      %v449 = vpop.f32.mrf.mxu0
      %v450 = vadd.f32 %v401, %v449
      %v451 = vpop.f32.mrf.mxu0
      %v452 = vpop.f32.mrf.mxu0
      %v453 = vpop.f32.mrf.mxu0
      %454 = vdwg.mxu0
      %v455 = vld [vmem:[%s2] sm:$0xf]
      %v456 = vld [vmem:[%s2 + $0x4] sm:$0xf]
      %v459 = vunpack.c.l.b16 %v455
      %v460 = vunpack.c.l.b16 %v456
      %v461 = vpack.c.b16 %v460, %v459
      %463 = vmatprep.subr.bf16.mxu0 0
      %464 = vmatpush1.bf16.msra.mxu0 0
      %465 = vmatprep.subr.bf16.mxu0 0
      %466 = vmatpush1.bf16.msra.mxu0 0
      %467 = vmatprep.subr.bf16.mxu0 0
      %468 = vmatpush1.bf16.msra.mxu0 0
      %469 = vmatprep.subr.bf16.mxu0 0
      %470 = vmatpush1.bf16.msra.mxu0 0
      %471 = vmatprep.subr.bf16.mxu0 0
      %472 = vmatpush1.bf16.msra.mxu0 0
      %473 = vmatprep.subr.bf16.mxu0 0
      %474 = vmatpush1.bf16.msra.mxu0 0
      %475 = vmatprep.subr.bf16.mxu0 0
      %476 = vmatpush1.bf16.msra.mxu0 0
      %477 = vmatprep.subr.bf16.mxu0 0
      %478 = vmatpush1.bf16.msra.mxu0 %v461
      %479 = vmatprep.subr.bf16.mxu0 0
      %480 = vmatpush2.bf16.msra.mxu0 0
      %481 = vmatprep.subr.bf16.mxu0 0
      %482 = vmatpush2.bf16.msra.mxu0 0
      %483 = vmatprep.subr.bf16.mxu0 0
      %484 = vmatpush2.bf16.msra.mxu0 0
      %485 = vmatprep.subr.bf16.mxu0 0
      %486 = vmatpush2.bf16.msra.mxu0 0
      %487 = vmatprep.subr.bf16.mxu0 0
      %488 = vmatpush2.bf16.msra.mxu0 0
      %489 = vmatprep.subr.bf16.mxu0 0
      %490 = vmatpush2.bf16.msra.mxu0 0
      %491 = vmatprep.subr.bf16.mxu0 0
      %492 = vmatpush2.bf16.msra.mxu0 0
      %493 = vmatprep.subr.bf16.mxu0 0
      %494 = vmatpush2.bf16.msra.mxu0 0
      %495 = vmatprep.mubr.bf16.mxu0 0
      %496 = vmatmul.mubr.bf16.gmra.mxu0 %v364
      %v497 = vpop.f32.mrf.mxu0
      %v498 = vadd.f32 0.0, %v497
      %v499 = vpop.f32.mrf.mxu0
      %v500 = vpop.f32.mrf.mxu0
      %v501 = vpop.f32.mrf.mxu0
      %502 = vdwg.mxu0
      %v503 = vlaneseq
      %v504 = vshrl.u32 %v503, 7
      %vm505 = vcmp.eq.s32.totalorder %v504, 0
      %v506 = vrot.slane %v498, 7
      %v507 = vsel %vm505, 0.0, %v506
      %v508 = vadd.f32 %v450, %v507
      %v509 = vld [vmem:[%s3] sm:$0x1]
      %v511 = vlaneseq
      %v512 = vshrl.u32 %v511, 7
      %v513 = vsub.s32 0, %v512
      %v514 = vrot.slane %v509, %v513
      %v516 = vadd.f32 %v508, %v514
      %v517 = vmax.f32 %v516, 0.0
      %v518 = vrot.slane %v517, 7
      %v519 = vsel %vm505, 0.0, %v518
      %vm520 = vcmp.eq.s32.totalorder %v504, 7
      %v521 = vrot.slane %v517, 1
      %v522 = vsel %vm520, 0.0, %v521
      %v523 = vpack.c.bf16 %v519, %v519
      %v524 = vld [vmem:[%s4] sm:$0xf]
      %v525 = vld [vmem:[%s4 + $0x4] sm:$0xf]
      %v526 = vld [vmem:[%s4 + $0x8] sm:$0xf]
      %v527 = vld [vmem:[%s4 + $0xc] sm:$0xf]
      %v528 = vpack.c.bf16 %v517, %v517
      %s529 = scalar_lea.vmem %s4, 16
      %v530 = vld [vmem:[%s529] sm:$0xf]
      %v531 = vld [vmem:[%s529 + $0x4] sm:$0xf]
      %v532 = vld [vmem:[%s529 + $0x8] sm:$0xf]
      %v533 = vld [vmem:[%s529 + $0xc] sm:$0xf]
      %v538 = vunpack.c.l.b16 %v530
      %v539 = vunpack.c.l.b16 %v531
      %v540 = vunpack.c.l.b16 %v532
      %v541 = vunpack.c.l.b16 %v533
      %v542 = vpack.c.b16 %v539, %v538
      %v543 = vpack.c.b16 %v541, %v540
      %vm546 = vcmask 261120
      %v548 = vsel %vm546, %v528, 0
      %550 = vmatprep.subr.bf16.mxu0 0
      %551 = vmatpush1.bf16.msra.mxu0 0
      %552 = vmatprep.subr.bf16.mxu0 0
      %553 = vmatpush1.bf16.msra.mxu0 0
      %554 = vmatprep.subr.bf16.mxu0 0
      %555 = vmatpush1.bf16.msra.mxu0 0
      %556 = vmatprep.subr.bf16.mxu0 0
      %557 = vmatpush1.bf16.msra.mxu0 0
      %558 = vmatprep.subr.bf16.mxu0 0
      %559 = vmatpush1.bf16.msra.mxu0 0
      %560 = vmatprep.subr.bf16.mxu0 0
      %561 = vmatpush1.bf16.msra.mxu0 0
      %562 = vmatprep.subr.bf16.mxu0 0
      %563 = vmatpush1.bf16.msra.mxu0 %v543
      %564 = vmatprep.subr.bf16.mxu0 0
      %565 = vmatpush1.bf16.msra.mxu0 %v542
      %566 = vmatprep.subr.bf16.mxu0 0
      %567 = vmatpush2.bf16.msra.mxu0 0
      %568 = vmatprep.subr.bf16.mxu0 0
      %569 = vmatpush2.bf16.msra.mxu0 0
      %570 = vmatprep.subr.bf16.mxu0 0
      %571 = vmatpush2.bf16.msra.mxu0 0
      %572 = vmatprep.subr.bf16.mxu0 0
      %573 = vmatpush2.bf16.msra.mxu0 0
      %574 = vmatprep.subr.bf16.mxu0 0
      %575 = vmatpush2.bf16.msra.mxu0 0
      %576 = vmatprep.subr.bf16.mxu0 0
      %577 = vmatpush2.bf16.msra.mxu0 0
      %578 = vmatprep.subr.bf16.mxu0 0
      %579 = vmatpush2.bf16.msra.mxu0 0
      %580 = vmatprep.subr.bf16.mxu0 0
      %581 = vmatpush2.bf16.msra.mxu0 0
      %582 = vmatprep.mubr.bf16.mxu0 0
      %583 = vmatmul.mubr.bf16.gmra.mxu0 %v548
      %v584 = vpop.f32.mrf.mxu0
      %v585 = vadd.f32 0.0, %v584
      %v586 = vpop.f32.mrf.mxu0
      %v587 = vpop.f32.mrf.mxu0
      %v588 = vpop.f32.mrf.mxu0
      %589 = vdwg.mxu0
      %v594 = vunpack.c.l.b16 %v524
      %v595 = vunpack.c.l.b16 %v525
      %v596 = vunpack.c.l.b16 %v526
      %v597 = vunpack.c.l.b16 %v527
      %v598 = vpack.c.b16 %v595, %v594
      %v599 = vpack.c.b16 %v597, %v596
      %v603 = vsel %vm546, %v523, 0
      %605 = vmatprep.subr.bf16.mxu0 0
      %606 = vmatpush1.bf16.msra.mxu0 0
      %607 = vmatprep.subr.bf16.mxu0 0
      %608 = vmatpush1.bf16.msra.mxu0 0
      %609 = vmatprep.subr.bf16.mxu0 0
      %610 = vmatpush1.bf16.msra.mxu0 0
      %611 = vmatprep.subr.bf16.mxu0 0
      %612 = vmatpush1.bf16.msra.mxu0 0
      %613 = vmatprep.subr.bf16.mxu0 0
      %614 = vmatpush1.bf16.msra.mxu0 0
      %615 = vmatprep.subr.bf16.mxu0 0
      %616 = vmatpush1.bf16.msra.mxu0 0
      %617 = vmatprep.subr.bf16.mxu0 0
      %618 = vmatpush1.bf16.msra.mxu0 %v599
      %619 = vmatprep.subr.bf16.mxu0 0
      %620 = vmatpush1.bf16.msra.mxu0 %v598
      %621 = vmatprep.subr.bf16.mxu0 0
      %622 = vmatpush2.bf16.msra.mxu0 0
      %623 = vmatprep.subr.bf16.mxu0 0
      %624 = vmatpush2.bf16.msra.mxu0 0
      %625 = vmatprep.subr.bf16.mxu0 0
      %626 = vmatpush2.bf16.msra.mxu0 0
      %627 = vmatprep.subr.bf16.mxu0 0
      %628 = vmatpush2.bf16.msra.mxu0 0
      %629 = vmatprep.subr.bf16.mxu0 0
      %630 = vmatpush2.bf16.msra.mxu0 0
      %631 = vmatprep.subr.bf16.mxu0 0
      %632 = vmatpush2.bf16.msra.mxu0 0
      %633 = vmatprep.subr.bf16.mxu0 0
      %634 = vmatpush2.bf16.msra.mxu0 0
      %635 = vmatprep.subr.bf16.mxu0 0
      %636 = vmatpush2.bf16.msra.mxu0 0
      %637 = vmatprep.mubr.bf16.mxu0 0
      %638 = vmatmul.mubr.bf16.gmra.mxu0 %v603
      %v639 = vpop.f32.mrf.mxu0
      %v640 = vadd.f32 %v585, %v639
      %v641 = vpop.f32.mrf.mxu0
      %v642 = vpop.f32.mrf.mxu0
      %v643 = vpop.f32.mrf.mxu0
      %644 = vdwg.mxu0
      %v645 = vpack.c.bf16 %v522, %v522
      %s646 = scalar_lea.vmem %s4, 32
      %v647 = vld [vmem:[%s646] sm:$0xf]
      %v648 = vld [vmem:[%s646 + $0x4] sm:$0xf]
      %v649 = vld [vmem:[%s646 + $0x8] sm:$0xf]
      %v650 = vld [vmem:[%s646 + $0xc] sm:$0xf]
      %v655 = vunpack.c.l.b16 %v647
      %v656 = vunpack.c.l.b16 %v648
      %v657 = vunpack.c.l.b16 %v649
      %v658 = vunpack.c.l.b16 %v650
      %v659 = vpack.c.b16 %v656, %v655
      %v660 = vpack.c.b16 %v658, %v657
      %v664 = vsel %vm546, %v645, 0
      %666 = vmatprep.subr.bf16.mxu0 0
      %667 = vmatpush1.bf16.msra.mxu0 0
      %668 = vmatprep.subr.bf16.mxu0 0
      %669 = vmatpush1.bf16.msra.mxu0 0
      %670 = vmatprep.subr.bf16.mxu0 0
      %671 = vmatpush1.bf16.msra.mxu0 0
      %672 = vmatprep.subr.bf16.mxu0 0
      %673 = vmatpush1.bf16.msra.mxu0 0
      %674 = vmatprep.subr.bf16.mxu0 0
      %675 = vmatpush1.bf16.msra.mxu0 0
      %676 = vmatprep.subr.bf16.mxu0 0
      %677 = vmatpush1.bf16.msra.mxu0 0
      %678 = vmatprep.subr.bf16.mxu0 0
      %679 = vmatpush1.bf16.msra.mxu0 %v660
      %680 = vmatprep.subr.bf16.mxu0 0
      %681 = vmatpush1.bf16.msra.mxu0 %v659
      %682 = vmatprep.subr.bf16.mxu0 0
      %683 = vmatpush2.bf16.msra.mxu0 0
      %684 = vmatprep.subr.bf16.mxu0 0
      %685 = vmatpush2.bf16.msra.mxu0 0
      %686 = vmatprep.subr.bf16.mxu0 0
      %687 = vmatpush2.bf16.msra.mxu0 0
      %688 = vmatprep.subr.bf16.mxu0 0
      %689 = vmatpush2.bf16.msra.mxu0 0
      %690 = vmatprep.subr.bf16.mxu0 0
      %691 = vmatpush2.bf16.msra.mxu0 0
      %692 = vmatprep.subr.bf16.mxu0 0
      %693 = vmatpush2.bf16.msra.mxu0 0
      %694 = vmatprep.subr.bf16.mxu0 0
      %695 = vmatpush2.bf16.msra.mxu0 0
      %696 = vmatprep.subr.bf16.mxu0 0
      %697 = vmatpush2.bf16.msra.mxu0 0
      %698 = vmatprep.mubr.bf16.mxu0 0
      %699 = vmatmul.mubr.bf16.gmra.mxu0 %v664
      %v700 = vpop.f32.mrf.mxu0
      %v701 = vadd.f32 0.0, %v700
      %v702 = vpop.f32.mrf.mxu0
      %v703 = vpop.f32.mrf.mxu0
      %v704 = vpop.f32.mrf.mxu0
      %705 = vdwg.mxu0
      %v706 = vadd.f32 %v640, %v701
      %v707 = vld [vmem:[%s5] sm:$0x1]
      %v709 = vlaneseq
      %v710 = vshrl.u32 %v709, 7
      %v711 = vsub.s32 0, %v710
      %v712 = vrot.slane %v707, %v711
      %v714 = vadd.f32 %v706, %v712
      %v715 = vld [vmem:[%s6] sm:$0xf]
      %v716 = vld [vmem:[%s6 + $0x4] sm:$0xf]
      %v717 = vld [vmem:[%s7] sm:$0x1]
      %v719 = vlaneseq
      %v720 = vshrl.u32 %v719, 7
      %v721 = vsub.s32 0, %v720
      %v722 = vrot.slane %v717, %v721
      %v726 = vunpack.c.l.b16 %v715
      %v727 = vunpack.c.l.b16 %v716
      %v728 = vpack.c.b16 %v727, %v726
      %730 = vmatprep.subr.bf16.mxu0 0
      %731 = vmatpush1.bf16.msra.mxu0 0
      %732 = vmatprep.subr.bf16.mxu0 0
      %733 = vmatpush1.bf16.msra.mxu0 0
      %734 = vmatprep.subr.bf16.mxu0 0
      %735 = vmatpush1.bf16.msra.mxu0 0
      %736 = vmatprep.subr.bf16.mxu0 0
      %737 = vmatpush1.bf16.msra.mxu0 0
      %738 = vmatprep.subr.bf16.mxu0 0
      %739 = vmatpush1.bf16.msra.mxu0 0
      %740 = vmatprep.subr.bf16.mxu0 0
      %741 = vmatpush1.bf16.msra.mxu0 0
      %742 = vmatprep.subr.bf16.mxu0 0
      %743 = vmatpush1.bf16.msra.mxu0 0
      %744 = vmatprep.subr.bf16.mxu0 0
      %745 = vmatpush1.bf16.msra.mxu0 %v728
      %746 = vmatprep.subr.bf16.mxu0 0
      %747 = vmatpush2.bf16.msra.mxu0 0
      %748 = vmatprep.subr.bf16.mxu0 0
      %749 = vmatpush2.bf16.msra.mxu0 0
      %750 = vmatprep.subr.bf16.mxu0 0
      %751 = vmatpush2.bf16.msra.mxu0 0
      %752 = vmatprep.subr.bf16.mxu0 0
      %753 = vmatpush2.bf16.msra.mxu0 0
      %754 = vmatprep.subr.bf16.mxu0 0
      %755 = vmatpush2.bf16.msra.mxu0 0
      %756 = vmatprep.subr.bf16.mxu0 0
      %757 = vmatpush2.bf16.msra.mxu0 0
      %758 = vmatprep.subr.bf16.mxu0 0
      %759 = vmatpush2.bf16.msra.mxu0 0
      %760 = vmatprep.subr.bf16.mxu0 0
      %761 = vmatpush2.bf16.msra.mxu0 0
      %762 = vmatprep.mubr.bf16.mxu0 0
      %763 = vmatmul.mubr.bf16.gmra.mxu0 %v413
      %v764 = vpop.f32.mrf.mxu0
      %v765 = vadd.f32 %v722, %v764
      %v766 = vpop.f32.mrf.mxu0
      %v767 = vpop.f32.mrf.mxu0
      %v768 = vpop.f32.mrf.mxu0
      %769 = vdwg.mxu0
      %v770 = vadd.f32 %v714, %v765
      %v771 = vmax.f32 %v770, 0.0
      %v772 = vld [vmem:[%s8] sm:$0xff]
      %v773 = vadd.f32 %v771, %v772
      %774 = vst.msk [vmem:[%s344] sm:$0xff] %vm546, %v773
      %p775 = scmp.lt.s32.totalorder %s20, 1
      %s776 = scalar_select %p775, %s20, 1
      %s777 = smul.addr %s776, 8
      %s778 = scalar_lea.vmem %s9, %s777
      // Predicated region
      $region57: #{encoder_forward.7} parent=55 // pred_check
        %p779 = pneg %p237
      $region58: #{encoder_forward.7} parent=55 // pred_check_branch
        %781 = sbr.rel (%p779) target = $region60
      $region59: #{encoder_forward.7} parent=55 // pred_region
        _
      $region60: #{encoder_forward.7} parent=55 // pred_fallthru
        _
    $region56: #{encoder_forward.7} parent=5 // pred_fallthru
      _
    %p782 = scmp.le.s32.totalorder 2, %s15
    // Predicated region
    $region61: #{encoder_forward.7} parent=5 // pred_check
      %p783 = pneg %p782
    $region62: #{encoder_forward.7} parent=5 // pred_check_branch
      %785 = sbr.rel (%p783) target = $region64
    $region63: #{encoder_forward.7} parent=5 // pred_region
      %s786 = ssub.s32 %s15, 2
      // Predicated region
      $region65: #{encoder_forward.7} parent=63 // pred_check
        %p787 = pneg %p243
      $region66: #{encoder_forward.7} parent=63 // pred_check_branch
        %789 = sbr.rel (%p787) target = $region68
      $region67: #{encoder_forward.7} parent=63 // pred_region
        %p790 = scmp.lt.s32.totalorder %s21, 1
        %s791 = scalar_select %p790, %s21, 1
        %s792 = smul.addr %s791, 8
        %s793 = scalar_lea.vmem %s9, %s792
      $region68: #{encoder_forward.7} parent=63 // pred_fallthru
        _
    $region64: #{encoder_forward.7} parent=5 // pred_fallthru
      _
  $region6: #{encoder_forward.7} parent=0 // loop_footer
    %s19 = sadd.s32 1, %s15
  $region7: #{encoder_forward.7} parent=0 // loop_footer_branch
    %14 = sbr.rel target = $region3
  $region8: #{encoder_forward.7} parent=0 // loop_exit
    _

// kernel: encoder_forward.10
$region0: #{encoder_forward.10}
  #allocation0 [shape = 'u32[]', space=smem, size = 0x4, offset = 0x4, fixed_abs, tag = 'smem constant byte address 0x4 - core index']
  #allocation1 [shape = 'u32[144,128]{1,0:T(1,128)}', space=vmem, size = 0x12000, scoped, tag = 'internal scratch']
  %s0 = inlined_call_operand.vmem [shape: f32[16,32], index: 0, kind: input, shape index: {}]
  %s1 = inlined_call_operand.vmem [shape: bf16[32,64], index: 1, kind: input, shape index: {}]
  %s2 = inlined_call_operand.vmem [shape: f32[1,64], index: 2, kind: input, shape index: {}]
  %s3 = inlined_call_operand.vmem [shape: bf16[64,32], index: 3, kind: input, shape index: {}]
  %s4 = inlined_call_operand.vmem [shape: f32[1,32], index: 4, kind: input, shape index: {}]
  %s5 = inlined_call_operand.vmem [shape: f32[1,32], index: 5, kind: input, shape index: {}]
  %s6 = inlined_call_operand.vmem [shape: f32[1,32], index: 6, kind: input, shape index: {}]
  %s7 = inlined_call_operand.vmem [shape: f32[16,32], index: 7, kind: output, shape index: {}]
  %s8 = sld [smem:[#allocation0]]
  $region38: #{encoder_forward.10} parent=0
    _
  %s10 = ssub.s32 1, %s8
  %s11 = scalar_select 0, %s10, %s8
  // Predicated region
  $region2: #{encoder_forward.10} parent=0 // pred_check
    _
  $region3: #{encoder_forward.10} parent=0 // pred_check_branch
    %13 = sbr.rel (0) target = $region5
  $region4: #{encoder_forward.10} parent=0 // pred_region
    _
  $region5: #{encoder_forward.10} parent=0 // pred_fallthru
    _
  // Predicated region
  $region6: #{encoder_forward.10} parent=0 // pred_check
    _
  $region7: #{encoder_forward.10} parent=0 // pred_check_branch
    %15 = sbr.rel (0) target = $region9
  $region8: #{encoder_forward.10} parent=0 // pred_region
    _
  $region9: #{encoder_forward.10} parent=0 // pred_fallthru
    _
  // Predicated region
  $region10: #{encoder_forward.10} parent=0 // pred_check
    _
  $region11: #{encoder_forward.10} parent=0 // pred_check_branch
    %17 = sbr.rel (0) target = $region13
  $region12: #{encoder_forward.10} parent=0 // pred_region
    _
  $region13: #{encoder_forward.10} parent=0 // pred_fallthru
    _
  // Predicated region
  $region14: #{encoder_forward.10} parent=0 // pred_check
    _
  $region15: #{encoder_forward.10} parent=0 // pred_check_branch
    %19 = sbr.rel (0) target = $region17
  $region16: #{encoder_forward.10} parent=0 // pred_region
    _
  $region17: #{encoder_forward.10} parent=0 // pred_fallthru
    _
  // Predicated region
  $region18: #{encoder_forward.10} parent=0 // pred_check
    _
  $region19: #{encoder_forward.10} parent=0 // pred_check_branch
    %21 = sbr.rel (0) target = $region21
  $region20: #{encoder_forward.10} parent=0 // pred_region
    _
  $region21: #{encoder_forward.10} parent=0 // pred_fallthru
    _
  // Predicated region
  $region22: #{encoder_forward.10} parent=0 // pred_check
    _
  $region23: #{encoder_forward.10} parent=0 // pred_check_branch
    %23 = sbr.rel (0) target = $region25
  $region24: #{encoder_forward.10} parent=0 // pred_region
    _
  $region25: #{encoder_forward.10} parent=0 // pred_fallthru
    _
  // Predicated region
  $region26: #{encoder_forward.10} parent=0 // pred_check
    _
  $region27: #{encoder_forward.10} parent=0 // pred_check_branch
    %25 = sbr.rel (0) target = $region29
  $region28: #{encoder_forward.10} parent=0 // pred_region
    _
  $region29: #{encoder_forward.10} parent=0 // pred_fallthru
    _
  %v27 = vld [vmem:[%s0] sm:$0xff]
  %v28 = vld [vmem:[%s0 + $0x8] sm:$0xff]
  %v29 = vpack.c.bf16 %v28, %v27
  %v30 = vld [vmem:[%s1] sm:$0xf]
  %v31 = vld [vmem:[%s1 + $0x4] sm:$0xf]
  %v32 = vld [vmem:[%s1 + $0x8] sm:$0xf]
  %v33 = vld [vmem:[%s1 + $0xc] sm:$0xf]
  %v34 = vld [vmem:[%s2] sm:$0x1]
  %v36 = vlaneseq
  %v37 = vshrl.u32 %v36, 7
  %v38 = vsub.s32 0, %v37
  %v39 = vrot.slane %v34, %v38
  %v45 = vunpack.c.l.b16 %v30
  %v46 = vunpack.c.l.b16 %v31
  %v47 = vunpack.c.l.b16 %v32
  %v48 = vunpack.c.l.b16 %v33
  %v49 = vpack.c.b16 %v46, %v45
  %v50 = vpack.c.b16 %v48, %v47
  %vm53 = vcmask 261120
  %v55 = vsel %vm53, %v29, 0
  %57 = vmatprep.subr.bf16.mxu0 0
  %58 = vmatpush1.bf16.msra.mxu0 0
  %59 = vmatprep.subr.bf16.mxu0 0
  %60 = vmatpush1.bf16.msra.mxu0 0
  %61 = vmatprep.subr.bf16.mxu0 0
  %62 = vmatpush1.bf16.msra.mxu0 0
  %63 = vmatprep.subr.bf16.mxu0 0
  %64 = vmatpush1.bf16.msra.mxu0 0
  %65 = vmatprep.subr.bf16.mxu0 0
  %66 = vmatpush1.bf16.msra.mxu0 0
  %67 = vmatprep.subr.bf16.mxu0 0
  %68 = vmatpush1.bf16.msra.mxu0 0
  %69 = vmatprep.subr.bf16.mxu0 0
  %70 = vmatpush1.bf16.msra.mxu0 %v50
  %71 = vmatprep.subr.bf16.mxu0 0
  %72 = vmatpush1.bf16.msra.mxu0 %v49
  %73 = vmatprep.subr.bf16.mxu0 0
  %74 = vmatpush2.bf16.msra.mxu0 0
  %75 = vmatprep.subr.bf16.mxu0 0
  %76 = vmatpush2.bf16.msra.mxu0 0
  %77 = vmatprep.subr.bf16.mxu0 0
  %78 = vmatpush2.bf16.msra.mxu0 0
  %79 = vmatprep.subr.bf16.mxu0 0
  %80 = vmatpush2.bf16.msra.mxu0 0
  %81 = vmatprep.subr.bf16.mxu0 0
  %82 = vmatpush2.bf16.msra.mxu0 0
  %83 = vmatprep.subr.bf16.mxu0 0
  %84 = vmatpush2.bf16.msra.mxu0 0
  %85 = vmatprep.subr.bf16.mxu0 0
  %86 = vmatpush2.bf16.msra.mxu0 0
  %87 = vmatprep.subr.bf16.mxu0 0
  %88 = vmatpush2.bf16.msra.mxu0 0
  %89 = vmatprep.mubr.bf16.mxu0 0
  %90 = vmatmul.mubr.bf16.gmra.mxu0 %v55
  %v91 = vpop.f32.mrf.mxu0
  %v92 = vadd.f32 %v39, %v91
  %v93 = vpop.f32.mrf.mxu0
  %v94 = vpop.f32.mrf.mxu0
  %v95 = vadd.f32 %v39, %v94
  %v96 = vpop.f32.mrf.mxu0
  %97 = vdwg.mxu0
  %v98 = vmax.f32 %v92, 0.0
  %v99 = vmax.f32 %v95, 0.0
  %v100 = vpack.c.bf16 %v99, %v98
  %v101 = vld [vmem:[%s3] sm:$0xf]
  %v102 = vld [vmem:[%s3 + $0x4] sm:$0xf]
  %v103 = vld [vmem:[%s3 + $0x8] sm:$0xf]
  %v104 = vld [vmem:[%s3 + $0xc] sm:$0xf]
  %v105 = vld [vmem:[%s3 + $0x10] sm:$0xf]
  %v106 = vld [vmem:[%s3 + $0x14] sm:$0xf]
  %v107 = vld [vmem:[%s3 + $0x18] sm:$0xf]
  %v108 = vld [vmem:[%s3 + $0x1c] sm:$0xf]
  %v109 = vld [vmem:[%s4] sm:$0x1]
  %v111 = vlaneseq
  %v112 = vshrl.u32 %v111, 7
  %v113 = vsub.s32 0, %v112
  %v114 = vrot.slane %v109, %v113
  %v124 = vunpack.c.l.b16 %v101
  %v125 = vunpack.c.l.b16 %v102
  %v126 = vunpack.c.l.b16 %v103
  %v127 = vunpack.c.l.b16 %v104
  %v128 = vunpack.c.l.b16 %v105
  %v129 = vunpack.c.l.b16 %v106
  %v130 = vunpack.c.l.b16 %v107
  %v131 = vunpack.c.l.b16 %v108
  %v132 = vpack.c.b16 %v125, %v124
  %v133 = vpack.c.b16 %v127, %v126
  %v134 = vpack.c.b16 %v129, %v128
  %v135 = vpack.c.b16 %v131, %v130
  %vm140 = vcmask 523264
  %v142 = vsel %vm140, %v100, 0
  %144 = vmatprep.subr.bf16.mxu0 0
  %145 = vmatpush1.bf16.msra.mxu0 0
  %146 = vmatprep.subr.bf16.mxu0 0
  %147 = vmatpush1.bf16.msra.mxu0 0
  %148 = vmatprep.subr.bf16.mxu0 0
  %149 = vmatpush1.bf16.msra.mxu0 0
  %150 = vmatprep.subr.bf16.mxu0 0
  %151 = vmatpush1.bf16.msra.mxu0 0
  %152 = vmatprep.subr.bf16.mxu0 0
  %153 = vmatpush1.bf16.msra.mxu0 %v135
  %154 = vmatprep.subr.bf16.mxu0 0
  %155 = vmatpush1.bf16.msra.mxu0 %v134
  %156 = vmatprep.subr.bf16.mxu0 0
  %157 = vmatpush1.bf16.msra.mxu0 %v133
  %158 = vmatprep.subr.bf16.mxu0 0
  %159 = vmatpush1.bf16.msra.mxu0 %v132
  %160 = vmatprep.subr.bf16.mxu0 0
  %161 = vmatpush2.bf16.msra.mxu0 0
  %162 = vmatprep.subr.bf16.mxu0 0
  %163 = vmatpush2.bf16.msra.mxu0 0
  %164 = vmatprep.subr.bf16.mxu0 0
  %165 = vmatpush2.bf16.msra.mxu0 0
  %166 = vmatprep.subr.bf16.mxu0 0
  %167 = vmatpush2.bf16.msra.mxu0 0
  %168 = vmatprep.subr.bf16.mxu0 0
  %169 = vmatpush2.bf16.msra.mxu0 0
  %170 = vmatprep.subr.bf16.mxu0 0
  %171 = vmatpush2.bf16.msra.mxu0 0
  %172 = vmatprep.subr.bf16.mxu0 0
  %173 = vmatpush2.bf16.msra.mxu0 0
  %174 = vmatprep.subr.bf16.mxu0 0
  %175 = vmatpush2.bf16.msra.mxu0 0
  %176 = vmatprep.mubr.bf16.mxu0 0
  %177 = vmatmul.mubr.bf16.gmra.mxu0 %v142
  %v178 = vpop.f32.mrf.mxu0
  %v179 = vadd.f32 %v114, %v178
  %v180 = vpop.f32.mrf.mxu0
  %v181 = vpop.f32.mrf.mxu0
  %v182 = vadd.f32 %v114, %v181
  %v183 = vpop.f32.mrf.mxu0
  %184 = vdwg.mxu0
  %v185 = vadd.f32 %v179, %v27
  %v186 = vadd.f32 %v182, %v28
  %v187 = vsel %vm53, %v185, 0.0
  %188 = vadd.xlane.f32.xlu0 %v187
  %v189 = vpop.xlane.xlu0 %188
  %v190 = vsel %vm53, %v186, 0.0
  %191 = vadd.xlane.f32.xlu0 %v190
  %v192 = vpop.xlane.xlu0 %191
  %v193 = vrcp.pop 32.0
  %v194 = vmul.f32 %v189, %v193
  %v195 = vmul.f32 %v192, %v193
  %v196 = vsub.f32 %v185, %v194
  %v197 = vsub.f32 %v186, %v195
  %v198 = vmul.f32 %v196, %v196
  %v199 = vmul.f32 %v197, %v197
  %v200 = vsel %vm53, %v198, 0.0
  %201 = vadd.xlane.f32.xlu0 %v200
  %v202 = vpop.xlane.xlu0 %201
  %v203 = vsel %vm53, %v199, 0.0
  %204 = vadd.xlane.f32.xlu0 %v203
  %v205 = vpop.xlane.xlu0 %204
  %v206 = vmul.f32 %v202, %v193
  %v207 = vmul.f32 %v205, %v193
  %v208 = vadd.f32 %v206, 1e-05
  %v209 = vadd.f32 %v207, 1e-05
  %v210 = vrsqrt.pop %v208
  %v211 = vrsqrt.pop %v209
  %v212 = vmul.f32 %v196, %v210
  %v213 = vmul.f32 %v197, %v211
  %v214 = vld [vmem:[%s5] sm:$0x1]
  %v216 = vlaneseq
  %v217 = vshrl.u32 %v216, 7
  %v218 = vsub.s32 0, %v217
  %v219 = vrot.slane %v214, %v218
  %v221 = vmul.f32 %v212, %v219
  %v222 = vmul.f32 %v213, %v219
  %v223 = vld [vmem:[%s6] sm:$0x1]
  %v225 = vlaneseq
  %v226 = vshrl.u32 %v225, 7
  %v227 = vsub.s32 0, %v226
  %v228 = vrot.slane %v223, %v227
  %v230 = vadd.f32 %v221, %v228
  %v231 = vadd.f32 %v222, %v228
  %232 = vst.msk [vmem:[%s7] sm:$0xff] %vm53, %v230
  %233 = vst.msk [vmem:[%s7 + $0x8] sm:$0xff] %vm53, %v231
  // Predicated region
  $region30: #{encoder_forward.10} parent=0 // pred_check
    _
  $region31: #{encoder_forward.10} parent=0 // pred_check_branch
    %235 = sbr.rel (0) target = $region33
  $region32: #{encoder_forward.10} parent=0 // pred_region
    _
  $region33: #{encoder_forward.10} parent=0 // pred_fallthru
    _
  // Predicated region
  $region34: #{encoder_forward.10} parent=0 // pred_check
    _
  $region35: #{encoder_forward.10} parent=0 // pred_check_branch
    %237 = sbr.rel (0) target = $region37
  $region36: #{encoder_forward.10} parent=0 // pred_region
    _
  $region37: #{encoder_forward.10} parent=0 // pred_fallthru
    _

// kernel: encoder_forward.9
$region0: #{encoder_forward.9}
  #allocation0 [shape = 'u32[]', space=smem, size = 0x4, offset = 0x4, fixed_abs, tag = 'smem constant byte address 0x4 - core index']
  #allocation1 [shape = 'u32[144,128]{1,0:T(1,128)}', space=vmem, size = 0x12000, scoped, tag = 'internal scratch']
  %s0 = inlined_call_operand.vmem [shape: bf16[2,4,8,8], index: 0, kind: input, shape index: {}]
  %s1 = inlined_call_operand.vmem [shape: bf16[2,4,8,8], index: 1, kind: input, shape index: {}]
  %s2 = inlined_call_operand.vmem [shape: bf16[2,4,8,8], index: 2, kind: input, shape index: {}]
  %s3 = inlined_call_operand.vmem [shape: f32[2,8,32], index: 3, kind: input, shape index: {}]
  %s4 = inlined_call_operand.vmem [shape: bf16[4,8,32], index: 4, kind: input, shape index: {}]
  %s5 = inlined_call_operand.vmem [shape: f32[1,32], index: 5, kind: input, shape index: {}]
  %s6 = inlined_call_operand.vmem [shape: f32[1,32], index: 6, kind: input, shape index: {}]
  %s7 = inlined_call_operand.vmem [shape: f32[1,32], index: 7, kind: input, shape index: {}]
  %s8 = inlined_call_operand.vmem [shape: f32[2,8,32], index: 8, kind: output, shape index: {}]
  %s9 = sld [smem:[#allocation0]]
  $region65: #{encoder_forward.9} parent=0
    _
  %s11 = ssub.s32 1, %s9
  %s12 = scalar_select 0, %s11, %s9
  loop: start=0, step=1, limit=4
  $region2: #{encoder_forward.9} parent=0 // loop_pre_header
    _
  $region3: #{encoder_forward.9} parent=0 // loop_header
    %s14 = sphi 0, %s18
    %p15 = scmp.ge.s32.totalorder %s14, 4
    %s24 = sphi 0, %s26
    %s27 = sphi 0, %s24
    %s28 = sphi 0, %s27
    %s44 = sphi 0, %s28
    %s50 = sphi 0, %s52
    %s53 = sphi 0, %s50
    %s54 = sphi 0, %s53
    %s70 = sphi 0, %s54
    %s76 = sphi 0, %s78
    %s79 = sphi 0, %s76
    %s80 = sphi 0, %s79
    %s96 = sphi 0, %s80
    %s102 = sphi 0, %s104
    %s105 = sphi 0, %s102
    %s106 = sphi 0, %s105
    %s122 = sphi 0, %s106
    %s126 = sphi 0, %s126
    %s128 = sphi 0, %s126
    %s129 = sphi 0, %s128
    %s143 = sphi 0, %s129
    %s147 = sphi 0, %s147
    %s149 = sphi 0, %s147
    %s150 = sphi 0, %s149
    %s164 = sphi 0, %s150
    %s168 = sphi 0, %s168
    %s170 = sphi 0, %s168
    %s171 = sphi 0, %s170
    %s185 = sphi 0, %s171
    %s189 = sphi 0, %s189
    %s191 = sphi 0, %s189
    %s192 = sphi 0, %s191
    %s206 = sphi 0, %s192
    %s212 = sphi 0, %s214
    %s215 = sphi 0, %s212
    %s216 = sphi 0, %s215
    %s232 = sphi 0, %s216
  $region4: #{encoder_forward.9} parent=0 // loop_header_branch
    %17 = sbr.rel (%p15) target = $region8
  $region5: #{encoder_forward.9} parent=0 // loop_body
    %s19 = ssub.s32 %s14, 1
    %s20 = ssub.s32 %s14, 2
    %s21 = sadd.s32 %s14, 1
    %s22 = ssub.s32 %s14, %s21
    %p23 = scmp.eq.s32.totalorder %s22, 0
    %s25 = sadd.s32 %s24, 1
    %s26 = scalar_select %p23, %s24, %s25
    %p29 = pneg %p23
    %p30 = scmp.eq.s32.totalorder %s14, 1
    %p31 = por %p29, %p30
    %p32 = scmp.ne.s32.totalorder %s24, %s27
    %p33 = scmp.eq.s32.totalorder %s14, 0
    %p34 = por %p32, %p33
    %p35 = scmp.ne.s32.totalorder %s24, %s27
    %p36 = scmp.eq.s32.totalorder %s19, 1
    %p37 = por %p35, %p36
    %p38 = scmp.ne.s32.totalorder %s27, %s28
    %p39 = scmp.eq.s32.totalorder %s19, 0
    %p40 = por %p38, %p39
    %p41 = scmp.ne.s32.totalorder %s27, %s28
    %p42 = scmp.eq.s32.totalorder %s20, 1
    %p43 = por %p41, %p42
    %p45 = scmp.ne.s32.totalorder %s28, %s44
    %p46 = scmp.eq.s32.totalorder %s20, 0
    %p47 = por %p45, %p46
    %s48 = ssub.s32 %s14, %s21
    %p49 = scmp.eq.s32.totalorder %s48, 0
    %s51 = sadd.s32 %s50, 1
    %s52 = scalar_select %p49, %s50, %s51
    %p55 = pneg %p49
    %p56 = scmp.eq.s32.totalorder %s14, 1
    %p57 = por %p55, %p56
    %p58 = scmp.ne.s32.totalorder %s50, %s53
    %p59 = scmp.eq.s32.totalorder %s14, 0
    %p60 = por %p58, %p59
    %p61 = scmp.ne.s32.totalorder %s50, %s53
    %p62 = scmp.eq.s32.totalorder %s19, 1
    %p63 = por %p61, %p62
    %p64 = scmp.ne.s32.totalorder %s53, %s54
    %p65 = scmp.eq.s32.totalorder %s19, 0
    %p66 = por %p64, %p65
    %p67 = scmp.ne.s32.totalorder %s53, %s54
    %p68 = scmp.eq.s32.totalorder %s20, 1
    %p69 = por %p67, %p68
    %p71 = scmp.ne.s32.totalorder %s54, %s70
    %p72 = scmp.eq.s32.totalorder %s20, 0
    %p73 = por %p71, %p72
    %s74 = ssub.s32 %s14, %s21
    %p75 = scmp.eq.s32.totalorder %s74, 0
    %s77 = sadd.s32 %s76, 1
    %s78 = scalar_select %p75, %s76, %s77
    %p81 = pneg %p75
    %p82 = scmp.eq.s32.totalorder %s14, 1
    %p83 = por %p81, %p82
    %p84 = scmp.ne.s32.totalorder %s76, %s79
    %p85 = scmp.eq.s32.totalorder %s14, 0
    %p86 = por %p84, %p85
    %p87 = scmp.ne.s32.totalorder %s76, %s79
    %p88 = scmp.eq.s32.totalorder %s19, 1
    %p89 = por %p87, %p88
    %p90 = scmp.ne.s32.totalorder %s79, %s80
    %p91 = scmp.eq.s32.totalorder %s19, 0
    %p92 = por %p90, %p91
    %p93 = scmp.ne.s32.totalorder %s79, %s80
    %p94 = scmp.eq.s32.totalorder %s20, 1
    %p95 = por %p93, %p94
    %p97 = scmp.ne.s32.totalorder %s80, %s96
    %p98 = scmp.eq.s32.totalorder %s20, 0
    %p99 = por %p97, %p98
    %s100 = ssub.s32 %s14, %s21
    %p101 = scmp.eq.s32.totalorder %s100, 0
    %s103 = sadd.s32 %s102, 1
    %s104 = scalar_select %p101, %s102, %s103
    %p107 = pneg %p101
    %p108 = scmp.eq.s32.totalorder %s14, 1
    %p109 = por %p107, %p108
    %p110 = scmp.ne.s32.totalorder %s102, %s105
    %p111 = scmp.eq.s32.totalorder %s14, 0
    %p112 = por %p110, %p111
    %p113 = scmp.ne.s32.totalorder %s102, %s105
    %p114 = scmp.eq.s32.totalorder %s19, 1
    %p115 = por %p113, %p114
    %p116 = scmp.ne.s32.totalorder %s105, %s106
    %p117 = scmp.eq.s32.totalorder %s19, 0
    %p118 = por %p116, %p117
    %p119 = scmp.ne.s32.totalorder %s105, %s106
    %p120 = scmp.eq.s32.totalorder %s20, 1
    %p121 = por %p119, %p120
    %p123 = scmp.ne.s32.totalorder %s106, %s122
    %p124 = scmp.eq.s32.totalorder %s20, 0
    %p125 = por %p123, %p124
    %s127 = sadd.s32 %s126, 1
    %p130 = scmp.eq.s32.totalorder %s14, 1
    %p131 = scmp.ne.s32.totalorder %s126, %s128
    %p132 = scmp.eq.s32.totalorder %s14, 0
    %p133 = por %p131, %p132
    %p134 = scmp.ne.s32.totalorder %s126, %s128
    %p135 = scmp.eq.s32.totalorder %s19, 1
    %p136 = por %p134, %p135
    %p137 = scmp.ne.s32.totalorder %s128, %s129
    %p138 = scmp.eq.s32.totalorder %s19, 0
    %p139 = por %p137, %p138
    %p140 = scmp.ne.s32.totalorder %s128, %s129
    %p141 = scmp.eq.s32.totalorder %s20, 1
    %p142 = por %p140, %p141
    %p144 = scmp.ne.s32.totalorder %s129, %s143
    %p145 = scmp.eq.s32.totalorder %s20, 0
    %p146 = por %p144, %p145
    %s148 = sadd.s32 %s147, 1
    %p151 = scmp.eq.s32.totalorder %s14, 1
    %p152 = scmp.ne.s32.totalorder %s147, %s149
    %p153 = scmp.eq.s32.totalorder %s14, 0
    %p154 = por %p152, %p153
    %p155 = scmp.ne.s32.totalorder %s147, %s149
    %p156 = scmp.eq.s32.totalorder %s19, 1
    %p157 = por %p155, %p156
    %p158 = scmp.ne.s32.totalorder %s149, %s150
    %p159 = scmp.eq.s32.totalorder %s19, 0
    %p160 = por %p158, %p159
    %p161 = scmp.ne.s32.totalorder %s149, %s150
    %p162 = scmp.eq.s32.totalorder %s20, 1
    %p163 = por %p161, %p162
    %p165 = scmp.ne.s32.totalorder %s150, %s164
    %p166 = scmp.eq.s32.totalorder %s20, 0
    %p167 = por %p165, %p166
    %s169 = sadd.s32 %s168, 1
    %p172 = scmp.eq.s32.totalorder %s14, 1
    %p173 = scmp.ne.s32.totalorder %s168, %s170
    %p174 = scmp.eq.s32.totalorder %s14, 0
    %p175 = por %p173, %p174
    %p176 = scmp.ne.s32.totalorder %s168, %s170
    %p177 = scmp.eq.s32.totalorder %s19, 1
    %p178 = por %p176, %p177
    %p179 = scmp.ne.s32.totalorder %s170, %s171
    %p180 = scmp.eq.s32.totalorder %s19, 0
    %p181 = por %p179, %p180
    %p182 = scmp.ne.s32.totalorder %s170, %s171
    %p183 = scmp.eq.s32.totalorder %s20, 1
    %p184 = por %p182, %p183
    %p186 = scmp.ne.s32.totalorder %s171, %s185
    %p187 = scmp.eq.s32.totalorder %s20, 0
    %p188 = por %p186, %p187
    %s190 = sadd.s32 %s189, 1
    %p193 = scmp.eq.s32.totalorder %s14, 1
    %p194 = scmp.ne.s32.totalorder %s189, %s191
    %p195 = scmp.eq.s32.totalorder %s14, 0
    %p196 = por %p194, %p195
    %p197 = scmp.ne.s32.totalorder %s189, %s191
    %p198 = scmp.eq.s32.totalorder %s19, 1
    %p199 = por %p197, %p198
    %p200 = scmp.ne.s32.totalorder %s191, %s192
    %p201 = scmp.eq.s32.totalorder %s19, 0
    %p202 = por %p200, %p201
    %p203 = scmp.ne.s32.totalorder %s191, %s192
    %p204 = scmp.eq.s32.totalorder %s20, 1
    %p205 = por %p203, %p204
    %p207 = scmp.ne.s32.totalorder %s192, %s206
    %p208 = scmp.eq.s32.totalorder %s20, 0
    %p209 = por %p207, %p208
    %s210 = ssub.s32 %s14, %s21
    %p211 = scmp.eq.s32.totalorder %s210, 0
    %s213 = sadd.s32 %s212, 1
    %s214 = scalar_select %p211, %s212, %s213
    %p217 = pneg %p211
    %p218 = scmp.eq.s32.totalorder %s14, 1
    %p219 = por %p217, %p218
    %p220 = scmp.ne.s32.totalorder %s212, %s215
    %p221 = scmp.eq.s32.totalorder %s14, 0
    %p222 = por %p220, %p221
    %p223 = scmp.ne.s32.totalorder %s212, %s215
    %p224 = scmp.eq.s32.totalorder %s19, 1
    %p225 = por %p223, %p224
    %p226 = scmp.ne.s32.totalorder %s215, %s216
    %p227 = scmp.eq.s32.totalorder %s19, 0
    %p228 = por %p226, %p227
    %p229 = scmp.ne.s32.totalorder %s215, %s216
    %p230 = scmp.eq.s32.totalorder %s20, 1
    %p231 = por %p229, %p230
    %p233 = scmp.ne.s32.totalorder %s216, %s232
    %p234 = scmp.eq.s32.totalorder %s20, 0
    %p235 = por %p233, %p234
    %p236 = scmp.le.s32.totalorder 1, %s14
    %p237 = scmp.lt.s32.totalorder %s14, 3
    %p238 = pnand %p236, %p237
    %p239 = pneg %p238
    // Predicated region
    $region9: #{encoder_forward.9} parent=5 // pred_check
      _
    $region10: #{encoder_forward.9} parent=5 // pred_check_branch
      %241 = sbr.rel (%p238) target = $region12
    $region11: #{encoder_forward.9} parent=5 // pred_region
      %s242 = ssub.s32 %s14, 1
      // Predicated region
      $region13: #{encoder_forward.9} parent=11 // pred_check
        %p243 = pneg %p139
      $region14: #{encoder_forward.9} parent=11 // pred_check_branch
        %245 = sbr.rel (%p243) target = $region16
      $region15: #{encoder_forward.9} parent=11 // pred_region
        _
      $region16: #{encoder_forward.9} parent=11 // pred_fallthru
        _
      // Predicated region
      $region17: #{encoder_forward.9} parent=11 // pred_check
        %p246 = pneg %p160
      $region18: #{encoder_forward.9} parent=11 // pred_check_branch
        %248 = sbr.rel (%p246) target = $region20
      $region19: #{encoder_forward.9} parent=11 // pred_region
        _
      $region20: #{encoder_forward.9} parent=11 // pred_fallthru
        _
      // Predicated region
      $region21: #{encoder_forward.9} parent=11 // pred_check
        %p249 = pneg %p181
      $region22: #{encoder_forward.9} parent=11 // pred_check_branch
        %251 = sbr.rel (%p249) target = $region24
      $region23: #{encoder_forward.9} parent=11 // pred_region
        _
      $region24: #{encoder_forward.9} parent=11 // pred_fallthru
        _
      // Predicated region
      $region25: #{encoder_forward.9} parent=11 // pred_check
        %p252 = pneg %p202
      $region26: #{encoder_forward.9} parent=11 // pred_check_branch
        %254 = sbr.rel (%p252) target = $region28
      $region27: #{encoder_forward.9} parent=11 // pred_region
        _
      $region28: #{encoder_forward.9} parent=11 // pred_fallthru
        _
    $region12: #{encoder_forward.9} parent=5 // pred_fallthru
      _
    %p255 = scmp.lt.s32.totalorder %s14, 2
    // Predicated region
    $region29: #{encoder_forward.9} parent=5 // pred_check
      %p256 = pneg %p255
    $region30: #{encoder_forward.9} parent=5 // pred_check_branch
      %258 = sbr.rel (%p256) target = $region32
    $region31: #{encoder_forward.9} parent=5 // pred_region
      // Predicated region
      $region33: #{encoder_forward.9} parent=31 // pred_check
        %p259 = pneg %p34
      $region34: #{encoder_forward.9} parent=31 // pred_check_branch
        %261 = sbr.rel (%p259) target = $region36
      $region35: #{encoder_forward.9} parent=31 // pred_region
        %p262 = scmp.lt.s32.totalorder %s14, 1
        %s263 = scalar_select %p262, %s14, 1
        %s264 = smul.addr %s263, 4
        %s265 = smul.addr %s264, 4
        %s266 = scalar_lea.vmem %s0, %s265
      $region36: #{encoder_forward.9} parent=31 // pred_fallthru
        _
      // Predicated region
      $region37: #{encoder_forward.9} parent=31 // pred_check
        %p267 = pneg %p60
      $region38: #{encoder_forward.9} parent=31 // pred_check_branch
        %269 = sbr.rel (%p267) target = $region40
      $region39: #{encoder_forward.9} parent=31 // pred_region
        %p270 = scmp.lt.s32.totalorder %s14, 1
        %s271 = scalar_select %p270, %s14, 1
        %s272 = smul.addr %s271, 4
        %s273 = smul.addr %s272, 4
        %s274 = scalar_lea.vmem %s1, %s273
      $region40: #{encoder_forward.9} parent=31 // pred_fallthru
        _
      // Predicated region
      $region41: #{encoder_forward.9} parent=31 // pred_check
        %p275 = pneg %p86
      $region42: #{encoder_forward.9} parent=31 // pred_check_branch
        %277 = sbr.rel (%p275) target = $region44
      $region43: #{encoder_forward.9} parent=31 // pred_region
        %p278 = scmp.lt.s32.totalorder %s14, 1
        %s279 = scalar_select %p278, %s14, 1
        %s280 = smul.addr %s279, 4
        %s281 = smul.addr %s280, 4
        %s282 = scalar_lea.vmem %s2, %s281
      $region44: #{encoder_forward.9} parent=31 // pred_fallthru
        _
      // Predicated region
      $region45: #{encoder_forward.9} parent=31 // pred_check
        %p283 = pneg %p112
      $region46: #{encoder_forward.9} parent=31 // pred_check_branch
        %285 = sbr.rel (%p283) target = $region48
      $region47: #{encoder_forward.9} parent=31 // pred_region
        %p286 = scmp.lt.s32.totalorder %s14, 1
        %s287 = scalar_select %p286, %s14, 1
        %s288 = smul.addr %s287, 8
        %s289 = scalar_lea.vmem %s3, %s288
      $region48: #{encoder_forward.9} parent=31 // pred_fallthru
        _
    $region32: #{encoder_forward.9} parent=5 // pred_fallthru
      _
    %p290 = scmp.le.s32.totalorder 1, %s14
    %p291 = scmp.lt.s32.totalorder %s14, 3
    %p292 = pnand %p290, %p291
    %p293 = pneg %p292
    // Predicated region
    $region49: #{encoder_forward.9} parent=5 // pred_check
      _
    $region50: #{encoder_forward.9} parent=5 // pred_check_branch
      %295 = sbr.rel (%p292) target = $region52
    $region51: #{encoder_forward.9} parent=5 // pred_region
      %s296 = ssub.s32 %s14, 1
      %p297 = scmp.lt.s32.totalorder %s19, 1
      %s298 = scalar_select %p297, %s19, 1
      %s299 = smul.addr %s298, 4
      %s300 = smul.addr %s299, 4
      %s301 = scalar_lea.vmem %s0, %s300
      %p302 = pneg %p40
      %p303 = pneg %p37
      %p304 = scmp.lt.s32.totalorder %s19, 1
      %s305 = scalar_select %p304, %s19, 1
      %s306 = smul.addr %s305, 4
      %s307 = smul.addr %s306, 4
      %s308 = scalar_lea.vmem %s1, %s307
      %p309 = pneg %p66
      %p310 = pneg %p63
      %p311 = scmp.lt.s32.totalorder %s19, 1
      %s312 = scalar_select %p311, %s19, 1
      %s313 = smul.addr %s312, 4
      %s314 = smul.addr %s313, 4
      %s315 = scalar_lea.vmem %s2, %s314
      %p316 = pneg %p92
      %p317 = pneg %p89
      %p318 = scmp.lt.s32.totalorder %s19, 1
      %s319 = scalar_select %p318, %s19, 1
      %s320 = smul.addr %s319, 8
      %s321 = scalar_lea.vmem %s3, %s320
      %p322 = pneg %p118
      %p323 = pneg %p115
      %p324 = pneg %p139
      %p325 = pneg %p136
      %p326 = pneg %p160
      %p327 = pneg %p157
      %p328 = pneg %p181
      %p329 = pneg %p178
      %p330 = pneg %p202
      %p331 = pneg %p199
      %p332 = pneg %p228
      %p333 = pneg %p225
      %p334 = scmp.lt.s32.totalorder %s19, 1
      %s335 = scalar_select %p334, %s19, 1
      %s336 = smul.addr %s335, 8
      %s337 = scalar_lea.vmem %s8, %s336
      %p338 = scmp.lt.s32.totalorder %s19, 1
      %s339 = scalar_select %p338, %s19, 1
      %s340 = smul.addr %s339, 4
      %s341 = smul.addr %s340, 4
      %s342 = scalar_lea.vmem %s0, %s341
      %p343 = scmp.lt.s32.totalorder %s19, 1
      %s344 = scalar_select %p343, %s19, 1
      %s345 = smul.addr %s344, 4
      %s346 = smul.addr %s345, 4
      %s347 = scalar_lea.vmem %s1, %s346
      %p348 = scmp.lt.s32.totalorder %s19, 1
      %s349 = scalar_select %p348, %s19, 1
      %s350 = smul.addr %s349, 4
      %s351 = smul.addr %s350, 4
      %s352 = scalar_lea.vmem %s2, %s351
      %p353 = scmp.lt.s32.totalorder %s19, 1
      %s354 = scalar_select %p353, %s19, 1
      %s355 = smul.addr %s354, 8
      %s356 = scalar_lea.vmem %s3, %s355
      %p357 = scmp.lt.s32.totalorder %s19, 1
      %s358 = scalar_select %p357, %s19, 1
      %s359 = smul.addr %s358, 8
      %s360 = scalar_lea.vmem %s8, %s359
      %v362 = vld [vmem:[%s342] sm:$0xf]
      %v363 = vld [vmem:[%s342 + $0x4] sm:$0xf]
      %v364 = vld [vmem:[%s342 + $0x8] sm:$0xf]
      %v365 = vld [vmem:[%s342 + $0xc] sm:$0xf]
      %v366 = vld [vmem:[%s347] sm:$0xf]
      %v367 = vld [vmem:[%s347 + $0x4] sm:$0xf]
      %v368 = vld [vmem:[%s347 + $0x8] sm:$0xf]
      %v369 = vld [vmem:[%s347 + $0xc] sm:$0xf]
      %v370 = vld [vmem:[%s352] sm:$0xf]
      %v371 = vld [vmem:[%s352 + $0x4] sm:$0xf]
      %v372 = vld [vmem:[%s352 + $0x8] sm:$0xf]
      %v373 = vld [vmem:[%s352 + $0xc] sm:$0xf]
      %vm374 = vcmask 64512
      %v376 = vsel %vm374, %v362, 0
      %v379 = vsel %vm374, %v366, 0
      %381 = vmatprep.subr.bf16.mxu0 0
      %382 = vmatpush1.bf16.xpose.msra.mxu0 0
      %383 = vmatprep.subr.bf16.mxu0 0
      %384 = vmatpush1.bf16.xpose.msra.mxu0 0
      %385 = vmatprep.subr.bf16.mxu0 0
      %386 = vmatpush1.bf16.xpose.msra.mxu0 0
      %387 = vmatprep.subr.bf16.mxu0 0
      %388 = vmatpush1.bf16.xpose.msra.mxu0 0
      %389 = vmatprep.subr.bf16.mxu0 0
      %390 = vmatpush1.bf16.xpose.msra.mxu0 0
      %391 = vmatprep.subr.bf16.mxu0 0
      %392 = vmatpush1.bf16.xpose.msra.mxu0 0
      %393 = vmatprep.subr.bf16.mxu0 0
      %394 = vmatpush1.bf16.xpose.msra.mxu0 0
      %395 = vmatprep.subr.bf16.mxu0 0
      %396 = vmatpush1.bf16.xpose.msra.mxu0 %v379
      %397 = vmatprep.subr.bf16.mxu0 0
      %398 = vmatpush2.bf16.xpose.msra.mxu0 0
      %399 = vmatprep.subr.bf16.mxu0 0
      %400 = vmatpush2.bf16.xpose.msra.mxu0 0
      %401 = vmatprep.subr.bf16.mxu0 0
      %402 = vmatpush2.bf16.xpose.msra.mxu0 0
      %403 = vmatprep.subr.bf16.mxu0 0
      %404 = vmatpush2.bf16.xpose.msra.mxu0 0
      %405 = vmatprep.subr.bf16.mxu0 0
      %406 = vmatpush2.bf16.xpose.msra.mxu0 0
      %407 = vmatprep.subr.bf16.mxu0 0
      %408 = vmatpush2.bf16.xpose.msra.mxu0 0
      %409 = vmatprep.subr.bf16.mxu0 0
      %410 = vmatpush2.bf16.xpose.msra.mxu0 0
      %411 = vmatprep.subr.bf16.mxu0 0
      %412 = vmatpush2.bf16.xpose.msra.mxu0 0
      %413 = vmatprep.mubr.bf16.mxu0 0
      %414 = vmatmul.mubr.bf16.gmra.mxu0 %v376
      %v415 = vpop.f32.mrf.mxu0
      %v416 = vadd.f32 0.0, %v415
      %v417 = vpop.f32.mrf.mxu0
      %v418 = vpop.f32.mrf.mxu0
      %v419 = vpop.f32.mrf.mxu0
      %420 = vdwg.mxu0
      %v422 = vsel %vm374, %v363, 0
      %v425 = vsel %vm374, %v367, 0
      %427 = vmatprep.subr.bf16.mxu0 0
      %428 = vmatpush1.bf16.xpose.msra.mxu0 0
      %429 = vmatprep.subr.bf16.mxu0 0
      %430 = vmatpush1.bf16.xpose.msra.mxu0 0
      %431 = vmatprep.subr.bf16.mxu0 0
      %432 = vmatpush1.bf16.xpose.msra.mxu0 0
      %433 = vmatprep.subr.bf16.mxu0 0
      %434 = vmatpush1.bf16.xpose.msra.mxu0 0
      %435 = vmatprep.subr.bf16.mxu0 0
      %436 = vmatpush1.bf16.xpose.msra.mxu0 0
      %437 = vmatprep.subr.bf16.mxu0 0
      %438 = vmatpush1.bf16.xpose.msra.mxu0 0
      %439 = vmatprep.subr.bf16.mxu0 0
      %440 = vmatpush1.bf16.xpose.msra.mxu0 0
      %441 = vmatprep.subr.bf16.mxu0 0
      %442 = vmatpush1.bf16.xpose.msra.mxu0 %v425
      %443 = vmatprep.subr.bf16.mxu0 0
      %444 = vmatpush2.bf16.xpose.msra.mxu0 0
      %445 = vmatprep.subr.bf16.mxu0 0
      %446 = vmatpush2.bf16.xpose.msra.mxu0 0
      %447 = vmatprep.subr.bf16.mxu0 0
      %448 = vmatpush2.bf16.xpose.msra.mxu0 0
      %449 = vmatprep.subr.bf16.mxu0 0
      %450 = vmatpush2.bf16.xpose.msra.mxu0 0
      %451 = vmatprep.subr.bf16.mxu0 0
      %452 = vmatpush2.bf16.xpose.msra.mxu0 0
      %453 = vmatprep.subr.bf16.mxu0 0
      %454 = vmatpush2.bf16.xpose.msra.mxu0 0
      %455 = vmatprep.subr.bf16.mxu0 0
      %456 = vmatpush2.bf16.xpose.msra.mxu0 0
      %457 = vmatprep.subr.bf16.mxu0 0
      %458 = vmatpush2.bf16.xpose.msra.mxu0 0
      %459 = vmatprep.mubr.bf16.mxu0 0
      %460 = vmatmul.mubr.bf16.gmra.mxu0 %v422
      %v461 = vpop.f32.mrf.mxu0
      %v462 = vadd.f32 0.0, %v461
      %v463 = vpop.f32.mrf.mxu0
      %v464 = vpop.f32.mrf.mxu0
      %v465 = vpop.f32.mrf.mxu0
      %466 = vdwg.mxu0
      %v468 = vsel %vm374, %v364, 0
      %v471 = vsel %vm374, %v368, 0
      %473 = vmatprep.subr.bf16.mxu0 0
      %474 = vmatpush1.bf16.xpose.msra.mxu0 0
      %475 = vmatprep.subr.bf16.mxu0 0
      %476 = vmatpush1.bf16.xpose.msra.mxu0 0
      %477 = vmatprep.subr.bf16.mxu0 0
      %478 = vmatpush1.bf16.xpose.msra.mxu0 0
      %479 = vmatprep.subr.bf16.mxu0 0
      %480 = vmatpush1.bf16.xpose.msra.mxu0 0
      %481 = vmatprep.subr.bf16.mxu0 0
      %482 = vmatpush1.bf16.xpose.msra.mxu0 0
      %483 = vmatprep.subr.bf16.mxu0 0
      %484 = vmatpush1.bf16.xpose.msra.mxu0 0
      %485 = vmatprep.subr.bf16.mxu0 0
      %486 = vmatpush1.bf16.xpose.msra.mxu0 0
      %487 = vmatprep.subr.bf16.mxu0 0
      %488 = vmatpush1.bf16.xpose.msra.mxu0 %v471
      %489 = vmatprep.subr.bf16.mxu0 0
      %490 = vmatpush2.bf16.xpose.msra.mxu0 0
      %491 = vmatprep.subr.bf16.mxu0 0
      %492 = vmatpush2.bf16.xpose.msra.mxu0 0
      %493 = vmatprep.subr.bf16.mxu0 0
      %494 = vmatpush2.bf16.xpose.msra.mxu0 0
      %495 = vmatprep.subr.bf16.mxu0 0
      %496 = vmatpush2.bf16.xpose.msra.mxu0 0
      %497 = vmatprep.subr.bf16.mxu0 0
      %498 = vmatpush2.bf16.xpose.msra.mxu0 0
      %499 = vmatprep.subr.bf16.mxu0 0
      %500 = vmatpush2.bf16.xpose.msra.mxu0 0
      %501 = vmatprep.subr.bf16.mxu0 0
      %502 = vmatpush2.bf16.xpose.msra.mxu0 0
      %503 = vmatprep.subr.bf16.mxu0 0
      %504 = vmatpush2.bf16.xpose.msra.mxu0 0
      %505 = vmatprep.mubr.bf16.mxu0 0
      %506 = vmatmul.mubr.bf16.gmra.mxu0 %v468
      %v507 = vpop.f32.mrf.mxu0
      %v508 = vadd.f32 0.0, %v507
      %v509 = vpop.f32.mrf.mxu0
      %v510 = vpop.f32.mrf.mxu0
      %v511 = vpop.f32.mrf.mxu0
      %512 = vdwg.mxu0
      %v514 = vsel %vm374, %v365, 0
      %v517 = vsel %vm374, %v369, 0
      %519 = vmatprep.subr.bf16.mxu0 0
      %520 = vmatpush1.bf16.xpose.msra.mxu0 0
      %521 = vmatprep.subr.bf16.mxu0 0
      %522 = vmatpush1.bf16.xpose.msra.mxu0 0
      %523 = vmatprep.subr.bf16.mxu0 0
      %524 = vmatpush1.bf16.xpose.msra.mxu0 0
      %525 = vmatprep.subr.bf16.mxu0 0
      %526 = vmatpush1.bf16.xpose.msra.mxu0 0
      %527 = vmatprep.subr.bf16.mxu0 0
      %528 = vmatpush1.bf16.xpose.msra.mxu0 0
      %529 = vmatprep.subr.bf16.mxu0 0
      %530 = vmatpush1.bf16.xpose.msra.mxu0 0
      %531 = vmatprep.subr.bf16.mxu0 0
      %532 = vmatpush1.bf16.xpose.msra.mxu0 0
      %533 = vmatprep.subr.bf16.mxu0 0
      %534 = vmatpush1.bf16.xpose.msra.mxu0 %v517
      %535 = vmatprep.subr.bf16.mxu0 0
      %536 = vmatpush2.bf16.xpose.msra.mxu0 0
      %537 = vmatprep.subr.bf16.mxu0 0
      %538 = vmatpush2.bf16.xpose.msra.mxu0 0
      %539 = vmatprep.subr.bf16.mxu0 0
      %540 = vmatpush2.bf16.xpose.msra.mxu0 0
      %541 = vmatprep.subr.bf16.mxu0 0
      %542 = vmatpush2.bf16.xpose.msra.mxu0 0
      %543 = vmatprep.subr.bf16.mxu0 0
      %544 = vmatpush2.bf16.xpose.msra.mxu0 0
      %545 = vmatprep.subr.bf16.mxu0 0
      %546 = vmatpush2.bf16.xpose.msra.mxu0 0
      %547 = vmatprep.subr.bf16.mxu0 0
      %548 = vmatpush2.bf16.xpose.msra.mxu0 0
      %549 = vmatprep.subr.bf16.mxu0 0
      %550 = vmatpush2.bf16.xpose.msra.mxu0 0
      %551 = vmatprep.mubr.bf16.mxu0 0
      %552 = vmatmul.mubr.bf16.gmra.mxu0 %v514
      %v553 = vpop.f32.mrf.mxu0
      %v554 = vadd.f32 0.0, %v553
      %v555 = vpop.f32.mrf.mxu0
      %v556 = vpop.f32.mrf.mxu0
      %v557 = vpop.f32.mrf.mxu0
      %558 = vdwg.mxu0
      %v559 = vmul.f32 %v416, 0.35355338
      %v560 = vmul.f32 %v462, 0.35355338
      %v561 = vmul.f32 %v508, 0.35355338
      %v562 = vmul.f32 %v554, 0.35355338
      %v563 = vsel %vm374, %v559, -inf
      %564 = vmax.xlane.f32.xlu0 %v563
      %v565 = vpop.xlane.xlu0 %564
      %v566 = vsel %vm374, %v560, -inf
      %567 = vmax.xlane.f32.xlu0 %v566
      %v568 = vpop.xlane.xlu0 %567
      %v569 = vsel %vm374, %v561, -inf
      %570 = vmax.xlane.f32.xlu0 %v569
      %v571 = vpop.xlane.xlu0 %570
      %v572 = vsel %vm374, %v562, -inf
      %573 = vmax.xlane.f32.xlu0 %v572
      %v574 = vpop.xlane.xlu0 %573
      %v575 = vsub.f32 %v559, %v565
      %v576 = vsub.f32 %v560, %v568
      %v577 = vsub.f32 %v561, %v571
      %v578 = vsub.f32 %v562, %v574
      %v579 = vmul.f32 %v575, 1.442695
      %v580 = vpow.pop %v579
      %v581 = vmul.f32 %v576, 1.442695
      %v582 = vpow.pop %v581
      %v583 = vmul.f32 %v577, 1.442695
      %v584 = vpow.pop %v583
      %v585 = vmul.f32 %v578, 1.442695
      %v586 = vpow.pop %v585
      %v587 = vsel %vm374, %v580, 0.0
      %588 = vadd.xlane.f32.xlu0 %v587
      %v589 = vpop.xlane.xlu0 %588
      %v590 = vsel %vm374, %v582, 0.0
      %591 = vadd.xlane.f32.xlu0 %v590
      %v592 = vpop.xlane.xlu0 %591
      %v593 = vsel %vm374, %v584, 0.0
      %594 = vadd.xlane.f32.xlu0 %v593
      %v595 = vpop.xlane.xlu0 %594
      %v596 = vsel %vm374, %v586, 0.0
      %597 = vadd.xlane.f32.xlu0 %v596
      %v598 = vpop.xlane.xlu0 %597
      %v599 = vrcp.pop %v589
      %v600 = vrcp.pop %v592
      %v601 = vrcp.pop %v595
      %v602 = vrcp.pop %v598
      %v603 = vmul.f32 %v580, %v599
      %v604 = vmul.f32 %v582, %v600
      %v605 = vmul.f32 %v584, %v601
      %v606 = vmul.f32 %v586, %v602
      %v607 = vpack.c.bf16 %v603, %v603
      %v608 = vpack.c.bf16 %v604, %v604
      %v609 = vpack.c.bf16 %v605, %v605
      %v610 = vpack.c.bf16 %v606, %v606
      %v612 = vsel %vm374, %v607, 0
      %vm614 = vcmask 1043456
      %v616 = vsel %vm614, %v370, 0
      %618 = vmatprep.subr.bf16.mxu0 0
      %619 = vmatpush1.bf16.msra.mxu0 0
      %620 = vmatprep.subr.bf16.mxu0 0
      %621 = vmatpush1.bf16.msra.mxu0 0
      %622 = vmatprep.subr.bf16.mxu0 0
      %623 = vmatpush1.bf16.msra.mxu0 0
      %624 = vmatprep.subr.bf16.mxu0 0
      %625 = vmatpush1.bf16.msra.mxu0 0
      %626 = vmatprep.subr.bf16.mxu0 0
      %627 = vmatpush1.bf16.msra.mxu0 0
      %628 = vmatprep.subr.bf16.mxu0 0
      %629 = vmatpush1.bf16.msra.mxu0 0
      %630 = vmatprep.subr.bf16.mxu0 0
      %631 = vmatpush1.bf16.msra.mxu0 0
      %632 = vmatprep.subr.bf16.mxu0 0
      %633 = vmatpush1.bf16.msra.mxu0 %v616
      %634 = vmatprep.subr.bf16.mxu0 0
      %635 = vmatpush2.bf16.msra.mxu0 0
      %636 = vmatprep.subr.bf16.mxu0 0
      %637 = vmatpush2.bf16.msra.mxu0 0
      %638 = vmatprep.subr.bf16.mxu0 0
      %639 = vmatpush2.bf16.msra.mxu0 0
      %640 = vmatprep.subr.bf16.mxu0 0
      %641 = vmatpush2.bf16.msra.mxu0 0
      %642 = vmatprep.subr.bf16.mxu0 0
      %643 = vmatpush2.bf16.msra.mxu0 0
      %644 = vmatprep.subr.bf16.mxu0 0
      %645 = vmatpush2.bf16.msra.mxu0 0
      %646 = vmatprep.subr.bf16.mxu0 0
      %647 = vmatpush2.bf16.msra.mxu0 0
      %648 = vmatprep.subr.bf16.mxu0 0
      %649 = vmatpush2.bf16.msra.mxu0 0
      %650 = vmatprep.mubr.bf16.mxu0 0
      %651 = vmatmul.mubr.bf16.gmra.mxu0 %v612
      %v652 = vpop.f32.mrf.mxu0
      %v653 = vadd.f32 0.0, %v652
      %v654 = vpop.f32.mrf.mxu0
      %v655 = vpop.f32.mrf.mxu0
      %v656 = vpop.f32.mrf.mxu0
      %657 = vdwg.mxu0
      %v659 = vsel %vm374, %v608, 0
      %v662 = vsel %vm614, %v371, 0
      %664 = vmatprep.subr.bf16.mxu0 0
      %665 = vmatpush1.bf16.msra.mxu0 0
      %666 = vmatprep.subr.bf16.mxu0 0
      %667 = vmatpush1.bf16.msra.mxu0 0
      %668 = vmatprep.subr.bf16.mxu0 0
      %669 = vmatpush1.bf16.msra.mxu0 0
      %670 = vmatprep.subr.bf16.mxu0 0
      %671 = vmatpush1.bf16.msra.mxu0 0
      %672 = vmatprep.subr.bf16.mxu0 0
      %673 = vmatpush1.bf16.msra.mxu0 0
      %674 = vmatprep.subr.bf16.mxu0 0
      %675 = vmatpush1.bf16.msra.mxu0 0
      %676 = vmatprep.subr.bf16.mxu0 0
      %677 = vmatpush1.bf16.msra.mxu0 0
      %678 = vmatprep.subr.bf16.mxu0 0
      %679 = vmatpush1.bf16.msra.mxu0 %v662
      %680 = vmatprep.subr.bf16.mxu0 0
      %681 = vmatpush2.bf16.msra.mxu0 0
      %682 = vmatprep.subr.bf16.mxu0 0
      %683 = vmatpush2.bf16.msra.mxu0 0
      %684 = vmatprep.subr.bf16.mxu0 0
      %685 = vmatpush2.bf16.msra.mxu0 0
      %686 = vmatprep.subr.bf16.mxu0 0
      %687 = vmatpush2.bf16.msra.mxu0 0
      %688 = vmatprep.subr.bf16.mxu0 0
      %689 = vmatpush2.bf16.msra.mxu0 0
      %690 = vmatprep.subr.bf16.mxu0 0
      %691 = vmatpush2.bf16.msra.mxu0 0
      %692 = vmatprep.subr.bf16.mxu0 0
      %693 = vmatpush2.bf16.msra.mxu0 0
      %694 = vmatprep.subr.bf16.mxu0 0
      %695 = vmatpush2.bf16.msra.mxu0 0
      %696 = vmatprep.mubr.bf16.mxu0 0
      %697 = vmatmul.mubr.bf16.gmra.mxu0 %v659
      %v698 = vpop.f32.mrf.mxu0
      %v699 = vadd.f32 0.0, %v698
      %v700 = vpop.f32.mrf.mxu0
      %v701 = vpop.f32.mrf.mxu0
      %v702 = vpop.f32.mrf.mxu0
      %703 = vdwg.mxu0
      %v705 = vsel %vm374, %v609, 0
      %v708 = vsel %vm614, %v372, 0
      %710 = vmatprep.subr.bf16.mxu0 0
      %711 = vmatpush1.bf16.msra.mxu0 0
      %712 = vmatprep.subr.bf16.mxu0 0
      %713 = vmatpush1.bf16.msra.mxu0 0
      %714 = vmatprep.subr.bf16.mxu0 0
      %715 = vmatpush1.bf16.msra.mxu0 0
      %716 = vmatprep.subr.bf16.mxu0 0
      %717 = vmatpush1.bf16.msra.mxu0 0
      %718 = vmatprep.subr.bf16.mxu0 0
      %719 = vmatpush1.bf16.msra.mxu0 0
      %720 = vmatprep.subr.bf16.mxu0 0
      %721 = vmatpush1.bf16.msra.mxu0 0
      %722 = vmatprep.subr.bf16.mxu0 0
      %723 = vmatpush1.bf16.msra.mxu0 0
      %724 = vmatprep.subr.bf16.mxu0 0
      %725 = vmatpush1.bf16.msra.mxu0 %v708
      %726 = vmatprep.subr.bf16.mxu0 0
      %727 = vmatpush2.bf16.msra.mxu0 0
      %728 = vmatprep.subr.bf16.mxu0 0
      %729 = vmatpush2.bf16.msra.mxu0 0
      %730 = vmatprep.subr.bf16.mxu0 0
      %731 = vmatpush2.bf16.msra.mxu0 0
      %732 = vmatprep.subr.bf16.mxu0 0
      %733 = vmatpush2.bf16.msra.mxu0 0
      %734 = vmatprep.subr.bf16.mxu0 0
      %735 = vmatpush2.bf16.msra.mxu0 0
      %736 = vmatprep.subr.bf16.mxu0 0
      %737 = vmatpush2.bf16.msra.mxu0 0
      %738 = vmatprep.subr.bf16.mxu0 0
      %739 = vmatpush2.bf16.msra.mxu0 0
      %740 = vmatprep.subr.bf16.mxu0 0
      %741 = vmatpush2.bf16.msra.mxu0 0
      %742 = vmatprep.mubr.bf16.mxu0 0
      %743 = vmatmul.mubr.bf16.gmra.mxu0 %v705
      %v744 = vpop.f32.mrf.mxu0
      %v745 = vadd.f32 0.0, %v744
      %v746 = vpop.f32.mrf.mxu0
      %v747 = vpop.f32.mrf.mxu0
      %v748 = vpop.f32.mrf.mxu0
      %749 = vdwg.mxu0
      %v751 = vsel %vm374, %v610, 0
      %v754 = vsel %vm614, %v373, 0
      %756 = vmatprep.subr.bf16.mxu0 0
      %757 = vmatpush1.bf16.msra.mxu0 0
      %758 = vmatprep.subr.bf16.mxu0 0
      %759 = vmatpush1.bf16.msra.mxu0 0
      %760 = vmatprep.subr.bf16.mxu0 0
      %761 = vmatpush1.bf16.msra.mxu0 0
      %762 = vmatprep.subr.bf16.mxu0 0
      %763 = vmatpush1.bf16.msra.mxu0 0
      %764 = vmatprep.subr.bf16.mxu0 0
      %765 = vmatpush1.bf16.msra.mxu0 0
      %766 = vmatprep.subr.bf16.mxu0 0
      %767 = vmatpush1.bf16.msra.mxu0 0
      %768 = vmatprep.subr.bf16.mxu0 0
      %769 = vmatpush1.bf16.msra.mxu0 0
      %770 = vmatprep.subr.bf16.mxu0 0
      %771 = vmatpush1.bf16.msra.mxu0 %v754
      %772 = vmatprep.subr.bf16.mxu0 0
      %773 = vmatpush2.bf16.msra.mxu0 0
      %774 = vmatprep.subr.bf16.mxu0 0
      %775 = vmatpush2.bf16.msra.mxu0 0
      %776 = vmatprep.subr.bf16.mxu0 0
      %777 = vmatpush2.bf16.msra.mxu0 0
      %778 = vmatprep.subr.bf16.mxu0 0
      %779 = vmatpush2.bf16.msra.mxu0 0
      %780 = vmatprep.subr.bf16.mxu0 0
      %781 = vmatpush2.bf16.msra.mxu0 0
      %782 = vmatprep.subr.bf16.mxu0 0
      %783 = vmatpush2.bf16.msra.mxu0 0
      %784 = vmatprep.subr.bf16.mxu0 0
      %785 = vmatpush2.bf16.msra.mxu0 0
      %786 = vmatprep.subr.bf16.mxu0 0
      %787 = vmatpush2.bf16.msra.mxu0 0
      %788 = vmatprep.mubr.bf16.mxu0 0
      %789 = vmatmul.mubr.bf16.gmra.mxu0 %v751
      %v790 = vpop.f32.mrf.mxu0
      %v791 = vadd.f32 0.0, %v790
      %v792 = vpop.f32.mrf.mxu0
      %v793 = vpop.f32.mrf.mxu0
      %v794 = vpop.f32.mrf.mxu0
      %795 = vdwg.mxu0
      %v796 = vpack.c.bf16 %v653, %v653
      %v797 = vpack.c.bf16 %v699, %v699
      %v798 = vpack.c.bf16 %v745, %v745
      %v799 = vpack.c.bf16 %v791, %v791
      %v800 = vld [vmem:[%s4] sm:$0xf]
      %s801 = scalar_lea.vmem %s4, 4
      %v802 = vld [vmem:[%s801] sm:$0xf]
      %v804 = vsel %vm374, %v797, 0
      %v807 = vsel %vm614, %v802, 0
      %809 = vmatprep.subr.bf16.mxu0 0
      %810 = vmatpush1.bf16.msra.mxu0 0
      %811 = vmatprep.subr.bf16.mxu0 0
      %812 = vmatpush1.bf16.msra.mxu0 0
      %813 = vmatprep.subr.bf16.mxu0 0
      %814 = vmatpush1.bf16.msra.mxu0 0
      %815 = vmatprep.subr.bf16.mxu0 0
      %816 = vmatpush1.bf16.msra.mxu0 0
      %817 = vmatprep.subr.bf16.mxu0 0
      %818 = vmatpush1.bf16.msra.mxu0 0
      %819 = vmatprep.subr.bf16.mxu0 0
      %820 = vmatpush1.bf16.msra.mxu0 0
      %821 = vmatprep.subr.bf16.mxu0 0
      %822 = vmatpush1.bf16.msra.mxu0 0
      %823 = vmatprep.subr.bf16.mxu0 0
      %824 = vmatpush1.bf16.msra.mxu0 %v807
      %825 = vmatprep.subr.bf16.mxu0 0
      %826 = vmatpush2.bf16.msra.mxu0 0
      %827 = vmatprep.subr.bf16.mxu0 0
      %828 = vmatpush2.bf16.msra.mxu0 0
      %829 = vmatprep.subr.bf16.mxu0 0
      %830 = vmatpush2.bf16.msra.mxu0 0
      %831 = vmatprep.subr.bf16.mxu0 0
      %832 = vmatpush2.bf16.msra.mxu0 0
      %833 = vmatprep.subr.bf16.mxu0 0
      %834 = vmatpush2.bf16.msra.mxu0 0
      %835 = vmatprep.subr.bf16.mxu0 0
      %836 = vmatpush2.bf16.msra.mxu0 0
      %837 = vmatprep.subr.bf16.mxu0 0
      %838 = vmatpush2.bf16.msra.mxu0 0
      %839 = vmatprep.subr.bf16.mxu0 0
      %840 = vmatpush2.bf16.msra.mxu0 0
      %841 = vmatprep.mubr.bf16.mxu0 0
      %842 = vmatmul.mubr.bf16.gmra.mxu0 %v804
      %v843 = vpop.f32.mrf.mxu0
      %v844 = vadd.f32 0.0, %v843
      %v845 = vpop.f32.mrf.mxu0
      %v846 = vpop.f32.mrf.mxu0
      %v847 = vpop.f32.mrf.mxu0
      %848 = vdwg.mxu0
      %v850 = vsel %vm374, %v796, 0
      %v853 = vsel %vm614, %v800, 0
      %855 = vmatprep.subr.bf16.mxu0 0
      %856 = vmatpush1.bf16.msra.mxu0 0
      %857 = vmatprep.subr.bf16.mxu0 0
      %858 = vmatpush1.bf16.msra.mxu0 0
      %859 = vmatprep.subr.bf16.mxu0 0
      %860 = vmatpush1.bf16.msra.mxu0 0
      %861 = vmatprep.subr.bf16.mxu0 0
      %862 = vmatpush1.bf16.msra.mxu0 0
      %863 = vmatprep.subr.bf16.mxu0 0
      %864 = vmatpush1.bf16.msra.mxu0 0
      %865 = vmatprep.subr.bf16.mxu0 0
      %866 = vmatpush1.bf16.msra.mxu0 0
      %867 = vmatprep.subr.bf16.mxu0 0
      %868 = vmatpush1.bf16.msra.mxu0 0
      %869 = vmatprep.subr.bf16.mxu0 0
      %870 = vmatpush1.bf16.msra.mxu0 %v853
      %871 = vmatprep.subr.bf16.mxu0 0
      %872 = vmatpush2.bf16.msra.mxu0 0
      %873 = vmatprep.subr.bf16.mxu0 0
      %874 = vmatpush2.bf16.msra.mxu0 0
      %875 = vmatprep.subr.bf16.mxu0 0
      %876 = vmatpush2.bf16.msra.mxu0 0
      %877 = vmatprep.subr.bf16.mxu0 0
      %878 = vmatpush2.bf16.msra.mxu0 0
      %879 = vmatprep.subr.bf16.mxu0 0
      %880 = vmatpush2.bf16.msra.mxu0 0
      %881 = vmatprep.subr.bf16.mxu0 0
      %882 = vmatpush2.bf16.msra.mxu0 0
      %883 = vmatprep.subr.bf16.mxu0 0
      %884 = vmatpush2.bf16.msra.mxu0 0
      %885 = vmatprep.subr.bf16.mxu0 0
      %886 = vmatpush2.bf16.msra.mxu0 0
      %887 = vmatprep.mubr.bf16.mxu0 0
      %888 = vmatmul.mubr.bf16.gmra.mxu0 %v850
      %v889 = vpop.f32.mrf.mxu0
      %v890 = vadd.f32 %v844, %v889
      %v891 = vpop.f32.mrf.mxu0
      %v892 = vpop.f32.mrf.mxu0
      %v893 = vpop.f32.mrf.mxu0
      %894 = vdwg.mxu0
      %s895 = scalar_lea.vmem %s4, 8
      %v896 = vld [vmem:[%s895] sm:$0xf]
      %v898 = vsel %vm374, %v798, 0
      %v901 = vsel %vm614, %v896, 0
      %903 = vmatprep.subr.bf16.mxu0 0
      %904 = vmatpush1.bf16.msra.mxu0 0
      %905 = vmatprep.subr.bf16.mxu0 0
      %906 = vmatpush1.bf16.msra.mxu0 0
      %907 = vmatprep.subr.bf16.mxu0 0
      %908 = vmatpush1.bf16.msra.mxu0 0
      %909 = vmatprep.subr.bf16.mxu0 0
      %910 = vmatpush1.bf16.msra.mxu0 0
      %911 = vmatprep.subr.bf16.mxu0 0
      %912 = vmatpush1.bf16.msra.mxu0 0
      %913 = vmatprep.subr.bf16.mxu0 0
      %914 = vmatpush1.bf16.msra.mxu0 0
      %915 = vmatprep.subr.bf16.mxu0 0
      %916 = vmatpush1.bf16.msra.mxu0 0
      %917 = vmatprep.subr.bf16.mxu0 0
      %918 = vmatpush1.bf16.msra.mxu0 %v901
      %919 = vmatprep.subr.bf16.mxu0 0
      %920 = vmatpush2.bf16.msra.mxu0 0
      %921 = vmatprep.subr.bf16.mxu0 0
      %922 = vmatpush2.bf16.msra.mxu0 0
      %923 = vmatprep.subr.bf16.mxu0 0
      %924 = vmatpush2.bf16.msra.mxu0 0
      %925 = vmatprep.subr.bf16.mxu0 0
      %926 = vmatpush2.bf16.msra.mxu0 0
      %927 = vmatprep.subr.bf16.mxu0 0
      %928 = vmatpush2.bf16.msra.mxu0 0
      %929 = vmatprep.subr.bf16.mxu0 0
      %930 = vmatpush2.bf16.msra.mxu0 0
      %931 = vmatprep.subr.bf16.mxu0 0
      %932 = vmatpush2.bf16.msra.mxu0 0
      %933 = vmatprep.subr.bf16.mxu0 0
      %934 = vmatpush2.bf16.msra.mxu0 0
      %935 = vmatprep.mubr.bf16.mxu0 0
      %936 = vmatmul.mubr.bf16.gmra.mxu0 %v898
      %v937 = vpop.f32.mrf.mxu0
      %v938 = vadd.f32 0.0, %v937
      %v939 = vpop.f32.mrf.mxu0
      %v940 = vpop.f32.mrf.mxu0
      %v941 = vpop.f32.mrf.mxu0
      %942 = vdwg.mxu0
      %v943 = vadd.f32 %v890, %v938
      %s944 = scalar_lea.vmem %s4, 12
      %v945 = vld [vmem:[%s944] sm:$0xf]
      %v947 = vsel %vm374, %v799, 0
      %v950 = vsel %vm614, %v945, 0
      %952 = vmatprep.subr.bf16.mxu0 0
      %953 = vmatpush1.bf16.msra.mxu0 0
      %954 = vmatprep.subr.bf16.mxu0 0
      %955 = vmatpush1.bf16.msra.mxu0 0
      %956 = vmatprep.subr.bf16.mxu0 0
      %957 = vmatpush1.bf16.msra.mxu0 0
      %958 = vmatprep.subr.bf16.mxu0 0
      %959 = vmatpush1.bf16.msra.mxu0 0
      %960 = vmatprep.subr.bf16.mxu0 0
      %961 = vmatpush1.bf16.msra.mxu0 0
      %962 = vmatprep.subr.bf16.mxu0 0
      %963 = vmatpush1.bf16.msra.mxu0 0
      %964 = vmatprep.subr.bf16.mxu0 0
      %965 = vmatpush1.bf16.msra.mxu0 0
      %966 = vmatprep.subr.bf16.mxu0 0
      %967 = vmatpush1.bf16.msra.mxu0 %v950
      %968 = vmatprep.subr.bf16.mxu0 0
      %969 = vmatpush2.bf16.msra.mxu0 0
      %970 = vmatprep.subr.bf16.mxu0 0
      %971 = vmatpush2.bf16.msra.mxu0 0
      %972 = vmatprep.subr.bf16.mxu0 0
      %973 = vmatpush2.bf16.msra.mxu0 0
      %974 = vmatprep.subr.bf16.mxu0 0
      %975 = vmatpush2.bf16.msra.mxu0 0
      %976 = vmatprep.subr.bf16.mxu0 0
      %977 = vmatpush2.bf16.msra.mxu0 0
      %978 = vmatprep.subr.bf16.mxu0 0
      %979 = vmatpush2.bf16.msra.mxu0 0
      %980 = vmatprep.subr.bf16.mxu0 0
      %981 = vmatpush2.bf16.msra.mxu0 0
      %982 = vmatprep.subr.bf16.mxu0 0
      %983 = vmatpush2.bf16.msra.mxu0 0
      %984 = vmatprep.mubr.bf16.mxu0 0
      %985 = vmatmul.mubr.bf16.gmra.mxu0 %v947
      %v986 = vpop.f32.mrf.mxu0
      %v987 = vadd.f32 0.0, %v986
      %v988 = vpop.f32.mrf.mxu0
      %v989 = vpop.f32.mrf.mxu0
      %v990 = vpop.f32.mrf.mxu0
      %991 = vdwg.mxu0
      %v992 = vadd.f32 %v943, %v987
      %v993 = vld [vmem:[%s5] sm:$0x1]
      %v995 = vlaneseq
      %v996 = vshrl.u32 %v995, 7
      %v997 = vsub.s32 0, %v996
      %v998 = vrot.slane %v993, %v997
      %v1000 = vadd.f32 %v992, %v998
      %v1001 = vld [vmem:[%s356] sm:$0xff]
      %v1002 = vadd.f32 %v1000, %v1001
      %vm1003 = vcmask 261120
      %v1004 = vsel %vm1003, %v1002, 0.0
      %1005 = vadd.xlane.f32.xlu0 %v1004
      %v1006 = vpop.xlane.xlu0 %1005
      %v1007 = vrcp.pop 32.0
      %v1008 = vmul.f32 %v1006, %v1007
      %v1009 = vsub.f32 %v1002, %v1008
      %v1010 = vmul.f32 %v1009, %v1009
      %v1011 = vsel %vm1003, %v1010, 0.0
      %1012 = vadd.xlane.f32.xlu0 %v1011
      %v1013 = vpop.xlane.xlu0 %1012
      %v1014 = vmul.f32 %v1013, %v1007
      %v1015 = vadd.f32 %v1014, 1e-05
      %v1016 = vrsqrt.pop %v1015
      %v1017 = vmul.f32 %v1009, %v1016
      %v1018 = vld [vmem:[%s6] sm:$0x1]
      %v1020 = vlaneseq
      %v1021 = vshrl.u32 %v1020, 7
      %v1022 = vsub.s32 0, %v1021
      %v1023 = vrot.slane %v1018, %v1022
      %v1025 = vmul.f32 %v1017, %v1023
      %v1026 = vld [vmem:[%s7] sm:$0x1]
      %v1028 = vlaneseq
      %v1029 = vshrl.u32 %v1028, 7
      %v1030 = vsub.s32 0, %v1029
      %v1031 = vrot.slane %v1026, %v1030
      %v1033 = vadd.f32 %v1025, %v1031
      %1034 = vst.msk [vmem:[%s360] sm:$0xff] %vm1003, %v1033
      %p1035 = scmp.lt.s32.totalorder %s19, 1
      %s1036 = scalar_select %p1035, %s19, 1
      %s1037 = smul.addr %s1036, 8
      %s1038 = scalar_lea.vmem %s8, %s1037
      // Predicated region
      $region53: #{encoder_forward.9} parent=51 // pred_check
        %p1039 = pneg %p225
      $region54: #{encoder_forward.9} parent=51 // pred_check_branch
        %1041 = sbr.rel (%p1039) target = $region56
      $region55: #{encoder_forward.9} parent=51 // pred_region
        _
      $region56: #{encoder_forward.9} parent=51 // pred_fallthru
        _
    $region52: #{encoder_forward.9} parent=5 // pred_fallthru
      _
    %p1042 = scmp.le.s32.totalorder 2, %s14
    // Predicated region
    $region57: #{encoder_forward.9} parent=5 // pred_check
      %p1043 = pneg %p1042
    $region58: #{encoder_forward.9} parent=5 // pred_check_branch
      %1045 = sbr.rel (%p1043) target = $region60
    $region59: #{encoder_forward.9} parent=5 // pred_region
      %s1046 = ssub.s32 %s14, 2
      // Predicated region
      $region61: #{encoder_forward.9} parent=59 // pred_check
        %p1047 = pneg %p231
      $region62: #{encoder_forward.9} parent=59 // pred_check_branch
        %1049 = sbr.rel (%p1047) target = $region64
      $region63: #{encoder_forward.9} parent=59 // pred_region
        %p1050 = scmp.lt.s32.totalorder %s20, 1
        %s1051 = scalar_select %p1050, %s20, 1
        %s1052 = smul.addr %s1051, 8
        %s1053 = scalar_lea.vmem %s8, %s1052
      $region64: #{encoder_forward.9} parent=59 // pred_fallthru
        _
    $region60: #{encoder_forward.9} parent=5 // pred_fallthru
      _
  $region6: #{encoder_forward.9} parent=0 // loop_footer
    %s18 = sadd.s32 1, %s14
  $region7: #{encoder_forward.9} parent=0 // loop_footer_branch
    %13 = sbr.rel target = $region3
  $region8: #{encoder_forward.9} parent=0 // loop_exit
    _

// kernel: encoder_forward.12
$region0: #{encoder_forward.12}
  #allocation0 [shape = 'u32[]', space=smem, size = 0x4, offset = 0x4, fixed_abs, tag = 'smem constant byte address 0x4 - core index']
  #allocation1 [shape = 'u32[144,128]{1,0:T(1,128)}', space=vmem, size = 0x12000, scoped, tag = 'internal scratch']
  %s0 = inlined_call_operand.vmem [shape: bf16[2,4,8,8], index: 0, kind: input, shape index: {}]
  %s1 = inlined_call_operand.vmem [shape: bf16[2,4,8,8], index: 1, kind: input, shape index: {}]
  %s2 = inlined_call_operand.vmem [shape: bf16[2,4,8,8], index: 2, kind: input, shape index: {}]
  %s3 = inlined_call_operand.vmem [shape: f32[2,8,32], index: 3, kind: input, shape index: {}]
  %s4 = inlined_call_operand.vmem [shape: bf16[4,8,32], index: 4, kind: input, shape index: {}]
  %s5 = inlined_call_operand.vmem [shape: f32[1,32], index: 5, kind: input, shape index: {}]
  %s6 = inlined_call_operand.vmem [shape: f32[1,32], index: 6, kind: input, shape index: {}]
  %s7 = inlined_call_operand.vmem [shape: f32[1,32], index: 7, kind: input, shape index: {}]
  %s8 = inlined_call_operand.vmem [shape: f32[2,8,32], index: 8, kind: output, shape index: {0}]
  %s9 = inlined_call_operand.hbm [shape: f32[2,4,8,8], index: 9, kind: output, shape index: {1}]
  %10 = xla_tuple %s8, %s9
  %s11 = sld [smem:[#allocation0]]
  $region73: #{encoder_forward.12} parent=0
    _
  %s13 = ssub.s32 1, %s11
  %s14 = scalar_select 0, %s13, %s11
  $region1: #{encoder_forward.12} parent=0
    #allocation2 [shape = 'u8[32768]{0}', space=vmem, size = 0x8000, scoped, tag = 'output window, operand 1']
    #allocation3 [shape = 's32[2]{0}', space=sflag, size = 0x8, scoped, tag = 'scoped memory for encoder_forward.12']
    %15 = vsyncpa [#allocation3], 0
    %s16 = scalar_lea.sflag [#allocation3], 1
    %17 = vsyncpa %s16, 0
    loop: start=0, step=1, limit=4
    $region2: #{encoder_forward.12} parent=1 // loop_pre_header
      _
    $region3: #{encoder_forward.12} parent=1 // loop_header
      %s19 = sphi 0, %s23
      %p20 = scmp.ge.s32.totalorder %s19, 4
      %s29 = sphi 0, %s31
      %s32 = sphi 0, %s29
      %s33 = sphi 0, %s32
      %s49 = sphi 0, %s33
      %s55 = sphi 0, %s57
      %s58 = sphi 0, %s55
      %s59 = sphi 0, %s58
      %s75 = sphi 0, %s59
      %s81 = sphi 0, %s83
      %s84 = sphi 0, %s81
      %s85 = sphi 0, %s84
      %s101 = sphi 0, %s85
      %s107 = sphi 0, %s109
      %s110 = sphi 0, %s107
      %s111 = sphi 0, %s110
      %s127 = sphi 0, %s111
      %s131 = sphi 0, %s131
      %s133 = sphi 0, %s131
      %s134 = sphi 0, %s133
      %s148 = sphi 0, %s134
      %s152 = sphi 0, %s152
      %s154 = sphi 0, %s152
      %s155 = sphi 0, %s154
      %s169 = sphi 0, %s155
      %s173 = sphi 0, %s173
      %s175 = sphi 0, %s173
      %s176 = sphi 0, %s175
      %s190 = sphi 0, %s176
      %s194 = sphi 0, %s194
      %s196 = sphi 0, %s194
      %s197 = sphi 0, %s196
      %s211 = sphi 0, %s197
      %s217 = sphi 0, %s219
      %s220 = sphi 0, %s217
      %s221 = sphi 0, %s220
      %s237 = sphi 0, %s221
      %s243 = sphi 0, %s245
      %s246 = sphi 0, %s243
      %s247 = sphi 0, %s246
      %s263 = sphi 0, %s247
    $region4: #{encoder_forward.12} parent=1 // loop_header_branch
      %22 = sbr.rel (%p20) target = $region8
    $region5: #{encoder_forward.12} parent=1 // loop_body
      %s24 = ssub.s32 %s19, 1
      %s25 = ssub.s32 %s19, 2
      %s26 = sadd.s32 %s19, 1
      %s27 = ssub.s32 %s19, %s26
      %p28 = scmp.eq.s32.totalorder %s27, 0
      %s30 = sadd.s32 %s29, 1
      %s31 = scalar_select %p28, %s29, %s30
      %p34 = pneg %p28
      %p35 = scmp.eq.s32.totalorder %s19, 1
      %p36 = por %p34, %p35
      %p37 = scmp.ne.s32.totalorder %s29, %s32
      %p38 = scmp.eq.s32.totalorder %s19, 0
      %p39 = por %p37, %p38
      %p40 = scmp.ne.s32.totalorder %s29, %s32
      %p41 = scmp.eq.s32.totalorder %s24, 1
      %p42 = por %p40, %p41
      %p43 = scmp.ne.s32.totalorder %s32, %s33
      %p44 = scmp.eq.s32.totalorder %s24, 0
      %p45 = por %p43, %p44
      %p46 = scmp.ne.s32.totalorder %s32, %s33
      %p47 = scmp.eq.s32.totalorder %s25, 1
      %p48 = por %p46, %p47
      %p50 = scmp.ne.s32.totalorder %s33, %s49
      %p51 = scmp.eq.s32.totalorder %s25, 0
      %p52 = por %p50, %p51
      %s53 = ssub.s32 %s19, %s26
      %p54 = scmp.eq.s32.totalorder %s53, 0
      %s56 = sadd.s32 %s55, 1
      %s57 = scalar_select %p54, %s55, %s56
      %p60 = pneg %p54
      %p61 = scmp.eq.s32.totalorder %s19, 1
      %p62 = por %p60, %p61
      %p63 = scmp.ne.s32.totalorder %s55, %s58
      %p64 = scmp.eq.s32.totalorder %s19, 0
      %p65 = por %p63, %p64
      %p66 = scmp.ne.s32.totalorder %s55, %s58
      %p67 = scmp.eq.s32.totalorder %s24, 1
      %p68 = por %p66, %p67
      %p69 = scmp.ne.s32.totalorder %s58, %s59
      %p70 = scmp.eq.s32.totalorder %s24, 0
      %p71 = por %p69, %p70
      %p72 = scmp.ne.s32.totalorder %s58, %s59
      %p73 = scmp.eq.s32.totalorder %s25, 1
      %p74 = por %p72, %p73
      %p76 = scmp.ne.s32.totalorder %s59, %s75
      %p77 = scmp.eq.s32.totalorder %s25, 0
      %p78 = por %p76, %p77
      %s79 = ssub.s32 %s19, %s26
      %p80 = scmp.eq.s32.totalorder %s79, 0
      %s82 = sadd.s32 %s81, 1
      %s83 = scalar_select %p80, %s81, %s82
      %p86 = pneg %p80
      %p87 = scmp.eq.s32.totalorder %s19, 1
      %p88 = por %p86, %p87
      %p89 = scmp.ne.s32.totalorder %s81, %s84
      %p90 = scmp.eq.s32.totalorder %s19, 0
      %p91 = por %p89, %p90
      %p92 = scmp.ne.s32.totalorder %s81, %s84
      %p93 = scmp.eq.s32.totalorder %s24, 1
      %p94 = por %p92, %p93
      %p95 = scmp.ne.s32.totalorder %s84, %s85
      %p96 = scmp.eq.s32.totalorder %s24, 0
      %p97 = por %p95, %p96
      %p98 = scmp.ne.s32.totalorder %s84, %s85
      %p99 = scmp.eq.s32.totalorder %s25, 1
      %p100 = por %p98, %p99
      %p102 = scmp.ne.s32.totalorder %s85, %s101
      %p103 = scmp.eq.s32.totalorder %s25, 0
      %p104 = por %p102, %p103
      %s105 = ssub.s32 %s19, %s26
      %p106 = scmp.eq.s32.totalorder %s105, 0
      %s108 = sadd.s32 %s107, 1
      %s109 = scalar_select %p106, %s107, %s108
      %p112 = pneg %p106
      %p113 = scmp.eq.s32.totalorder %s19, 1
      %p114 = por %p112, %p113
      %p115 = scmp.ne.s32.totalorder %s107, %s110
      %p116 = scmp.eq.s32.totalorder %s19, 0
      %p117 = por %p115, %p116
      %p118 = scmp.ne.s32.totalorder %s107, %s110
      %p119 = scmp.eq.s32.totalorder %s24, 1
      %p120 = por %p118, %p119
      %p121 = scmp.ne.s32.totalorder %s110, %s111
      %p122 = scmp.eq.s32.totalorder %s24, 0
      %p123 = por %p121, %p122
      %p124 = scmp.ne.s32.totalorder %s110, %s111
      %p125 = scmp.eq.s32.totalorder %s25, 1
      %p126 = por %p124, %p125
      %p128 = scmp.ne.s32.totalorder %s111, %s127
      %p129 = scmp.eq.s32.totalorder %s25, 0
      %p130 = por %p128, %p129
      %s132 = sadd.s32 %s131, 1
      %p135 = scmp.eq.s32.totalorder %s19, 1
      %p136 = scmp.ne.s32.totalorder %s131, %s133
      %p137 = scmp.eq.s32.totalorder %s19, 0
      %p138 = por %p136, %p137
      %p139 = scmp.ne.s32.totalorder %s131, %s133
      %p140 = scmp.eq.s32.totalorder %s24, 1
      %p141 = por %p139, %p140
      %p142 = scmp.ne.s32.totalorder %s133, %s134
      %p143 = scmp.eq.s32.totalorder %s24, 0
      %p144 = por %p142, %p143
      %p145 = scmp.ne.s32.totalorder %s133, %s134
      %p146 = scmp.eq.s32.totalorder %s25, 1
      %p147 = por %p145, %p146
      %p149 = scmp.ne.s32.totalorder %s134, %s148
      %p150 = scmp.eq.s32.totalorder %s25, 0
      %p151 = por %p149, %p150
      %s153 = sadd.s32 %s152, 1
      %p156 = scmp.eq.s32.totalorder %s19, 1
      %p157 = scmp.ne.s32.totalorder %s152, %s154
      %p158 = scmp.eq.s32.totalorder %s19, 0
      %p159 = por %p157, %p158
      %p160 = scmp.ne.s32.totalorder %s152, %s154
      %p161 = scmp.eq.s32.totalorder %s24, 1
      %p162 = por %p160, %p161
      %p163 = scmp.ne.s32.totalorder %s154, %s155
      %p164 = scmp.eq.s32.totalorder %s24, 0
      %p165 = por %p163, %p164
      %p166 = scmp.ne.s32.totalorder %s154, %s155
      %p167 = scmp.eq.s32.totalorder %s25, 1
      %p168 = por %p166, %p167
      %p170 = scmp.ne.s32.totalorder %s155, %s169
      %p171 = scmp.eq.s32.totalorder %s25, 0
      %p172 = por %p170, %p171
      %s174 = sadd.s32 %s173, 1
      %p177 = scmp.eq.s32.totalorder %s19, 1
      %p178 = scmp.ne.s32.totalorder %s173, %s175
      %p179 = scmp.eq.s32.totalorder %s19, 0
      %p180 = por %p178, %p179
      %p181 = scmp.ne.s32.totalorder %s173, %s175
      %p182 = scmp.eq.s32.totalorder %s24, 1
      %p183 = por %p181, %p182
      %p184 = scmp.ne.s32.totalorder %s175, %s176
      %p185 = scmp.eq.s32.totalorder %s24, 0
      %p186 = por %p184, %p185
      %p187 = scmp.ne.s32.totalorder %s175, %s176
      %p188 = scmp.eq.s32.totalorder %s25, 1
      %p189 = por %p187, %p188
      %p191 = scmp.ne.s32.totalorder %s176, %s190
      %p192 = scmp.eq.s32.totalorder %s25, 0
      %p193 = por %p191, %p192
      %s195 = sadd.s32 %s194, 1
      %p198 = scmp.eq.s32.totalorder %s19, 1
      %p199 = scmp.ne.s32.totalorder %s194, %s196
      %p200 = scmp.eq.s32.totalorder %s19, 0
      %p201 = por %p199, %p200
      %p202 = scmp.ne.s32.totalorder %s194, %s196
      %p203 = scmp.eq.s32.totalorder %s24, 1
      %p204 = por %p202, %p203
      %p205 = scmp.ne.s32.totalorder %s196, %s197
      %p206 = scmp.eq.s32.totalorder %s24, 0
      %p207 = por %p205, %p206
      %p208 = scmp.ne.s32.totalorder %s196, %s197
      %p209 = scmp.eq.s32.totalorder %s25, 1
      %p210 = por %p208, %p209
      %p212 = scmp.ne.s32.totalorder %s197, %s211
      %p213 = scmp.eq.s32.totalorder %s25, 0
      %p214 = por %p212, %p213
      %s215 = ssub.s32 %s19, %s26
      %p216 = scmp.eq.s32.totalorder %s215, 0
      %s218 = sadd.s32 %s217, 1
      %s219 = scalar_select %p216, %s217, %s218
      %p222 = pneg %p216
      %p223 = scmp.eq.s32.totalorder %s19, 1
      %p224 = por %p222, %p223
      %p225 = scmp.ne.s32.totalorder %s217, %s220
      %p226 = scmp.eq.s32.totalorder %s19, 0
      %p227 = por %p225, %p226
      %p228 = scmp.ne.s32.totalorder %s217, %s220
      %p229 = scmp.eq.s32.totalorder %s24, 1
      %p230 = por %p228, %p229
      %p231 = scmp.ne.s32.totalorder %s220, %s221
      %p232 = scmp.eq.s32.totalorder %s24, 0
      %p233 = por %p231, %p232
      %p234 = scmp.ne.s32.totalorder %s220, %s221
      %p235 = scmp.eq.s32.totalorder %s25, 1
      %p236 = por %p234, %p235
      %p238 = scmp.ne.s32.totalorder %s221, %s237
      %p239 = scmp.eq.s32.totalorder %s25, 0
      %p240 = por %p238, %p239
      %s241 = ssub.s32 %s19, %s26
      %p242 = scmp.eq.s32.totalorder %s241, 0
      %s244 = sadd.s32 %s243, 1
      %s245 = scalar_select %p242, %s243, %s244
      %p248 = pneg %p242
      %p249 = scmp.eq.s32.totalorder %s19, 1
      %p250 = por %p248, %p249
      %p251 = scmp.ne.s32.totalorder %s243, %s246
      %p252 = scmp.eq.s32.totalorder %s19, 0
      %p253 = por %p251, %p252
      %p254 = scmp.ne.s32.totalorder %s243, %s246
      %p255 = scmp.eq.s32.totalorder %s24, 1
      %p256 = por %p254, %p255
      %p257 = scmp.ne.s32.totalorder %s246, %s247
      %p258 = scmp.eq.s32.totalorder %s24, 0
      %p259 = por %p257, %p258
      %p260 = scmp.ne.s32.totalorder %s246, %s247
      %p261 = scmp.eq.s32.totalorder %s25, 1
      %p262 = por %p260, %p261
      %p264 = scmp.ne.s32.totalorder %s247, %s263
      %p265 = scmp.eq.s32.totalorder %s25, 0
      %p266 = por %p264, %p265
      %p267 = scmp.le.s32.totalorder 1, %s19
      %p268 = scmp.lt.s32.totalorder %s19, 3
      %p269 = pnand %p267, %p268
      %p270 = pneg %p269
      // Predicated region
      $region9: #{encoder_forward.12} parent=5 // pred_check
        _
      $region10: #{encoder_forward.12} parent=5 // pred_check_branch
        %272 = sbr.rel (%p269) target = $region12
      $region11: #{encoder_forward.12} parent=5 // pred_region
        %s273 = ssub.s32 %s19, 1
        // Predicated region
        $region13: #{encoder_forward.12} parent=11 // pred_check
          %p274 = pneg %p144
        $region14: #{encoder_forward.12} parent=11 // pred_check_branch
          %276 = sbr.rel (%p274) target = $region16
        $region15: #{encoder_forward.12} parent=11 // pred_region
          _
        $region16: #{encoder_forward.12} parent=11 // pred_fallthru
          _
        // Predicated region
        $region17: #{encoder_forward.12} parent=11 // pred_check
          %p277 = pneg %p165
        $region18: #{encoder_forward.12} parent=11 // pred_check_branch
          %279 = sbr.rel (%p277) target = $region20
        $region19: #{encoder_forward.12} parent=11 // pred_region
          _
        $region20: #{encoder_forward.12} parent=11 // pred_fallthru
          _
        // Predicated region
        $region21: #{encoder_forward.12} parent=11 // pred_check
          %p280 = pneg %p186
        $region22: #{encoder_forward.12} parent=11 // pred_check_branch
          %282 = sbr.rel (%p280) target = $region24
        $region23: #{encoder_forward.12} parent=11 // pred_region
          _
        $region24: #{encoder_forward.12} parent=11 // pred_fallthru
          _
        // Predicated region
        $region25: #{encoder_forward.12} parent=11 // pred_check
          %p283 = pneg %p207
        $region26: #{encoder_forward.12} parent=11 // pred_check_branch
          %285 = sbr.rel (%p283) target = $region28
        $region27: #{encoder_forward.12} parent=11 // pred_region
          _
        $region28: #{encoder_forward.12} parent=11 // pred_fallthru
          _
      $region12: #{encoder_forward.12} parent=5 // pred_fallthru
        _
      %p286 = scmp.lt.s32.totalorder %s19, 2
      // Predicated region
      $region29: #{encoder_forward.12} parent=5 // pred_check
        %p287 = pneg %p286
      $region30: #{encoder_forward.12} parent=5 // pred_check_branch
        %289 = sbr.rel (%p287) target = $region32
      $region31: #{encoder_forward.12} parent=5 // pred_region
        // Predicated region
        $region33: #{encoder_forward.12} parent=31 // pred_check
          %p290 = pneg %p39
        $region34: #{encoder_forward.12} parent=31 // pred_check_branch
          %292 = sbr.rel (%p290) target = $region36
        $region35: #{encoder_forward.12} parent=31 // pred_region
          %p293 = scmp.lt.s32.totalorder %s19, 1
          %s294 = scalar_select %p293, %s19, 1
          %s295 = smul.addr %s294, 4
          %s296 = smul.addr %s295, 4
          %s297 = scalar_lea.vmem %s0, %s296
        $region36: #{encoder_forward.12} parent=31 // pred_fallthru
          _
        // Predicated region
        $region37: #{encoder_forward.12} parent=31 // pred_check
          %p298 = pneg %p65
        $region38: #{encoder_forward.12} parent=31 // pred_check_branch
          %300 = sbr.rel (%p298) target = $region40
        $region39: #{encoder_forward.12} parent=31 // pred_region
          %p301 = scmp.lt.s32.totalorder %s19, 1
          %s302 = scalar_select %p301, %s19, 1
          %s303 = smul.addr %s302, 4
          %s304 = smul.addr %s303, 4
          %s305 = scalar_lea.vmem %s1, %s304
        $region40: #{encoder_forward.12} parent=31 // pred_fallthru
          _
        // Predicated region
        $region41: #{encoder_forward.12} parent=31 // pred_check
          %p306 = pneg %p91
        $region42: #{encoder_forward.12} parent=31 // pred_check_branch
          %308 = sbr.rel (%p306) target = $region44
        $region43: #{encoder_forward.12} parent=31 // pred_region
          %p309 = scmp.lt.s32.totalorder %s19, 1
          %s310 = scalar_select %p309, %s19, 1
          %s311 = smul.addr %s310, 4
          %s312 = smul.addr %s311, 4
          %s313 = scalar_lea.vmem %s2, %s312
        $region44: #{encoder_forward.12} parent=31 // pred_fallthru
          _
        // Predicated region
        $region45: #{encoder_forward.12} parent=31 // pred_check
          %p314 = pneg %p117
        $region46: #{encoder_forward.12} parent=31 // pred_check_branch
          %316 = sbr.rel (%p314) target = $region48
        $region47: #{encoder_forward.12} parent=31 // pred_region
          %p317 = scmp.lt.s32.totalorder %s19, 1
          %s318 = scalar_select %p317, %s19, 1
          %s319 = smul.addr %s318, 8
          %s320 = scalar_lea.vmem %s3, %s319
        $region48: #{encoder_forward.12} parent=31 // pred_fallthru
          _
      $region32: #{encoder_forward.12} parent=5 // pred_fallthru
        _
      %p321 = scmp.le.s32.totalorder 1, %s19
      %p322 = scmp.lt.s32.totalorder %s19, 3
      %p323 = pnand %p321, %p322
      %p324 = pneg %p323
      // Predicated region
      $region49: #{encoder_forward.12} parent=5 // pred_check
        _
      $region50: #{encoder_forward.12} parent=5 // pred_check_branch
        %326 = sbr.rel (%p323) target = $region52
      $region51: #{encoder_forward.12} parent=5 // pred_region
        %s327 = ssub.s32 %s19, 1
        %p328 = scmp.lt.s32.totalorder %s24, 1
        %s329 = scalar_select %p328, %s24, 1
        %s330 = smul.addr %s329, 4
        %s331 = smul.addr %s330, 4
        %s332 = scalar_lea.vmem %s0, %s331
        %p333 = pneg %p45
        %p334 = pneg %p42
        %p335 = scmp.lt.s32.totalorder %s24, 1
        %s336 = scalar_select %p335, %s24, 1
        %s337 = smul.addr %s336, 4
        %s338 = smul.addr %s337, 4
        %s339 = scalar_lea.vmem %s1, %s338
        %p340 = pneg %p71
        %p341 = pneg %p68
        %p342 = scmp.lt.s32.totalorder %s24, 1
        %s343 = scalar_select %p342, %s24, 1
        %s344 = smul.addr %s343, 4
        %s345 = smul.addr %s344, 4
        %s346 = scalar_lea.vmem %s2, %s345
        %p347 = pneg %p97
        %p348 = pneg %p94
        %p349 = scmp.lt.s32.totalorder %s24, 1
        %s350 = scalar_select %p349, %s24, 1
        %s351 = smul.addr %s350, 8
        %s352 = scalar_lea.vmem %s3, %s351
        %p353 = pneg %p123
        %p354 = pneg %p120
        %p355 = pneg %p144
        %p356 = pneg %p141
        %p357 = pneg %p165
        %p358 = pneg %p162
        %p359 = pneg %p186
        %p360 = pneg %p183
        %p361 = pneg %p207
        %p362 = pneg %p204
        %p363 = pneg %p233
        %p364 = pneg %p230
        %p365 = scmp.lt.s32.totalorder %s24, 1
        %s366 = scalar_select %p365, %s24, 1
        %s367 = smul.addr %s366, 8
        %s368 = scalar_lea.vmem %s8, %s367
        %p369 = pneg %p259
        %p370 = pneg %p256
        %s371 = sand.u32 %s246, 1
        %s372 = scalar_lea.sflag [#allocation3], %s371
        %s373 = sand.u32 %s246, 1
        %s374 = smul.addr %s373, 32
        %s375 = scalar_lea.vmem [#allocation2], %s374
        %p376 = scmp.lt.s32.totalorder %s24, 1
        %s377 = scalar_select %p376, %s24, 1
        %s378 = smul.addr %s377, 4
        %s379 = smul.addr %s378, 4
        %s380 = scalar_lea.vmem %s0, %s379
        %p381 = scmp.lt.s32.totalorder %s24, 1
        %s382 = scalar_select %p381, %s24, 1
        %s383 = smul.addr %s382, 4
        %s384 = smul.addr %s383, 4
        %s385 = scalar_lea.vmem %s1, %s384
        %p386 = scmp.lt.s32.totalorder %s24, 1
        %s387 = scalar_select %p386, %s24, 1
        %s388 = smul.addr %s387, 4
        %s389 = smul.addr %s388, 4
        %s390 = scalar_lea.vmem %s2, %s389
        %p391 = scmp.lt.s32.totalorder %s24, 1
        %s392 = scalar_select %p391, %s24, 1
        %s393 = smul.addr %s392, 8
        %s394 = scalar_lea.vmem %s3, %s393
        %p395 = scmp.lt.s32.totalorder %s24, 1
        %s396 = scalar_select %p395, %s24, 1
        %s397 = smul.addr %s396, 8
        %s398 = scalar_lea.vmem %s8, %s397
        %v400 = vld [vmem:[%s380] sm:$0xf]
        %v401 = vld [vmem:[%s380 + $0x4] sm:$0xf]
        %v402 = vld [vmem:[%s380 + $0x8] sm:$0xf]
        %v403 = vld [vmem:[%s380 + $0xc] sm:$0xf]
        %v404 = vld [vmem:[%s385] sm:$0xf]
        %v405 = vld [vmem:[%s385 + $0x4] sm:$0xf]
        %v406 = vld [vmem:[%s385 + $0x8] sm:$0xf]
        %v407 = vld [vmem:[%s385 + $0xc] sm:$0xf]
        %v408 = vld [vmem:[%s390] sm:$0xf]
        %v409 = vld [vmem:[%s390 + $0x4] sm:$0xf]
        %v410 = vld [vmem:[%s390 + $0x8] sm:$0xf]
        %v411 = vld [vmem:[%s390 + $0xc] sm:$0xf]
        %vm412 = vcmask 64512
        %v414 = vsel %vm412, %v400, 0
        %v417 = vsel %vm412, %v404, 0
        %419 = vmatprep.subr.bf16.mxu0 0
        %420 = vmatpush1.bf16.xpose.msra.mxu0 0
        %421 = vmatprep.subr.bf16.mxu0 0
        %422 = vmatpush1.bf16.xpose.msra.mxu0 0
        %423 = vmatprep.subr.bf16.mxu0 0
        %424 = vmatpush1.bf16.xpose.msra.mxu0 0
        %425 = vmatprep.subr.bf16.mxu0 0
        %426 = vmatpush1.bf16.xpose.msra.mxu0 0
        %427 = vmatprep.subr.bf16.mxu0 0
        %428 = vmatpush1.bf16.xpose.msra.mxu0 0
        %429 = vmatprep.subr.bf16.mxu0 0
        %430 = vmatpush1.bf16.xpose.msra.mxu0 0
        %431 = vmatprep.subr.bf16.mxu0 0
        %432 = vmatpush1.bf16.xpose.msra.mxu0 0
        %433 = vmatprep.subr.bf16.mxu0 0
        %434 = vmatpush1.bf16.xpose.msra.mxu0 %v417
        %435 = vmatprep.subr.bf16.mxu0 0
        %436 = vmatpush2.bf16.xpose.msra.mxu0 0
        %437 = vmatprep.subr.bf16.mxu0 0
        %438 = vmatpush2.bf16.xpose.msra.mxu0 0
        %439 = vmatprep.subr.bf16.mxu0 0
        %440 = vmatpush2.bf16.xpose.msra.mxu0 0
        %441 = vmatprep.subr.bf16.mxu0 0
        %442 = vmatpush2.bf16.xpose.msra.mxu0 0
        %443 = vmatprep.subr.bf16.mxu0 0
        %444 = vmatpush2.bf16.xpose.msra.mxu0 0
        %445 = vmatprep.subr.bf16.mxu0 0
        %446 = vmatpush2.bf16.xpose.msra.mxu0 0
        %447 = vmatprep.subr.bf16.mxu0 0
        %448 = vmatpush2.bf16.xpose.msra.mxu0 0
        %449 = vmatprep.subr.bf16.mxu0 0
        %450 = vmatpush2.bf16.xpose.msra.mxu0 0
        %451 = vmatprep.mubr.bf16.mxu0 0
        %452 = vmatmul.mubr.bf16.gmra.mxu0 %v414
        %v453 = vpop.f32.mrf.mxu0
        %v454 = vadd.f32 0.0, %v453
        %v455 = vpop.f32.mrf.mxu0
        %v456 = vpop.f32.mrf.mxu0
        %v457 = vpop.f32.mrf.mxu0
        %458 = vdwg.mxu0
        %v460 = vsel %vm412, %v401, 0
        %v463 = vsel %vm412, %v405, 0
        %465 = vmatprep.subr.bf16.mxu0 0
        %466 = vmatpush1.bf16.xpose.msra.mxu0 0
        %467 = vmatprep.subr.bf16.mxu0 0
        %468 = vmatpush1.bf16.xpose.msra.mxu0 0
        %469 = vmatprep.subr.bf16.mxu0 0
        %470 = vmatpush1.bf16.xpose.msra.mxu0 0
        %471 = vmatprep.subr.bf16.mxu0 0
        %472 = vmatpush1.bf16.xpose.msra.mxu0 0
        %473 = vmatprep.subr.bf16.mxu0 0
        %474 = vmatpush1.bf16.xpose.msra.mxu0 0
        %475 = vmatprep.subr.bf16.mxu0 0
        %476 = vmatpush1.bf16.xpose.msra.mxu0 0
        %477 = vmatprep.subr.bf16.mxu0 0
        %478 = vmatpush1.bf16.xpose.msra.mxu0 0
        %479 = vmatprep.subr.bf16.mxu0 0
        %480 = vmatpush1.bf16.xpose.msra.mxu0 %v463
        %481 = vmatprep.subr.bf16.mxu0 0
        %482 = vmatpush2.bf16.xpose.msra.mxu0 0
        %483 = vmatprep.subr.bf16.mxu0 0
        %484 = vmatpush2.bf16.xpose.msra.mxu0 0
        %485 = vmatprep.subr.bf16.mxu0 0
        %486 = vmatpush2.bf16.xpose.msra.mxu0 0
        %487 = vmatprep.subr.bf16.mxu0 0
        %488 = vmatpush2.bf16.xpose.msra.mxu0 0
        %489 = vmatprep.subr.bf16.mxu0 0
        %490 = vmatpush2.bf16.xpose.msra.mxu0 0
        %491 = vmatprep.subr.bf16.mxu0 0
        %492 = vmatpush2.bf16.xpose.msra.mxu0 0
        %493 = vmatprep.subr.bf16.mxu0 0
        %494 = vmatpush2.bf16.xpose.msra.mxu0 0
        %495 = vmatprep.subr.bf16.mxu0 0
        %496 = vmatpush2.bf16.xpose.msra.mxu0 0
        %497 = vmatprep.mubr.bf16.mxu0 0
        %498 = vmatmul.mubr.bf16.gmra.mxu0 %v460
        %v499 = vpop.f32.mrf.mxu0
        %v500 = vadd.f32 0.0, %v499
        %v501 = vpop.f32.mrf.mxu0
        %v502 = vpop.f32.mrf.mxu0
        %v503 = vpop.f32.mrf.mxu0
        %504 = vdwg.mxu0
        %v506 = vsel %vm412, %v402, 0
        %v509 = vsel %vm412, %v406, 0
        %511 = vmatprep.subr.bf16.mxu0 0
        %512 = vmatpush1.bf16.xpose.msra.mxu0 0
        %513 = vmatprep.subr.bf16.mxu0 0
        %514 = vmatpush1.bf16.xpose.msra.mxu0 0
        %515 = vmatprep.subr.bf16.mxu0 0
        %516 = vmatpush1.bf16.xpose.msra.mxu0 0
        %517 = vmatprep.subr.bf16.mxu0 0
        %518 = vmatpush1.bf16.xpose.msra.mxu0 0
        %519 = vmatprep.subr.bf16.mxu0 0
        %520 = vmatpush1.bf16.xpose.msra.mxu0 0
        %521 = vmatprep.subr.bf16.mxu0 0
        %522 = vmatpush1.bf16.xpose.msra.mxu0 0
        %523 = vmatprep.subr.bf16.mxu0 0
        %524 = vmatpush1.bf16.xpose.msra.mxu0 0
        %525 = vmatprep.subr.bf16.mxu0 0
        %526 = vmatpush1.bf16.xpose.msra.mxu0 %v509
        %527 = vmatprep.subr.bf16.mxu0 0
        %528 = vmatpush2.bf16.xpose.msra.mxu0 0
        %529 = vmatprep.subr.bf16.mxu0 0
        %530 = vmatpush2.bf16.xpose.msra.mxu0 0
        %531 = vmatprep.subr.bf16.mxu0 0
        %532 = vmatpush2.bf16.xpose.msra.mxu0 0
        %533 = vmatprep.subr.bf16.mxu0 0
        %534 = vmatpush2.bf16.xpose.msra.mxu0 0
        %535 = vmatprep.subr.bf16.mxu0 0
        %536 = vmatpush2.bf16.xpose.msra.mxu0 0
        %537 = vmatprep.subr.bf16.mxu0 0
        %538 = vmatpush2.bf16.xpose.msra.mxu0 0
        %539 = vmatprep.subr.bf16.mxu0 0
        %540 = vmatpush2.bf16.xpose.msra.mxu0 0
        %541 = vmatprep.subr.bf16.mxu0 0
        %542 = vmatpush2.bf16.xpose.msra.mxu0 0
        %543 = vmatprep.mubr.bf16.mxu0 0
        %544 = vmatmul.mubr.bf16.gmra.mxu0 %v506
        %v545 = vpop.f32.mrf.mxu0
        %v546 = vadd.f32 0.0, %v545
        %v547 = vpop.f32.mrf.mxu0
        %v548 = vpop.f32.mrf.mxu0
        %v549 = vpop.f32.mrf.mxu0
        %550 = vdwg.mxu0
        %v552 = vsel %vm412, %v403, 0
        %v555 = vsel %vm412, %v407, 0
        %557 = vmatprep.subr.bf16.mxu0 0
        %558 = vmatpush1.bf16.xpose.msra.mxu0 0
        %559 = vmatprep.subr.bf16.mxu0 0
        %560 = vmatpush1.bf16.xpose.msra.mxu0 0
        %561 = vmatprep.subr.bf16.mxu0 0
        %562 = vmatpush1.bf16.xpose.msra.mxu0 0
        %563 = vmatprep.subr.bf16.mxu0 0
        %564 = vmatpush1.bf16.xpose.msra.mxu0 0
        %565 = vmatprep.subr.bf16.mxu0 0
        %566 = vmatpush1.bf16.xpose.msra.mxu0 0
        %567 = vmatprep.subr.bf16.mxu0 0
        %568 = vmatpush1.bf16.xpose.msra.mxu0 0
        %569 = vmatprep.subr.bf16.mxu0 0
        %570 = vmatpush1.bf16.xpose.msra.mxu0 0
        %571 = vmatprep.subr.bf16.mxu0 0
        %572 = vmatpush1.bf16.xpose.msra.mxu0 %v555
        %573 = vmatprep.subr.bf16.mxu0 0
        %574 = vmatpush2.bf16.xpose.msra.mxu0 0
        %575 = vmatprep.subr.bf16.mxu0 0
        %576 = vmatpush2.bf16.xpose.msra.mxu0 0
        %577 = vmatprep.subr.bf16.mxu0 0
        %578 = vmatpush2.bf16.xpose.msra.mxu0 0
        %579 = vmatprep.subr.bf16.mxu0 0
        %580 = vmatpush2.bf16.xpose.msra.mxu0 0
        %581 = vmatprep.subr.bf16.mxu0 0
        %582 = vmatpush2.bf16.xpose.msra.mxu0 0
        %583 = vmatprep.subr.bf16.mxu0 0
        %584 = vmatpush2.bf16.xpose.msra.mxu0 0
        %585 = vmatprep.subr.bf16.mxu0 0
        %586 = vmatpush2.bf16.xpose.msra.mxu0 0
        %587 = vmatprep.subr.bf16.mxu0 0
        %588 = vmatpush2.bf16.xpose.msra.mxu0 0
        %589 = vmatprep.mubr.bf16.mxu0 0
        %590 = vmatmul.mubr.bf16.gmra.mxu0 %v552
        %v591 = vpop.f32.mrf.mxu0
        %v592 = vadd.f32 0.0, %v591
        %v593 = vpop.f32.mrf.mxu0
        %v594 = vpop.f32.mrf.mxu0
        %v595 = vpop.f32.mrf.mxu0
        %596 = vdwg.mxu0
        %v597 = vmul.f32 %v454, 0.35355338
        %v598 = vmul.f32 %v500, 0.35355338
        %v599 = vmul.f32 %v546, 0.35355338
        %v600 = vmul.f32 %v592, 0.35355338
        %v601 = vsel %vm412, %v597, -inf
        %602 = vmax.xlane.f32.xlu0 %v601
        %v603 = vpop.xlane.xlu0 %602
        %v604 = vsel %vm412, %v598, -inf
        %605 = vmax.xlane.f32.xlu0 %v604
        %v606 = vpop.xlane.xlu0 %605
        %v607 = vsel %vm412, %v599, -inf
        %608 = vmax.xlane.f32.xlu0 %v607
        %v609 = vpop.xlane.xlu0 %608
        %v610 = vsel %vm412, %v600, -inf
        %611 = vmax.xlane.f32.xlu0 %v610
        %v612 = vpop.xlane.xlu0 %611
        %v613 = vsub.f32 %v597, %v603
        %v614 = vsub.f32 %v598, %v606
        %v615 = vsub.f32 %v599, %v609
        %v616 = vsub.f32 %v600, %v612
        %v617 = vmul.f32 %v613, 1.442695
        %v618 = vpow.pop %v617
        %v619 = vmul.f32 %v614, 1.442695
        %v620 = vpow.pop %v619
        %v621 = vmul.f32 %v615, 1.442695
        %v622 = vpow.pop %v621
        %v623 = vmul.f32 %v616, 1.442695
        %v624 = vpow.pop %v623
        %v625 = vsel %vm412, %v618, 0.0
        %626 = vadd.xlane.f32.xlu0 %v625
        %v627 = vpop.xlane.xlu0 %626
        %v628 = vsel %vm412, %v620, 0.0
        %629 = vadd.xlane.f32.xlu0 %v628
        %v630 = vpop.xlane.xlu0 %629
        %v631 = vsel %vm412, %v622, 0.0
        %632 = vadd.xlane.f32.xlu0 %v631
        %v633 = vpop.xlane.xlu0 %632
        %v634 = vsel %vm412, %v624, 0.0
        %635 = vadd.xlane.f32.xlu0 %v634
        %v636 = vpop.xlane.xlu0 %635
        %v637 = vrcp.pop %v627
        %v638 = vrcp.pop %v630
        %v639 = vrcp.pop %v633
        %v640 = vrcp.pop %v636
        %v641 = vmul.f32 %v618, %v637
        %v642 = vmul.f32 %v620, %v638
        %v643 = vmul.f32 %v622, %v639
        %v644 = vmul.f32 %v624, %v640
        %v645 = vpack.c.bf16 %v641, %v641
        %v646 = vpack.c.bf16 %v642, %v642
        %v647 = vpack.c.bf16 %v643, %v643
        %v648 = vpack.c.bf16 %v644, %v644
        %v650 = vsel %vm412, %v645, 0
        %vm652 = vcmask 1043456
        %v654 = vsel %vm652, %v408, 0
        %656 = vmatprep.subr.bf16.mxu0 0
        %657 = vmatpush1.bf16.msra.mxu0 0
        %658 = vmatprep.subr.bf16.mxu0 0
        %659 = vmatpush1.bf16.msra.mxu0 0
        %660 = vmatprep.subr.bf16.mxu0 0
        %661 = vmatpush1.bf16.msra.mxu0 0
        %662 = vmatprep.subr.bf16.mxu0 0
        %663 = vmatpush1.bf16.msra.mxu0 0
        %664 = vmatprep.subr.bf16.mxu0 0
        %665 = vmatpush1.bf16.msra.mxu0 0
        %666 = vmatprep.subr.bf16.mxu0 0
        %667 = vmatpush1.bf16.msra.mxu0 0
        %668 = vmatprep.subr.bf16.mxu0 0
        %669 = vmatpush1.bf16.msra.mxu0 0
        %670 = vmatprep.subr.bf16.mxu0 0
        %671 = vmatpush1.bf16.msra.mxu0 %v654
        %672 = vmatprep.subr.bf16.mxu0 0
        %673 = vmatpush2.bf16.msra.mxu0 0
        %674 = vmatprep.subr.bf16.mxu0 0
        %675 = vmatpush2.bf16.msra.mxu0 0
        %676 = vmatprep.subr.bf16.mxu0 0
        %677 = vmatpush2.bf16.msra.mxu0 0
        %678 = vmatprep.subr.bf16.mxu0 0
        %679 = vmatpush2.bf16.msra.mxu0 0
        %680 = vmatprep.subr.bf16.mxu0 0
        %681 = vmatpush2.bf16.msra.mxu0 0
        %682 = vmatprep.subr.bf16.mxu0 0
        %683 = vmatpush2.bf16.msra.mxu0 0
        %684 = vmatprep.subr.bf16.mxu0 0
        %685 = vmatpush2.bf16.msra.mxu0 0
        %686 = vmatprep.subr.bf16.mxu0 0
        %687 = vmatpush2.bf16.msra.mxu0 0
        %688 = vmatprep.mubr.bf16.mxu0 0
        %689 = vmatmul.mubr.bf16.gmra.mxu0 %v650
        %v690 = vpop.f32.mrf.mxu0
        %v691 = vadd.f32 0.0, %v690
        %v692 = vpop.f32.mrf.mxu0
        %v693 = vpop.f32.mrf.mxu0
        %v694 = vpop.f32.mrf.mxu0
        %695 = vdwg.mxu0
        %v697 = vsel %vm412, %v646, 0
        %v700 = vsel %vm652, %v409, 0
        %702 = vmatprep.subr.bf16.mxu0 0
        %703 = vmatpush1.bf16.msra.mxu0 0
        %704 = vmatprep.subr.bf16.mxu0 0
        %705 = vmatpush1.bf16.msra.mxu0 0
        %706 = vmatprep.subr.bf16.mxu0 0
        %707 = vmatpush1.bf16.msra.mxu0 0
        %708 = vmatprep.subr.bf16.mxu0 0
        %709 = vmatpush1.bf16.msra.mxu0 0
        %710 = vmatprep.subr.bf16.mxu0 0
        %711 = vmatpush1.bf16.msra.mxu0 0
        %712 = vmatprep.subr.bf16.mxu0 0
        %713 = vmatpush1.bf16.msra.mxu0 0
        %714 = vmatprep.subr.bf16.mxu0 0
        %715 = vmatpush1.bf16.msra.mxu0 0
        %716 = vmatprep.subr.bf16.mxu0 0
        %717 = vmatpush1.bf16.msra.mxu0 %v700
        %718 = vmatprep.subr.bf16.mxu0 0
        %719 = vmatpush2.bf16.msra.mxu0 0
        %720 = vmatprep.subr.bf16.mxu0 0
        %721 = vmatpush2.bf16.msra.mxu0 0
        %722 = vmatprep.subr.bf16.mxu0 0
        %723 = vmatpush2.bf16.msra.mxu0 0
        %724 = vmatprep.subr.bf16.mxu0 0
        %725 = vmatpush2.bf16.msra.mxu0 0
        %726 = vmatprep.subr.bf16.mxu0 0
        %727 = vmatpush2.bf16.msra.mxu0 0
        %728 = vmatprep.subr.bf16.mxu0 0
        %729 = vmatpush2.bf16.msra.mxu0 0
        %730 = vmatprep.subr.bf16.mxu0 0
        %731 = vmatpush2.bf16.msra.mxu0 0
        %732 = vmatprep.subr.bf16.mxu0 0
        %733 = vmatpush2.bf16.msra.mxu0 0
        %734 = vmatprep.mubr.bf16.mxu0 0
        %735 = vmatmul.mubr.bf16.gmra.mxu0 %v697
        %v736 = vpop.f32.mrf.mxu0
        %v737 = vadd.f32 0.0, %v736
        %v738 = vpop.f32.mrf.mxu0
        %v739 = vpop.f32.mrf.mxu0
        %v740 = vpop.f32.mrf.mxu0
        %741 = vdwg.mxu0
        %v743 = vsel %vm412, %v647, 0
        %v746 = vsel %vm652, %v410, 0
        %748 = vmatprep.subr.bf16.mxu0 0
        %749 = vmatpush1.bf16.msra.mxu0 0
        %750 = vmatprep.subr.bf16.mxu0 0
        %751 = vmatpush1.bf16.msra.mxu0 0
        %752 = vmatprep.subr.bf16.mxu0 0
        %753 = vmatpush1.bf16.msra.mxu0 0
        %754 = vmatprep.subr.bf16.mxu0 0
        %755 = vmatpush1.bf16.msra.mxu0 0
        %756 = vmatprep.subr.bf16.mxu0 0
        %757 = vmatpush1.bf16.msra.mxu0 0
        %758 = vmatprep.subr.bf16.mxu0 0
        %759 = vmatpush1.bf16.msra.mxu0 0
        %760 = vmatprep.subr.bf16.mxu0 0
        %761 = vmatpush1.bf16.msra.mxu0 0
        %762 = vmatprep.subr.bf16.mxu0 0
        %763 = vmatpush1.bf16.msra.mxu0 %v746
        %764 = vmatprep.subr.bf16.mxu0 0
        %765 = vmatpush2.bf16.msra.mxu0 0
        %766 = vmatprep.subr.bf16.mxu0 0
        %767 = vmatpush2.bf16.msra.mxu0 0
        %768 = vmatprep.subr.bf16.mxu0 0
        %769 = vmatpush2.bf16.msra.mxu0 0
        %770 = vmatprep.subr.bf16.mxu0 0
        %771 = vmatpush2.bf16.msra.mxu0 0
        %772 = vmatprep.subr.bf16.mxu0 0
        %773 = vmatpush2.bf16.msra.mxu0 0
        %774 = vmatprep.subr.bf16.mxu0 0
        %775 = vmatpush2.bf16.msra.mxu0 0
        %776 = vmatprep.subr.bf16.mxu0 0
        %777 = vmatpush2.bf16.msra.mxu0 0
        %778 = vmatprep.subr.bf16.mxu0 0
        %779 = vmatpush2.bf16.msra.mxu0 0
        %780 = vmatprep.mubr.bf16.mxu0 0
        %781 = vmatmul.mubr.bf16.gmra.mxu0 %v743
        %v782 = vpop.f32.mrf.mxu0
        %v783 = vadd.f32 0.0, %v782
        %v784 = vpop.f32.mrf.mxu0
        %v785 = vpop.f32.mrf.mxu0
        %v786 = vpop.f32.mrf.mxu0
        %787 = vdwg.mxu0
        %v789 = vsel %vm412, %v648, 0
        %v792 = vsel %vm652, %v411, 0
        %794 = vmatprep.subr.bf16.mxu0 0
        %795 = vmatpush1.bf16.msra.mxu0 0
        %796 = vmatprep.subr.bf16.mxu0 0
        %797 = vmatpush1.bf16.msra.mxu0 0
        %798 = vmatprep.subr.bf16.mxu0 0
        %799 = vmatpush1.bf16.msra.mxu0 0
        %800 = vmatprep.subr.bf16.mxu0 0
        %801 = vmatpush1.bf16.msra.mxu0 0
        %802 = vmatprep.subr.bf16.mxu0 0
        %803 = vmatpush1.bf16.msra.mxu0 0
        %804 = vmatprep.subr.bf16.mxu0 0
        %805 = vmatpush1.bf16.msra.mxu0 0
        %806 = vmatprep.subr.bf16.mxu0 0
        %807 = vmatpush1.bf16.msra.mxu0 0
        %808 = vmatprep.subr.bf16.mxu0 0
        %809 = vmatpush1.bf16.msra.mxu0 %v792
        %810 = vmatprep.subr.bf16.mxu0 0
        %811 = vmatpush2.bf16.msra.mxu0 0
        %812 = vmatprep.subr.bf16.mxu0 0
        %813 = vmatpush2.bf16.msra.mxu0 0
        %814 = vmatprep.subr.bf16.mxu0 0
        %815 = vmatpush2.bf16.msra.mxu0 0
        %816 = vmatprep.subr.bf16.mxu0 0
        %817 = vmatpush2.bf16.msra.mxu0 0
        %818 = vmatprep.subr.bf16.mxu0 0
        %819 = vmatpush2.bf16.msra.mxu0 0
        %820 = vmatprep.subr.bf16.mxu0 0
        %821 = vmatpush2.bf16.msra.mxu0 0
        %822 = vmatprep.subr.bf16.mxu0 0
        %823 = vmatpush2.bf16.msra.mxu0 0
        %824 = vmatprep.subr.bf16.mxu0 0
        %825 = vmatpush2.bf16.msra.mxu0 0
        %826 = vmatprep.mubr.bf16.mxu0 0
        %827 = vmatmul.mubr.bf16.gmra.mxu0 %v789
        %v828 = vpop.f32.mrf.mxu0
        %v829 = vadd.f32 0.0, %v828
        %v830 = vpop.f32.mrf.mxu0
        %v831 = vpop.f32.mrf.mxu0
        %v832 = vpop.f32.mrf.mxu0
        %833 = vdwg.mxu0
        %v834 = vpack.c.bf16 %v691, %v691
        %v835 = vpack.c.bf16 %v737, %v737
        %v836 = vpack.c.bf16 %v783, %v783
        %v837 = vpack.c.bf16 %v829, %v829
        %v838 = vld [vmem:[%s4] sm:$0xf]
        %s839 = scalar_lea.vmem %s4, 4
        %v840 = vld [vmem:[%s839] sm:$0xf]
        %v842 = vsel %vm412, %v835, 0
        %v845 = vsel %vm652, %v840, 0
        %847 = vmatprep.subr.bf16.mxu0 0
        %848 = vmatpush1.bf16.msra.mxu0 0
        %849 = vmatprep.subr.bf16.mxu0 0
        %850 = vmatpush1.bf16.msra.mxu0 0
        %851 = vmatprep.subr.bf16.mxu0 0
        %852 = vmatpush1.bf16.msra.mxu0 0
        %853 = vmatprep.subr.bf16.mxu0 0
        %854 = vmatpush1.bf16.msra.mxu0 0
        %855 = vmatprep.subr.bf16.mxu0 0
        %856 = vmatpush1.bf16.msra.mxu0 0
        %857 = vmatprep.subr.bf16.mxu0 0
        %858 = vmatpush1.bf16.msra.mxu0 0
        %859 = vmatprep.subr.bf16.mxu0 0
        %860 = vmatpush1.bf16.msra.mxu0 0
        %861 = vmatprep.subr.bf16.mxu0 0
        %862 = vmatpush1.bf16.msra.mxu0 %v845
        %863 = vmatprep.subr.bf16.mxu0 0
        %864 = vmatpush2.bf16.msra.mxu0 0
        %865 = vmatprep.subr.bf16.mxu0 0
        %866 = vmatpush2.bf16.msra.mxu0 0
        %867 = vmatprep.subr.bf16.mxu0 0
        %868 = vmatpush2.bf16.msra.mxu0 0
        %869 = vmatprep.subr.bf16.mxu0 0
        %870 = vmatpush2.bf16.msra.mxu0 0
        %871 = vmatprep.subr.bf16.mxu0 0
        %872 = vmatpush2.bf16.msra.mxu0 0
        %873 = vmatprep.subr.bf16.mxu0 0
        %874 = vmatpush2.bf16.msra.mxu0 0
        %875 = vmatprep.subr.bf16.mxu0 0
        %876 = vmatpush2.bf16.msra.mxu0 0
        %877 = vmatprep.subr.bf16.mxu0 0
        %878 = vmatpush2.bf16.msra.mxu0 0
        %879 = vmatprep.mubr.bf16.mxu0 0
        %880 = vmatmul.mubr.bf16.gmra.mxu0 %v842
        %v881 = vpop.f32.mrf.mxu0
        %v882 = vadd.f32 0.0, %v881
        %v883 = vpop.f32.mrf.mxu0
        %v884 = vpop.f32.mrf.mxu0
        %v885 = vpop.f32.mrf.mxu0
        %886 = vdwg.mxu0
        %v888 = vsel %vm412, %v834, 0
        %v891 = vsel %vm652, %v838, 0
        %893 = vmatprep.subr.bf16.mxu0 0
        %894 = vmatpush1.bf16.msra.mxu0 0
        %895 = vmatprep.subr.bf16.mxu0 0
        %896 = vmatpush1.bf16.msra.mxu0 0
        %897 = vmatprep.subr.bf16.mxu0 0
        %898 = vmatpush1.bf16.msra.mxu0 0
        %899 = vmatprep.subr.bf16.mxu0 0
        %900 = vmatpush1.bf16.msra.mxu0 0
        %901 = vmatprep.subr.bf16.mxu0 0
        %902 = vmatpush1.bf16.msra.mxu0 0
        %903 = vmatprep.subr.bf16.mxu0 0
        %904 = vmatpush1.bf16.msra.mxu0 0
        %905 = vmatprep.subr.bf16.mxu0 0
        %906 = vmatpush1.bf16.msra.mxu0 0
        %907 = vmatprep.subr.bf16.mxu0 0
        %908 = vmatpush1.bf16.msra.mxu0 %v891
        %909 = vmatprep.subr.bf16.mxu0 0
        %910 = vmatpush2.bf16.msra.mxu0 0
        %911 = vmatprep.subr.bf16.mxu0 0
        %912 = vmatpush2.bf16.msra.mxu0 0
        %913 = vmatprep.subr.bf16.mxu0 0
        %914 = vmatpush2.bf16.msra.mxu0 0
        %915 = vmatprep.subr.bf16.mxu0 0
        %916 = vmatpush2.bf16.msra.mxu0 0
        %917 = vmatprep.subr.bf16.mxu0 0
        %918 = vmatpush2.bf16.msra.mxu0 0
        %919 = vmatprep.subr.bf16.mxu0 0
        %920 = vmatpush2.bf16.msra.mxu0 0
        %921 = vmatprep.subr.bf16.mxu0 0
        %922 = vmatpush2.bf16.msra.mxu0 0
        %923 = vmatprep.subr.bf16.mxu0 0
        %924 = vmatpush2.bf16.msra.mxu0 0
        %925 = vmatprep.mubr.bf16.mxu0 0
        %926 = vmatmul.mubr.bf16.gmra.mxu0 %v888
        %v927 = vpop.f32.mrf.mxu0
        %v928 = vadd.f32 %v882, %v927
        %v929 = vpop.f32.mrf.mxu0
        %v930 = vpop.f32.mrf.mxu0
        %v931 = vpop.f32.mrf.mxu0
        %932 = vdwg.mxu0
        %s933 = scalar_lea.vmem %s4, 8
        %v934 = vld [vmem:[%s933] sm:$0xf]
        %v936 = vsel %vm412, %v836, 0
        %v939 = vsel %vm652, %v934, 0
        %941 = vmatprep.subr.bf16.mxu0 0
        %942 = vmatpush1.bf16.msra.mxu0 0
        %943 = vmatprep.subr.bf16.mxu0 0
        %944 = vmatpush1.bf16.msra.mxu0 0
        %945 = vmatprep.subr.bf16.mxu0 0
        %946 = vmatpush1.bf16.msra.mxu0 0
        %947 = vmatprep.subr.bf16.mxu0 0
        %948 = vmatpush1.bf16.msra.mxu0 0
        %949 = vmatprep.subr.bf16.mxu0 0
        %950 = vmatpush1.bf16.msra.mxu0 0
        %951 = vmatprep.subr.bf16.mxu0 0
        %952 = vmatpush1.bf16.msra.mxu0 0
        %953 = vmatprep.subr.bf16.mxu0 0
        %954 = vmatpush1.bf16.msra.mxu0 0
        %955 = vmatprep.subr.bf16.mxu0 0
        %956 = vmatpush1.bf16.msra.mxu0 %v939
        %957 = vmatprep.subr.bf16.mxu0 0
        %958 = vmatpush2.bf16.msra.mxu0 0
        %959 = vmatprep.subr.bf16.mxu0 0
        %960 = vmatpush2.bf16.msra.mxu0 0
        %961 = vmatprep.subr.bf16.mxu0 0
        %962 = vmatpush2.bf16.msra.mxu0 0
        %963 = vmatprep.subr.bf16.mxu0 0
        %964 = vmatpush2.bf16.msra.mxu0 0
        %965 = vmatprep.subr.bf16.mxu0 0
        %966 = vmatpush2.bf16.msra.mxu0 0
        %967 = vmatprep.subr.bf16.mxu0 0
        %968 = vmatpush2.bf16.msra.mxu0 0
        %969 = vmatprep.subr.bf16.mxu0 0
        %970 = vmatpush2.bf16.msra.mxu0 0
        %971 = vmatprep.subr.bf16.mxu0 0
        %972 = vmatpush2.bf16.msra.mxu0 0
        %973 = vmatprep.mubr.bf16.mxu0 0
        %974 = vmatmul.mubr.bf16.gmra.mxu0 %v936
        %v975 = vpop.f32.mrf.mxu0
        %v976 = vadd.f32 0.0, %v975
        %v977 = vpop.f32.mrf.mxu0
        %v978 = vpop.f32.mrf.mxu0
        %v979 = vpop.f32.mrf.mxu0
        %980 = vdwg.mxu0
        %v981 = vadd.f32 %v928, %v976
        %s982 = scalar_lea.vmem %s4, 12
        %v983 = vld [vmem:[%s982] sm:$0xf]
        %v985 = vsel %vm412, %v837, 0
        %v988 = vsel %vm652, %v983, 0
        %990 = vmatprep.subr.bf16.mxu0 0
        %991 = vmatpush1.bf16.msra.mxu0 0
        %992 = vmatprep.subr.bf16.mxu0 0
        %993 = vmatpush1.bf16.msra.mxu0 0
        %994 = vmatprep.subr.bf16.mxu0 0
        %995 = vmatpush1.bf16.msra.mxu0 0
        %996 = vmatprep.subr.bf16.mxu0 0
        %997 = vmatpush1.bf16.msra.mxu0 0
        %998 = vmatprep.subr.bf16.mxu0 0
        %999 = vmatpush1.bf16.msra.mxu0 0
        %1000 = vmatprep.subr.bf16.mxu0 0
        %1001 = vmatpush1.bf16.msra.mxu0 0
        %1002 = vmatprep.subr.bf16.mxu0 0
        %1003 = vmatpush1.bf16.msra.mxu0 0
        %1004 = vmatprep.subr.bf16.mxu0 0
        %1005 = vmatpush1.bf16.msra.mxu0 %v988
        %1006 = vmatprep.subr.bf16.mxu0 0
        %1007 = vmatpush2.bf16.msra.mxu0 0
        %1008 = vmatprep.subr.bf16.mxu0 0
        %1009 = vmatpush2.bf16.msra.mxu0 0
        %1010 = vmatprep.subr.bf16.mxu0 0
        %1011 = vmatpush2.bf16.msra.mxu0 0
        %1012 = vmatprep.subr.bf16.mxu0 0
        %1013 = vmatpush2.bf16.msra.mxu0 0
        %1014 = vmatprep.subr.bf16.mxu0 0
        %1015 = vmatpush2.bf16.msra.mxu0 0
        %1016 = vmatprep.subr.bf16.mxu0 0
        %1017 = vmatpush2.bf16.msra.mxu0 0
        %1018 = vmatprep.subr.bf16.mxu0 0
        %1019 = vmatpush2.bf16.msra.mxu0 0
        %1020 = vmatprep.subr.bf16.mxu0 0
        %1021 = vmatpush2.bf16.msra.mxu0 0
        %1022 = vmatprep.mubr.bf16.mxu0 0
        %1023 = vmatmul.mubr.bf16.gmra.mxu0 %v985
        %v1024 = vpop.f32.mrf.mxu0
        %v1025 = vadd.f32 0.0, %v1024
        %v1026 = vpop.f32.mrf.mxu0
        %v1027 = vpop.f32.mrf.mxu0
        %v1028 = vpop.f32.mrf.mxu0
        %1029 = vdwg.mxu0
        %v1030 = vadd.f32 %v981, %v1025
        %v1031 = vld [vmem:[%s5] sm:$0x1]
        %v1033 = vlaneseq
        %v1034 = vshrl.u32 %v1033, 7
        %v1035 = vsub.s32 0, %v1034
        %v1036 = vrot.slane %v1031, %v1035
        %v1038 = vadd.f32 %v1030, %v1036
        %v1039 = vld [vmem:[%s394] sm:$0xff]
        %v1040 = vadd.f32 %v1038, %v1039
        %vm1041 = vcmask 261120
        %v1042 = vsel %vm1041, %v1040, 0.0
        %1043 = vadd.xlane.f32.xlu0 %v1042
        %v1044 = vpop.xlane.xlu0 %1043
        %v1045 = vrcp.pop 32.0
        %v1046 = vmul.f32 %v1044, %v1045
        %v1047 = vsub.f32 %v1040, %v1046
        %v1048 = vmul.f32 %v1047, %v1047
        %v1049 = vsel %vm1041, %v1048, 0.0
        %1050 = vadd.xlane.f32.xlu0 %v1049
        %v1051 = vpop.xlane.xlu0 %1050
        %v1052 = vmul.f32 %v1051, %v1045
        %v1053 = vadd.f32 %v1052, 1e-05
        %v1054 = vrsqrt.pop %v1053
        %v1055 = vmul.f32 %v1047, %v1054
        %v1056 = vld [vmem:[%s6] sm:$0x1]
        %v1058 = vlaneseq
        %v1059 = vshrl.u32 %v1058, 7
        %v1060 = vsub.s32 0, %v1059
        %v1061 = vrot.slane %v1056, %v1060
        %v1063 = vmul.f32 %v1055, %v1061
        %v1064 = vld [vmem:[%s7] sm:$0x1]
        %v1066 = vlaneseq
        %v1067 = vshrl.u32 %v1066, 7
        %v1068 = vsub.s32 0, %v1067
        %v1069 = vrot.slane %v1064, %v1068
        %v1071 = vadd.f32 %v1063, %v1069
        %1072 = vst.msk [vmem:[%s398] sm:$0xff] %vm1041, %v1071
        %1073 = vst.msk [vmem:[%s375] sm:$0xff] %vm412, %v641
        %1074 = vst.msk [vmem:[%s375 + $0x8] sm:$0xff] %vm412, %v642
        %1075 = vst.msk [vmem:[%s375 + $0x10] sm:$0xff] %vm412, %v643
        %1076 = vst.msk [vmem:[%s375 + $0x18] sm:$0xff] %vm412, %v644
        %p1077 = scmp.lt.s32.totalorder %s24, 1
        %s1078 = scalar_select %p1077, %s24, 1
        %s1079 = smul.addr %s1078, 8
        %s1080 = scalar_lea.vmem %s8, %s1079
        %s1081 = sand.u32 %s246, 1
        %s1082 = scalar_lea.sflag [#allocation3], %s1081
        %s1083 = sand.u32 %s246, 1
        %s1084 = smul.addr %s1083, 32
        %s1085 = scalar_lea.vmem [#allocation2], %s1084
        // Predicated region
        $region53: #{encoder_forward.12} parent=51 // pred_check
          %p1086 = pneg %p230
        $region54: #{encoder_forward.12} parent=51 // pred_check_branch
          %1088 = sbr.rel (%p1086) target = $region56
        $region55: #{encoder_forward.12} parent=51 // pred_region
          _
        $region56: #{encoder_forward.12} parent=51 // pred_fallthru
          _
        // Predicated region
        $region57: #{encoder_forward.12} parent=51 // pred_check
          %p1089 = pneg %p256
        $region58: #{encoder_forward.12} parent=51 // pred_check_branch
          %1091 = sbr.rel (%p1089) target = $region60
        $region59: #{encoder_forward.12} parent=51 // pred_region
          %s1093 = ssub.s32 512, 512
          %1094 = vsyncadd %s1082, %s1093
          %s1095 = smul.addr %s24, 4
          %s1096 = smul.addr %s1095, 128
          %s1097 = scalar_lea.hbm %s9, %s1096
          %s1098 = sshll.u32 %s1085, 4
          %s1099 = int_to_ptr.vmem [resolvable:$true] %s1098
          %1104 = dma.vmem_to_hbm [thread:$0]  %s1099, 512, %s1097, %s1082, 128, 128, 8
        $region60: #{encoder_forward.12} parent=51 // pred_fallthru
          _
      $region52: #{encoder_forward.12} parent=5 // pred_fallthru
        _
      %p1105 = scmp.le.s32.totalorder 2, %s19
      // Predicated region
      $region61: #{encoder_forward.12} parent=5 // pred_check
        %p1106 = pneg %p1105
      $region62: #{encoder_forward.12} parent=5 // pred_check_branch
        %1108 = sbr.rel (%p1106) target = $region64
      $region63: #{encoder_forward.12} parent=5 // pred_region
        %s1109 = ssub.s32 %s19, 2
        // Predicated region
        $region65: #{encoder_forward.12} parent=63 // pred_check
          %p1110 = pneg %p236
        $region66: #{encoder_forward.12} parent=63 // pred_check_branch
          %1112 = sbr.rel (%p1110) target = $region68
        $region67: #{encoder_forward.12} parent=63 // pred_region
          %p1113 = scmp.lt.s32.totalorder %s25, 1
          %s1114 = scalar_select %p1113, %s25, 1
          %s1115 = smul.addr %s1114, 8
          %s1116 = scalar_lea.vmem %s8, %s1115
        $region68: #{encoder_forward.12} parent=63 // pred_fallthru
          _
        // Predicated region
        $region69: #{encoder_forward.12} parent=63 // pred_check
          %p1117 = pneg %p262
        $region70: #{encoder_forward.12} parent=63 // pred_check_branch
          %1119 = sbr.rel (%p1117) target = $region72
        $region71: #{encoder_forward.12} parent=63 // pred_region
          %s1120 = sand.u32 %s247, 1
          %s1121 = scalar_lea.sflag [#allocation3], %s1120
          %s1122 = sand.u32 %s247, 1
          %s1123 = smul.addr %s1122, 32
          %s1124 = scalar_lea.vmem [#allocation2], %s1123
          %1125 = dma.done %s1121, 512
        $region72: #{encoder_forward.12} parent=63 // pred_fallthru
          _
      $region64: #{encoder_forward.12} parent=5 // pred_fallthru
        _
    $region6: #{encoder_forward.12} parent=1 // loop_footer
      %s23 = sadd.s32 1, %s19
    $region7: #{encoder_forward.12} parent=1 // loop_footer_branch
      %18 = sbr.rel target = $region3
    $region8: #{encoder_forward.12} parent=1 // loop_exit
      _
    %1126 = vsyncpa [#allocation3], 1
    %s1127 = scalar_lea.sflag [#allocation3], 1
    %1128 = vsyncpa %s1127, 1

// kernel: encoder_forward.13
$region0: #{encoder_forward.13}
  #allocation0 [shape = 'u32[]', space=smem, size = 0x4, offset = 0x4, fixed_abs, tag = 'smem constant byte address 0x4 - core index']
  #allocation1 [shape = 'u32[144,128]{1,0:T(1,128)}', space=vmem, size = 0x12000, scoped, tag = 'internal scratch']
  %s0 = inlined_call_operand.vmem [shape: f32[16,32], index: 0, kind: input, shape index: {}]
  %s1 = inlined_call_operand.vmem [shape: bf16[32,64], index: 1, kind: input, shape index: {}]
  %s2 = inlined_call_operand.vmem [shape: f32[1,64], index: 2, kind: input, shape index: {}]
  %s3 = inlined_call_operand.vmem [shape: bf16[64,32], index: 3, kind: input, shape index: {}]
  %s4 = inlined_call_operand.vmem [shape: f32[1,32], index: 4, kind: input, shape index: {}]
  %s5 = inlined_call_operand.vmem [shape: f32[1,32], index: 5, kind: input, shape index: {}]
  %s6 = inlined_call_operand.vmem [shape: f32[1,32], index: 6, kind: input, shape index: {}]
  %s7 = inlined_call_operand.hbm [shape: f32[16,32], index: 7, kind: output, shape index: {}]
  %s8 = sld [smem:[#allocation0]]
  $region38: #{encoder_forward.13} parent=0
    _
  %s10 = ssub.s32 1, %s8
  %s11 = scalar_select 0, %s10, %s8
  $region1: #{encoder_forward.13} parent=0
    #allocation2 [shape = 'u8[8192]{0}', space=vmem, size = 0x2000, scoped, tag = 'output window, operand 0, single buffered']
    #allocation3 [shape = 's32[1]{0}', space=sflag, size = 0x4, scoped, tag = 'scoped memory for encoder_forward.13']
    %12 = vsyncpa [#allocation3], 0
    // Predicated region
    $region2: #{encoder_forward.13} parent=1 // pred_check
      _
    $region3: #{encoder_forward.13} parent=1 // pred_check_branch
      %14 = sbr.rel (0) target = $region5
    $region4: #{encoder_forward.13} parent=1 // pred_region
      _
    $region5: #{encoder_forward.13} parent=1 // pred_fallthru
      _
    // Predicated region
    $region6: #{encoder_forward.13} parent=1 // pred_check
      _
    $region7: #{encoder_forward.13} parent=1 // pred_check_branch
      %16 = sbr.rel (0) target = $region9
    $region8: #{encoder_forward.13} parent=1 // pred_region
      _
    $region9: #{encoder_forward.13} parent=1 // pred_fallthru
      _
    // Predicated region
    $region10: #{encoder_forward.13} parent=1 // pred_check
      _
    $region11: #{encoder_forward.13} parent=1 // pred_check_branch
      %18 = sbr.rel (0) target = $region13
    $region12: #{encoder_forward.13} parent=1 // pred_region
      _
    $region13: #{encoder_forward.13} parent=1 // pred_fallthru
      _
    // Predicated region
    $region14: #{encoder_forward.13} parent=1 // pred_check
      _
    $region15: #{encoder_forward.13} parent=1 // pred_check_branch
      %20 = sbr.rel (0) target = $region17
    $region16: #{encoder_forward.13} parent=1 // pred_region
      _
    $region17: #{encoder_forward.13} parent=1 // pred_fallthru
      _
    // Predicated region
    $region18: #{encoder_forward.13} parent=1 // pred_check
      _
    $region19: #{encoder_forward.13} parent=1 // pred_check_branch
      %22 = sbr.rel (0) target = $region21
    $region20: #{encoder_forward.13} parent=1 // pred_region
      _
    $region21: #{encoder_forward.13} parent=1 // pred_fallthru
      _
    // Predicated region
    $region22: #{encoder_forward.13} parent=1 // pred_check
      _
    $region23: #{encoder_forward.13} parent=1 // pred_check_branch
      %24 = sbr.rel (0) target = $region25
    $region24: #{encoder_forward.13} parent=1 // pred_region
      _
    $region25: #{encoder_forward.13} parent=1 // pred_fallthru
      _
    // Predicated region
    $region26: #{encoder_forward.13} parent=1 // pred_check
      _
    $region27: #{encoder_forward.13} parent=1 // pred_check_branch
      %26 = sbr.rel (0) target = $region29
    $region28: #{encoder_forward.13} parent=1 // pred_region
      _
    $region29: #{encoder_forward.13} parent=1 // pred_fallthru
      _
    %v28 = vld [vmem:[%s0] sm:$0xff]
    %v29 = vld [vmem:[%s0 + $0x8] sm:$0xff]
    %v30 = vpack.c.bf16 %v29, %v28
    %v31 = vld [vmem:[%s1] sm:$0xf]
    %v32 = vld [vmem:[%s1 + $0x4] sm:$0xf]
    %v33 = vld [vmem:[%s1 + $0x8] sm:$0xf]
    %v34 = vld [vmem:[%s1 + $0xc] sm:$0xf]
    %v35 = vld [vmem:[%s2] sm:$0x1]
    %v37 = vlaneseq
    %v38 = vshrl.u32 %v37, 7
    %v39 = vsub.s32 0, %v38
    %v40 = vrot.slane %v35, %v39
    %v46 = vunpack.c.l.b16 %v31
    %v47 = vunpack.c.l.b16 %v32
    %v48 = vunpack.c.l.b16 %v33
    %v49 = vunpack.c.l.b16 %v34
    %v50 = vpack.c.b16 %v47, %v46
    %v51 = vpack.c.b16 %v49, %v48
    %vm54 = vcmask 261120
    %v56 = vsel %vm54, %v30, 0
    %58 = vmatprep.subr.bf16.mxu0 0
    %59 = vmatpush1.bf16.msra.mxu0 0
    %60 = vmatprep.subr.bf16.mxu0 0
    %61 = vmatpush1.bf16.msra.mxu0 0
    %62 = vmatprep.subr.bf16.mxu0 0
    %63 = vmatpush1.bf16.msra.mxu0 0
    %64 = vmatprep.subr.bf16.mxu0 0
    %65 = vmatpush1.bf16.msra.mxu0 0
    %66 = vmatprep.subr.bf16.mxu0 0
    %67 = vmatpush1.bf16.msra.mxu0 0
    %68 = vmatprep.subr.bf16.mxu0 0
    %69 = vmatpush1.bf16.msra.mxu0 0
    %70 = vmatprep.subr.bf16.mxu0 0
    %71 = vmatpush1.bf16.msra.mxu0 %v51
    %72 = vmatprep.subr.bf16.mxu0 0
    %73 = vmatpush1.bf16.msra.mxu0 %v50
    %74 = vmatprep.subr.bf16.mxu0 0
    %75 = vmatpush2.bf16.msra.mxu0 0
    %76 = vmatprep.subr.bf16.mxu0 0
    %77 = vmatpush2.bf16.msra.mxu0 0
    %78 = vmatprep.subr.bf16.mxu0 0
    %79 = vmatpush2.bf16.msra.mxu0 0
    %80 = vmatprep.subr.bf16.mxu0 0
    %81 = vmatpush2.bf16.msra.mxu0 0
    %82 = vmatprep.subr.bf16.mxu0 0
    %83 = vmatpush2.bf16.msra.mxu0 0
    %84 = vmatprep.subr.bf16.mxu0 0
    %85 = vmatpush2.bf16.msra.mxu0 0
    %86 = vmatprep.subr.bf16.mxu0 0
    %87 = vmatpush2.bf16.msra.mxu0 0
    %88 = vmatprep.subr.bf16.mxu0 0
    %89 = vmatpush2.bf16.msra.mxu0 0
    %90 = vmatprep.mubr.bf16.mxu0 0
    %91 = vmatmul.mubr.bf16.gmra.mxu0 %v56
    %v92 = vpop.f32.mrf.mxu0
    %v93 = vadd.f32 %v40, %v92
    %v94 = vpop.f32.mrf.mxu0
    %v95 = vpop.f32.mrf.mxu0
    %v96 = vadd.f32 %v40, %v95
    %v97 = vpop.f32.mrf.mxu0
    %98 = vdwg.mxu0
    %v99 = vmax.f32 %v93, 0.0
    %v100 = vmax.f32 %v96, 0.0
    %v101 = vpack.c.bf16 %v100, %v99
    %v102 = vld [vmem:[%s3] sm:$0xf]
    %v103 = vld [vmem:[%s3 + $0x4] sm:$0xf]
    %v104 = vld [vmem:[%s3 + $0x8] sm:$0xf]
    %v105 = vld [vmem:[%s3 + $0xc] sm:$0xf]
    %v106 = vld [vmem:[%s3 + $0x10] sm:$0xf]
    %v107 = vld [vmem:[%s3 + $0x14] sm:$0xf]
    %v108 = vld [vmem:[%s3 + $0x18] sm:$0xf]
    %v109 = vld [vmem:[%s3 + $0x1c] sm:$0xf]
    %v110 = vld [vmem:[%s4] sm:$0x1]
    %v112 = vlaneseq
    %v113 = vshrl.u32 %v112, 7
    %v114 = vsub.s32 0, %v113
    %v115 = vrot.slane %v110, %v114
    %v125 = vunpack.c.l.b16 %v102
    %v126 = vunpack.c.l.b16 %v103
    %v127 = vunpack.c.l.b16 %v104
    %v128 = vunpack.c.l.b16 %v105
    %v129 = vunpack.c.l.b16 %v106
    %v130 = vunpack.c.l.b16 %v107
    %v131 = vunpack.c.l.b16 %v108
    %v132 = vunpack.c.l.b16 %v109
    %v133 = vpack.c.b16 %v126, %v125
    %v134 = vpack.c.b16 %v128, %v127
    %v135 = vpack.c.b16 %v130, %v129
    %v136 = vpack.c.b16 %v132, %v131
    %vm141 = vcmask 523264
    %v143 = vsel %vm141, %v101, 0
    %145 = vmatprep.subr.bf16.mxu0 0
    %146 = vmatpush1.bf16.msra.mxu0 0
    %147 = vmatprep.subr.bf16.mxu0 0
    %148 = vmatpush1.bf16.msra.mxu0 0
    %149 = vmatprep.subr.bf16.mxu0 0
    %150 = vmatpush1.bf16.msra.mxu0 0
    %151 = vmatprep.subr.bf16.mxu0 0
    %152 = vmatpush1.bf16.msra.mxu0 0
    %153 = vmatprep.subr.bf16.mxu0 0
    %154 = vmatpush1.bf16.msra.mxu0 %v136
    %155 = vmatprep.subr.bf16.mxu0 0
    %156 = vmatpush1.bf16.msra.mxu0 %v135
    %157 = vmatprep.subr.bf16.mxu0 0
    %158 = vmatpush1.bf16.msra.mxu0 %v134
    %159 = vmatprep.subr.bf16.mxu0 0
    %160 = vmatpush1.bf16.msra.mxu0 %v133
    %161 = vmatprep.subr.bf16.mxu0 0
    %162 = vmatpush2.bf16.msra.mxu0 0
    %163 = vmatprep.subr.bf16.mxu0 0
    %164 = vmatpush2.bf16.msra.mxu0 0
    %165 = vmatprep.subr.bf16.mxu0 0
    %166 = vmatpush2.bf16.msra.mxu0 0
    %167 = vmatprep.subr.bf16.mxu0 0
    %168 = vmatpush2.bf16.msra.mxu0 0
    %169 = vmatprep.subr.bf16.mxu0 0
    %170 = vmatpush2.bf16.msra.mxu0 0
    %171 = vmatprep.subr.bf16.mxu0 0
    %172 = vmatpush2.bf16.msra.mxu0 0
    %173 = vmatprep.subr.bf16.mxu0 0
    %174 = vmatpush2.bf16.msra.mxu0 0
    %175 = vmatprep.subr.bf16.mxu0 0
    %176 = vmatpush2.bf16.msra.mxu0 0
    %177 = vmatprep.mubr.bf16.mxu0 0
    %178 = vmatmul.mubr.bf16.gmra.mxu0 %v143
    %v179 = vpop.f32.mrf.mxu0
    %v180 = vadd.f32 %v115, %v179
    %v181 = vpop.f32.mrf.mxu0
    %v182 = vpop.f32.mrf.mxu0
    %v183 = vadd.f32 %v115, %v182
    %v184 = vpop.f32.mrf.mxu0
    %185 = vdwg.mxu0
    %v186 = vadd.f32 %v180, %v28
    %v187 = vadd.f32 %v183, %v29
    %v188 = vsel %vm54, %v186, 0.0
    %189 = vadd.xlane.f32.xlu0 %v188
    %v190 = vpop.xlane.xlu0 %189
    %v191 = vsel %vm54, %v187, 0.0
    %192 = vadd.xlane.f32.xlu0 %v191
    %v193 = vpop.xlane.xlu0 %192
    %v194 = vrcp.pop 32.0
    %v195 = vmul.f32 %v190, %v194
    %v196 = vmul.f32 %v193, %v194
    %v197 = vsub.f32 %v186, %v195
    %v198 = vsub.f32 %v187, %v196
    %v199 = vmul.f32 %v197, %v197
    %v200 = vmul.f32 %v198, %v198
    %v201 = vsel %vm54, %v199, 0.0
    %202 = vadd.xlane.f32.xlu0 %v201
    %v203 = vpop.xlane.xlu0 %202
    %v204 = vsel %vm54, %v200, 0.0
    %205 = vadd.xlane.f32.xlu0 %v204
    %v206 = vpop.xlane.xlu0 %205
    %v207 = vmul.f32 %v203, %v194
    %v208 = vmul.f32 %v206, %v194
    %v209 = vadd.f32 %v207, 1e-05
    %v210 = vadd.f32 %v208, 1e-05
    %v211 = vrsqrt.pop %v209
    %v212 = vrsqrt.pop %v210
    %v213 = vmul.f32 %v197, %v211
    %v214 = vmul.f32 %v198, %v212
    %v215 = vld [vmem:[%s5] sm:$0x1]
    %v217 = vlaneseq
    %v218 = vshrl.u32 %v217, 7
    %v219 = vsub.s32 0, %v218
    %v220 = vrot.slane %v215, %v219
    %v222 = vmul.f32 %v213, %v220
    %v223 = vmul.f32 %v214, %v220
    %v224 = vld [vmem:[%s6] sm:$0x1]
    %v226 = vlaneseq
    %v227 = vshrl.u32 %v226, 7
    %v228 = vsub.s32 0, %v227
    %v229 = vrot.slane %v224, %v228
    %v231 = vadd.f32 %v222, %v229
    %v232 = vadd.f32 %v223, %v229
    %233 = vst.msk [vmem:[#allocation2] sm:$0xff] %vm54, %v231
    %234 = vst.msk [vmem:[#allocation2 + $0x8] sm:$0xff] %vm54, %v232
    // Predicated region
    $region30: #{encoder_forward.13} parent=1 // pred_check
      _
    $region31: #{encoder_forward.13} parent=1 // pred_check_branch
      %236 = sbr.rel (0) target = $region33
    $region32: #{encoder_forward.13} parent=1 // pred_region
      %s238 = ssub.s32 256, 256
      %239 = vsyncadd [#allocation3], %s238
      %s240 = sshll.u32 [#allocation2], 4
      %s241 = int_to_ptr.vmem [resolvable:$true] %s240
      %246 = dma.vmem_to_hbm [thread:$0]  %s241, 256, %s7, [#allocation3], 128, 128, 8
    $region33: #{encoder_forward.13} parent=1 // pred_fallthru
      _
    // Predicated region
    $region34: #{encoder_forward.13} parent=1 // pred_check
      _
    $region35: #{encoder_forward.13} parent=1 // pred_check_branch
      %248 = sbr.rel (0) target = $region37
    $region36: #{encoder_forward.13} parent=1 // pred_region
      %249 = dma.done [#allocation3], 256
    $region37: #{encoder_forward.13} parent=1 // pred_fallthru
      _
    %250 = vsyncpa [#allocation3], 1

</llo_original>
